<compile_context>
chip_gen: v7x
topology: tpu7x:2x2x1
jax: 0.10.0
libtpu: 0.0.40
codegen_flags: <defaults>
</compile_context>

<pallas_src>
import functools

import jax
import jax.numpy as jnp
from jax.experimental import pallas as pl
from jax.experimental.pallas import tpu as pltpu  # noqa: F401  (TPU backend)


# --------------------------------------------------------------------------
# Fused whole-model kernel
# --------------------------------------------------------------------------
def fused_forward_kernel(
    x_ref, off_ref, scl_ref, inw_ref, inb_ref,
    qkvw_ref, qkvb_ref, outw_ref, outb_ref,
    ln1g_ref, ln1b_ref, w1_ref, b1_ref, w2_ref, b2_ref, ln2g_ref, ln2b_ref,
    hw1_ref, hb1_ref, hw2_ref, hb2_ref,
    o_ref, *, num_heads,
):
    B, T, d_ts = x_ref.shape
    d_k = inw_ref.shape[1]
    n_layers = qkvw_ref.shape[0]
    H = num_heads
    dh = d_k // H

    def linear(v, w, b):
        return jnp.dot(v, w, preferred_element_type=jnp.float32) + b

    def layernorm(v, g, b):  # eps = 1e-5 (PyTorch default)
        mu = jnp.mean(v, axis=-1, keepdims=True)
        var = jnp.mean((v - mu) ** 2, axis=-1, keepdims=True)
        return (v - mu) * jax.lax.rsqrt(var + 1e-5) * g + b

    # ---- input preprocessing + input_dense on the flattened (B*T, .) slab ----
    x = x_ref[...].reshape(B * T, d_ts)
    xs = (x + off_ref[...]) * scl_ref[...]
    h = linear(xs, inw_ref[...], inb_ref[...])                     # (B*T, d_k)

    # ---- transformer layers (static unrolled loop, weights stay in VMEM) ----
    for l in range(n_layers):
        # single packed QKV projection (explicit Linear + MHA in_proj already
        # fused into the weight wrapper-side; q-scale folded into W_q / b_q)
        qkv = linear(h, qkvw_ref[l], qkvb_ref[l])                  # (B*T, 3*d_k)
        out_w = outw_ref[l]                                        # (d_k, d_k)

        att = jnp.zeros((B * T, d_k), jnp.float32)
        for hh in range(H):                                        # H is small & static
            qh = qkv[:, 0 * d_k + hh * dh: 0 * d_k + (hh + 1) * dh].reshape(B, T, dh)
            kh = qkv[:, 1 * d_k + hh * dh: 1 * d_k + (hh + 1) * dh].reshape(B, T, dh)
            vh = qkv[:, 2 * d_k + hh * dh: 2 * d_k + (hh + 1) * dh].reshape(B, T, dh)
            s = jnp.einsum("bqd,bkd->bqk", qh, kh,
                           preferred_element_type=jnp.float32)     # (B, T, T)
            s = s - jnp.max(s, axis=-1, keepdims=True)
            p = jnp.exp(s)
            p = p * pl.reciprocal(jnp.sum(p, axis=-1, keepdims=True), approx=True)
            oh = jnp.einsum("bqk,bkd->bqd", p, vh,
                            preferred_element_type=jnp.float32)    # (B, T, dh)
            # fold this head straight into its slice of out_proj (no concat)
            att += jnp.dot(oh.reshape(B * T, dh),
                           out_w[hh * dh:(hh + 1) * dh, :],
                           preferred_element_type=jnp.float32)
        att = att + outb_ref[l]

        x1 = layernorm(h + att, ln1g_ref[l], ln1b_ref[l])
        h1 = jnp.maximum(linear(x1, w1_ref[l], b1_ref[l]), 0.0)
        ffn = linear(h1, w2_ref[l], b2_ref[l])
        # dropout on ffn_out is identity at inference time
        h = layernorm(x1 + ffn, ln2g_ref[l], ln2b_ref[l])

    # ---- ClassifierHead_MLP: flatten -> Linear -> ReLU -> Linear ----
    # flatten realized as sum_t h[:, t, :] @ W1[t]  (W1 pre-reshaped to (T, d_k, d_mlp2))
    h3 = h.reshape(B, T, d_k)
    z = jnp.dot(h3[:, 0, :], hw1_ref[0], preferred_element_type=jnp.float32)
    for t in range(1, T):
        z += jnp.dot(h3[:, t, :], hw1_ref[t], preferred_element_type=jnp.float32)
    z = jnp.maximum(z + hb1_ref[...], 0.0)
    o_ref[...] = (
        jnp.dot(z, hw2_ref[...], preferred_element_type=jnp.float32) + hb2_ref[...]
    )


def model_forward(x, packed, num_heads):
    B = x.shape[0]
    num_classes = packed["head_w2"].shape[1]
    kernel = functools.partial(fused_forward_kernel, num_heads=num_heads)
    # No grid / no BlockSpecs: the kernel runs once with every array fully
    # resident in VMEM (total footprint here is well under 1 MiB).
    return pl.pallas_call(
        kernel,
        out_shape=jax.ShapeDtypeStruct((B, num_classes), jnp.float32),
    )(
        x, packed["offsets"], packed["scalings"], packed["in_w"], packed["in_b"],
        packed["qkv_w"], packed["qkv_b"], packed["out_w"], packed["out_b"],
        packed["ln1_g"], packed["ln1_b"], packed["w1"], packed["b1"],
        packed["w2"], packed["b2"], packed["ln2_g"], packed["ln2_b"],
        packed["head_w1"], packed["head_b1"], packed["head_w2"], packed["head_b2"],
    )


# --------------------------------------------------------------------------
# Wrapper-side weight packing (exact algebraic fusion, done once)
# --------------------------------------------------------------------------
def pack_params(params, num_heads, n_timesteps):
    d_k = params["in_w"].shape[1]
    dh = d_k // num_heads
    scale = 1.0 / (dh ** 0.5)

    qkvw, qkvb = [], []
    outw, outb = [], []
    ln1g, ln1b, ln2g, ln2b = [], [], [], []
    w1, b1, w2, b2 = [], [], [], []
    for p in params["layers"]:
        # fuse explicit q/k/v Linear with MHA in_proj:  x W a + b a  ... exact identity
        Wq = p["qkv_w"][0] @ p["mha_w"][0]
        bq = p["qkv_b"][0] @ p["mha_w"][0] + p["mha_b"][0]
        Wk = p["qkv_w"][1] @ p["mha_w"][1]
        bk = p["qkv_b"][1] @ p["mha_w"][1] + p["mha_b"][1]
        Wv = p["qkv_w"][2] @ p["mha_w"][2]
        bv = p["qkv_b"][2] @ p["mha_w"][2] + p["mha_b"][2]
        # fold the 1/sqrt(head_dim) attention scale into the q projection
        Wq = Wq * scale
        bq = bq * scale
        qkvw.append(jnp.concatenate([Wq, Wk, Wv], axis=1))          # (d_k, 3*d_k)
        qkvb.append(jnp.concatenate([bq, bk, bv])[None, :])         # (1, 3*d_k)
        outw.append(p["out_w"])
        outb.append(p["out_b"])
        ln1g.append(p["ln1_g"]); ln1b.append(p["ln1_b"])
        ln2g.append(p["ln2_g"]); ln2b.append(p["ln2_b"])
        w1.append(p["w1"]); b1.append(p["b1"])
        w2.append(p["w2"]); b2.append(p["b2"])

    d_mlp2 = params["head_w1"].shape[1]
    d_ts = params["in_w"].shape[0]
    return {
        "offsets": params["offsets"].reshape(1, d_ts),
        "scalings": params["scalings"].reshape(1, d_ts),
        "in_w": params["in_w"],
        "in_b": params["in_b"],
        "qkv_w": jnp.stack(qkvw),
        "qkv_b": jnp.stack(qkvb),
        "out_w": jnp.stack(outw),
        "out_b": jnp.stack(outb),
        "ln1_g": jnp.stack(ln1g), "ln1_b": jnp.stack(ln1b),
        "w1": jnp.stack(w1), "b1": jnp.stack(b1),
        "w2": jnp.stack(w2), "b2": jnp.stack(b2),
        "ln2_g": jnp.stack(ln2g), "ln2_b": jnp.stack(ln2b),
        "head_w1": params["head_w1"].reshape(n_timesteps, d_k, d_mlp2),
        "head_b1": params["head_b1"],
        "head_w2": params["head_w2"],
        "head_b2": params["head_b2"],
    }


# --------------------------------------------------------------------------
# Pure-JAX reference (uses the RAW, un-fused parameters -> also checks the
# wrapper-side algebraic fusion)
# --------------------------------------------------------------------------
def ref_layer(x, p, H):
    B, T, d_k = x.shape
    dh = d_k // H

    def lin(v, w, b):
        return v @ w + b

    q = lin(x, p["qkv_w"][0], p["qkv_b"][0][None, :])
    k = lin(x, p["qkv_w"][1], p["qkv_b"][1][None, :])
    v = lin(x, p["qkv_w"][2], p["qkv_b"][2][None, :])
    q = lin(q, p["mha_w"][0], p["mha_b"][0][None, :])
    k = lin(k, p["mha_w"][1], p["mha_b"][1][None, :])
    v = lin(v, p["mha_w"][2], p["mha_b"][2][None, :])

    scale = 1.0 / (dh ** 0.5)
    outs = []
    for hh in range(H):
        sl = slice(hh * dh, (hh + 1) * dh)
        qh, kh, vh = q[..., sl] * scale, k[..., sl], v[..., sl]
        s = jnp.einsum("btd,bsd->bts", qh, kh)
        pr = jax.nn.softmax(s, axis=-1)
        outs.append(jnp.einsum("bts,bsd->btd", pr, vh))
    attn = jnp.concatenate(outs, axis=-1)
    att_out = attn @ p["out_w"] + p["out_b"]

    def ln(v_, g, b):
        mu = v_.mean(-1, keepdims=True)
        var = ((v_ - mu) ** 2).mean(-1, keepdims=True)
        return (v_ - mu) * jax.lax.rsqrt(var + 1e-5) * g + b

    x1 = ln(x + att_out, p["ln1_g"], p["ln1_b"])
    h1 = jnp.maximum(x1 @ p["w1"] + p["b1"], 0.0)
    x2 = ln(x1 + h1 @ p["w2"] + p["b2"], p["ln2_g"], p["ln2_b"])
    return x2


def ref_forward(x, params, num_heads):
    h = (x + params["offsets"]) * params["scalings"]
    h = h @ params["in_w"] + params["in_b"]
    for layer_p in params["layers"]:
        h = ref_layer(h, layer_p, num_heads)
    B = h.shape[0]
    h_flat = h.reshape(B, -1)
    z = jnp.maximum(h_flat @ params["head_w1"] + params["head_b1"], 0.0)
    return z @ params["head_w2"] + params["head_b2"]


# --------------------------------------------------------------------------
# Deterministic parameter initialization (synthetic, shapes from __init__)
# --------------------------------------------------------------------------
def init_params(key, *, d_ts, d_k, d_mlp, d_mlp2, T, n_layers, num_classes):
    def nrm(k, shape, scale=0.05):
        return (scale * jax.random.normal(k, shape)).astype(jnp.float32)

    keys = jax.random.split(key, 8 + 4 * n_layers)
    ki = iter(keys)

    params = {
        "offsets": nrm(next(ki), (1, 1, d_ts), 0.1),
        "scalings": 1.0 + nrm(next(ki), (1, 1, d_ts), 0.05),
        "in_w": nrm(next(ki), (d_ts, d_k)),
        "in_b": nrm(next(ki), (1, d_k)),
        "head_w1": nrm(next(ki), (T * d_k, d_mlp2)),
        "head_b1": nrm(next(ki), (1, d_mlp2)),
        "head_w2": nrm(next(ki), (d_mlp2, num_classes)),
        "head_b2": nrm(next(ki), (1, num_classes)),
        "layers": [],
    }
    for _ in range(n_layers):
        k0, k1, k2, k3 = next(ki), next(ki), next(ki), next(ki)
        sub = jax.random.split(k0, 4)
        sub2 = jax.random.split(k1, 4)
        sub3 = jax.random.split(k2, 6)
        sub4 = jax.random.split(k3, 4)
        layer = {
            "qkv_w": nrm(sub[0], (3, d_k, d_k)),
            "qkv_b": nrm(sub[1], (3, d_k)),
            "mha_w": nrm(sub[2], (3, d_k, d_k)),
            "mha_b": nrm(sub[3], (3, d_k)),
            "out_w": nrm(sub2[0], (d_k, d_k)),
            "out_b": nrm(sub2[1], (1, d_k)),
            "ln1_g": 1.0 + nrm(sub2[2], (1, d_k), 0.02),
            "ln1_b": nrm(sub2[3], (1, d_k), 0.02),
            "w1": nrm(sub3[0], (d_k, d_mlp)),
            "b1": nrm(sub3[1], (1, d_mlp)),
            "w2": nrm(sub3[2], (d_mlp, d_k)),
            "b2": nrm(sub3[3], (1, d_k)),
            "ln2_g": 1.0 + nrm(sub4[0], (1, d_k), 0.02),
            "ln2_b": nrm(sub4[1], (1, d_k), 0.02),
        }
        params["layers"].append(layer)
    return params


if __name__ == "__main__":
    # Small shapes consistent with the module's forward semantics.
    B, T, d_ts = 2, 8, 4
    d_k, d_mlp, d_mlp2 = 32, 64, 32
    n_layers, num_heads, num_classes = 2, 4, 10

    key = jax.random.PRNGKey(0)
    kx, kp = jax.random.split(key)
    x = jax.random.normal(kx, (B, T, d_ts), dtype=jnp.float32)
    params = init_params(kp, d_ts=d_ts, d_k=d_k, d_mlp=d_mlp, d_mlp2=d_mlp2,
                         T=T, n_layers=n_layers, num_classes=num_classes)
    packed = pack_params(params, num_heads, T)   # one-time wrapper-side fusion/packing

    out = model_forward(x, packed, num_heads)
    out = jax.block_until_ready(out)
    assert out.shape == (B, num_classes), out.shape

    ref = jax.block_until_ready(ref_forward(x, params, num_heads))
    assert jnp.allclose(out, ref, atol=5e-2, rtol=5e-2), (
        f"max abs diff {jnp.max(jnp.abs(out - ref))}"
    )
    print("KERNEL_OK")
</pallas_src>

<mosaic_0001>
module attributes {stable_mosaic.version = 11 : i64} {
  func.func @fused_forward_kernel(%arg0: memref<2x8x4xf32, #tpu.memory_space<vmem>>, %arg1: memref<1x4xf32, #tpu.memory_space<vmem>>, %arg2: memref<1x4xf32, #tpu.memory_space<vmem>>, %arg3: memref<4x32xf32, #tpu.memory_space<vmem>>, %arg4: memref<1x32xf32, #tpu.memory_space<vmem>>, %arg5: memref<2x32x96xf32, #tpu.memory_space<vmem>>, %arg6: memref<2x1x96xf32, #tpu.memory_space<vmem>>, %arg7: memref<2x32x32xf32, #tpu.memory_space<vmem>>, %arg8: memref<2x1x32xf32, #tpu.memory_space<vmem>>, %arg9: memref<2x1x32xf32, #tpu.memory_space<vmem>>, %arg10: memref<2x1x32xf32, #tpu.memory_space<vmem>>, %arg11: memref<2x32x64xf32, #tpu.memory_space<vmem>>, %arg12: memref<2x1x64xf32, #tpu.memory_space<vmem>>, %arg13: memref<2x64x32xf32, #tpu.memory_space<vmem>>, %arg14: memref<2x1x32xf32, #tpu.memory_space<vmem>>, %arg15: memref<2x1x32xf32, #tpu.memory_space<vmem>>, %arg16: memref<2x1x32xf32, #tpu.memory_space<vmem>>, %arg17: memref<8x32x32xf32, #tpu.memory_space<vmem>>, %arg18: memref<1x32xf32, #tpu.memory_space<vmem>>, %arg19: memref<32x10xf32, #tpu.memory_space<vmem>>, %arg20: memref<1x10xf32, #tpu.memory_space<vmem>>, %arg21: memref<2x10xf32, #tpu.memory_space<vmem>>) attributes {dimension_semantics = [], scalar_prefetch = 0 : i64, scratch_operands = 0 : i64, tpu.core_type = #tpu.core_type<tc>} {
    %c0 = arith.constant 0 : index
    %c0_0 = arith.constant 0 : index
    %c0_1 = arith.constant 0 : index
    %0 = vector.load %arg0[%c0, %c0_0, %c0_1] : memref<2x8x4xf32, #tpu.memory_space<vmem>>, vector<2x8x4xf32>
    %1 = vector.shape_cast %0 : vector<2x8x4xf32> to vector<16x4xf32>
    %c0_2 = arith.constant 0 : index
    %c0_3 = arith.constant 0 : index
    %2 = vector.load %arg1[%c0_2, %c0_3] : memref<1x4xf32, #tpu.memory_space<vmem>>, vector<1x4xf32>
    %3 = vector.broadcast %2 : vector<1x4xf32> to vector<16x4xf32>
    %4 = arith.addf %1, %3 : vector<16x4xf32>
    %c0_4 = arith.constant 0 : index
    %c0_5 = arith.constant 0 : index
    %5 = vector.load %arg2[%c0_4, %c0_5] : memref<1x4xf32, #tpu.memory_space<vmem>>, vector<1x4xf32>
    %6 = vector.broadcast %5 : vector<1x4xf32> to vector<16x4xf32>
    %7 = arith.mulf %4, %6 : vector<16x4xf32>
    %c0_6 = arith.constant 0 : index
    %c0_7 = arith.constant 0 : index
    %8 = vector.load %arg3[%c0_6, %c0_7] : memref<4x32xf32, #tpu.memory_space<vmem>>, vector<4x32xf32>
    %c0_8 = arith.constant 0 : index
    %c0_9 = arith.constant 0 : index
    %9 = vector.load %arg4[%c0_8, %c0_9] : memref<1x32xf32, #tpu.memory_space<vmem>>, vector<1x32xf32>
    %cst = arith.constant dense<0.000000e+00> : vector<16x32xf32>
    %10 = tpu.matmul %7, %8, %cst {dimension_numbers = #tpu.dot_dimension_numbers<[1], [0], [0], [1], [0, 0, 1, 1], [], []>} : vector<16x4xf32>, vector<4x32xf32>, vector<16x32xf32> -> vector<16x32xf32>
    %11 = vector.broadcast %9 : vector<1x32xf32> to vector<16x32xf32>
    %12 = arith.addf %10, %11 : vector<16x32xf32>
    %c0_10 = arith.constant 0 : index
    %c0_11 = arith.constant 0 : index
    %c0_12 = arith.constant 0 : index
    %13 = vector.load %arg5[%c0_10, %c0_11, %c0_12] : memref<2x32x96xf32, #tpu.memory_space<vmem>>, vector<1x32x96xf32>
    %14 = vector.shape_cast %13 : vector<1x32x96xf32> to vector<32x96xf32>
    %c0_13 = arith.constant 0 : index
    %c0_14 = arith.constant 0 : index
    %c0_15 = arith.constant 0 : index
    %15 = vector.load %arg6[%c0_13, %c0_14, %c0_15] : memref<2x1x96xf32, #tpu.memory_space<vmem>>, vector<1x1x96xf32>
    %16 = vector.shape_cast %15 : vector<1x1x96xf32> to vector<1x96xf32>
    %cst_16 = arith.constant dense<0.000000e+00> : vector<16x96xf32>
    %17 = tpu.matmul %12, %14, %cst_16 {dimension_numbers = #tpu.dot_dimension_numbers<[1], [0], [0], [1], [0, 0, 1, 1], [], []>} : vector<16x32xf32>, vector<32x96xf32>, vector<16x96xf32> -> vector<16x96xf32>
    %18 = vector.broadcast %16 : vector<1x96xf32> to vector<16x96xf32>
    %19 = arith.addf %17, %18 : vector<16x96xf32>
    %c0_17 = arith.constant 0 : index
    %c0_18 = arith.constant 0 : index
    %c0_19 = arith.constant 0 : index
    %20 = vector.load %arg7[%c0_17, %c0_18, %c0_19] : memref<2x32x32xf32, #tpu.memory_space<vmem>>, vector<1x32x32xf32>
    %21 = vector.shape_cast %20 : vector<1x32x32xf32> to vector<32x32xf32>
    %cst_20 = arith.constant 0.000000e+00 : f32
    %22 = vector.broadcast %cst_20 : f32 to vector<16x32xf32>
    %23 = vector.extract_strided_slice %19 {offsets = [0, 0], sizes = [16, 8], strides = [1, 1]} : vector<16x96xf32> to vector<16x8xf32>
    %24 = vector.shape_cast %23 : vector<16x8xf32> to vector<2x8x8xf32>
    %25 = vector.extract_strided_slice %19 {offsets = [0, 32], sizes = [16, 8], strides = [1, 1]} : vector<16x96xf32> to vector<16x8xf32>
    %26 = vector.shape_cast %25 : vector<16x8xf32> to vector<2x8x8xf32>
    %27 = vector.extract_strided_slice %19 {offsets = [0, 64], sizes = [16, 8], strides = [1, 1]} : vector<16x96xf32> to vector<16x8xf32>
    %28 = vector.shape_cast %27 : vector<16x8xf32> to vector<2x8x8xf32>
    "tpu.trace_start"() <{level = 10 : i32, message = "bqd,bkd->bqk"}> : () -> ()
    %cst_21 = arith.constant dense<0.000000e+00> : vector<2x8x8xf32>
    %29 = tpu.matmul %24, %26, %cst_21 {dimension_numbers = #tpu.dot_dimension_numbers<[2], [2], [1], [1], [0, 0, 0, 1, 1, 1], [0], [0]>} : vector<2x8x8xf32>, vector<2x8x8xf32>, vector<2x8x8xf32> -> vector<2x8x8xf32>
    "tpu.trace_stop"() : () -> ()
    %cst_22 = arith.constant dense<0xFF800000> : vector<2x8xf32>
    %30 = vector.multi_reduction <maximumf>, %29, %cst_22 [2] : vector<2x8x8xf32> to vector<2x8xf32>
    %31 = vector.shape_cast %30 : vector<2x8xf32> to vector<2x8x1xf32>
    %32 = vector.broadcast %31 : vector<2x8x1xf32> to vector<2x8x8xf32>
    %33 = arith.subf %29, %32 : vector<2x8x8xf32>
    %34 = math.exp %33 : vector<2x8x8xf32>
    %cst_23 = arith.constant dense<0.000000e+00> : vector<2x8xf32>
    %35 = vector.multi_reduction <add>, %34, %cst_23 [2] : vector<2x8x8xf32> to vector<2x8xf32>
    %36 = vector.shape_cast %35 : vector<2x8xf32> to vector<2x8x1xf32>
    %37 = tpu.reciprocal %36 {approx = true} : vector<2x8x1xf32> -> vector<2x8x1xf32>
    %38 = vector.broadcast %37 : vector<2x8x1xf32> to vector<2x8x8xf32>
    %39 = arith.mulf %34, %38 : vector<2x8x8xf32>
    "tpu.trace_start"() <{level = 10 : i32, message = "bqk,bkd->bqd"}> : () -> ()
    %cst_24 = arith.constant dense<0.000000e+00> : vector<2x8x8xf32>
    %40 = tpu.matmul %39, %28, %cst_24 {dimension_numbers = #tpu.dot_dimension_numbers<[2], [1], [1], [2], [0, 0, 0, 1, 1, 2], [0], [0]>} : vector<2x8x8xf32>, vector<2x8x8xf32>, vector<2x8x8xf32> -> vector<2x8x8xf32>
    "tpu.trace_stop"() : () -> ()
    %41 = vector.shape_cast %40 : vector<2x8x8xf32> to vector<16x8xf32>
    %42 = vector.extract_strided_slice %21 {offsets = [0, 0], sizes = [8, 32], strides = [1, 1]} : vector<32x32xf32> to vector<8x32xf32>
    %cst_25 = arith.constant dense<0.000000e+00> : vector<16x32xf32>
    %43 = tpu.matmul %41, %42, %cst_25 {dimension_numbers = #tpu.dot_dimension_numbers<[1], [0], [0], [1], [0, 0, 1, 1], [], []>} : vector<16x8xf32>, vector<8x32xf32>, vector<16x32xf32> -> vector<16x32xf32>
    %44 = arith.addf %22, %43 : vector<16x32xf32>
    %45 = vector.extract_strided_slice %19 {offsets = [0, 8], sizes = [16, 8], strides = [1, 1]} : vector<16x96xf32> to vector<16x8xf32>
    %46 = vector.shape_cast %45 : vector<16x8xf32> to vector<2x8x8xf32>
    %47 = vector.extract_strided_slice %19 {offsets = [0, 40], sizes = [16, 8], strides = [1, 1]} : vector<16x96xf32> to vector<16x8xf32>
    %48 = vector.shape_cast %47 : vector<16x8xf32> to vector<2x8x8xf32>
    %49 = vector.extract_strided_slice %19 {offsets = [0, 72], sizes = [16, 8], strides = [1, 1]} : vector<16x96xf32> to vector<16x8xf32>
    %50 = vector.shape_cast %49 : vector<16x8xf32> to vector<2x8x8xf32>
    "tpu.trace_start"() <{level = 10 : i32, message = "bqd,bkd->bqk"}> : () -> ()
    %cst_26 = arith.constant dense<0.000000e+00> : vector<2x8x8xf32>
    %51 = tpu.matmul %46, %48, %cst_26 {dimension_numbers = #tpu.dot_dimension_numbers<[2], [2], [1], [1], [0, 0, 0, 1, 1, 1], [0], [0]>} : vector<2x8x8xf32>, vector<2x8x8xf32>, vector<2x8x8xf32> -> vector<2x8x8xf32>
    "tpu.trace_stop"() : () -> ()
    %cst_27 = arith.constant dense<0xFF800000> : vector<2x8xf32>
    %52 = vector.multi_reduction <maximumf>, %51, %cst_27 [2] : vector<2x8x8xf32> to vector<2x8xf32>
    %53 = vector.shape_cast %52 : vector<2x8xf32> to vector<2x8x1xf32>
    %54 = vector.broadcast %53 : vector<2x8x1xf32> to vector<2x8x8xf32>
    %55 = arith.subf %51, %54 : vector<2x8x8xf32>
    %56 = math.exp %55 : vector<2x8x8xf32>
    %cst_28 = arith.constant dense<0.000000e+00> : vector<2x8xf32>
    %57 = vector.multi_reduction <add>, %56, %cst_28 [2] : vector<2x8x8xf32> to vector<2x8xf32>
    %58 = vector.shape_cast %57 : vector<2x8xf32> to vector<2x8x1xf32>
    %59 = tpu.reciprocal %58 {approx = true} : vector<2x8x1xf32> -> vector<2x8x1xf32>
    %60 = vector.broadcast %59 : vector<2x8x1xf32> to vector<2x8x8xf32>
    %61 = arith.mulf %56, %60 : vector<2x8x8xf32>
    "tpu.trace_start"() <{level = 10 : i32, message = "bqk,bkd->bqd"}> : () -> ()
    %cst_29 = arith.constant dense<0.000000e+00> : vector<2x8x8xf32>
    %62 = tpu.matmul %61, %50, %cst_29 {dimension_numbers = #tpu.dot_dimension_numbers<[2], [1], [1], [2], [0, 0, 0, 1, 1, 2], [0], [0]>} : vector<2x8x8xf32>, vector<2x8x8xf32>, vector<2x8x8xf32> -> vector<2x8x8xf32>
    "tpu.trace_stop"() : () -> ()
    %63 = vector.shape_cast %62 : vector<2x8x8xf32> to vector<16x8xf32>
    %64 = vector.extract_strided_slice %21 {offsets = [8, 0], sizes = [8, 32], strides = [1, 1]} : vector<32x32xf32> to vector<8x32xf32>
    %cst_30 = arith.constant dense<0.000000e+00> : vector<16x32xf32>
    %65 = tpu.matmul %63, %64, %cst_30 {dimension_numbers = #tpu.dot_dimension_numbers<[1], [0], [0], [1], [0, 0, 1, 1], [], []>} : vector<16x8xf32>, vector<8x32xf32>, vector<16x32xf32> -> vector<16x32xf32>
    %66 = arith.addf %44, %65 : vector<16x32xf32>
    %67 = vector.extract_strided_slice %19 {offsets = [0, 16], sizes = [16, 8], strides = [1, 1]} : vector<16x96xf32> to vector<16x8xf32>
    %68 = vector.shape_cast %67 : vector<16x8xf32> to vector<2x8x8xf32>
    %69 = vector.extract_strided_slice %19 {offsets = [0, 48], sizes = [16, 8], strides = [1, 1]} : vector<16x96xf32> to vector<16x8xf32>
    %70 = vector.shape_cast %69 : vector<16x8xf32> to vector<2x8x8xf32>
    %71 = vector.extract_strided_slice %19 {offsets = [0, 80], sizes = [16, 8], strides = [1, 1]} : vector<16x96xf32> to vector<16x8xf32>
    %72 = vector.shape_cast %71 : vector<16x8xf32> to vector<2x8x8xf32>
    "tpu.trace_start"() <{level = 10 : i32, message = "bqd,bkd->bqk"}> : () -> ()
    %cst_31 = arith.constant dense<0.000000e+00> : vector<2x8x8xf32>
    %73 = tpu.matmul %68, %70, %cst_31 {dimension_numbers = #tpu.dot_dimension_numbers<[2], [2], [1], [1], [0, 0, 0, 1, 1, 1], [0], [0]>} : vector<2x8x8xf32>, vector<2x8x8xf32>, vector<2x8x8xf32> -> vector<2x8x8xf32>
    "tpu.trace_stop"() : () -> ()
    %cst_32 = arith.constant dense<0xFF800000> : vector<2x8xf32>
    %74 = vector.multi_reduction <maximumf>, %73, %cst_32 [2] : vector<2x8x8xf32> to vector<2x8xf32>
    %75 = vector.shape_cast %74 : vector<2x8xf32> to vector<2x8x1xf32>
    %76 = vector.broadcast %75 : vector<2x8x1xf32> to vector<2x8x8xf32>
    %77 = arith.subf %73, %76 : vector<2x8x8xf32>
    %78 = math.exp %77 : vector<2x8x8xf32>
    %cst_33 = arith.constant dense<0.000000e+00> : vector<2x8xf32>
    %79 = vector.multi_reduction <add>, %78, %cst_33 [2] : vector<2x8x8xf32> to vector<2x8xf32>
    %80 = vector.shape_cast %79 : vector<2x8xf32> to vector<2x8x1xf32>
    %81 = tpu.reciprocal %80 {approx = true} : vector<2x8x1xf32> -> vector<2x8x1xf32>
    %82 = vector.broadcast %81 : vector<2x8x1xf32> to vector<2x8x8xf32>
    %83 = arith.mulf %78, %82 : vector<2x8x8xf32>
    "tpu.trace_start"() <{level = 10 : i32, message = "bqk,bkd->bqd"}> : () -> ()
    %cst_34 = arith.constant dense<0.000000e+00> : vector<2x8x8xf32>
    %84 = tpu.matmul %83, %72, %cst_34 {dimension_numbers = #tpu.dot_dimension_numbers<[2], [1], [1], [2], [0, 0, 0, 1, 1, 2], [0], [0]>} : vector<2x8x8xf32>, vector<2x8x8xf32>, vector<2x8x8xf32> -> vector<2x8x8xf32>
    "tpu.trace_stop"() : () -> ()
    %85 = vector.shape_cast %84 : vector<2x8x8xf32> to vector<16x8xf32>
    %86 = vector.extract_strided_slice %21 {offsets = [16, 0], sizes = [8, 32], strides = [1, 1]} : vector<32x32xf32> to vector<8x32xf32>
    %cst_35 = arith.constant dense<0.000000e+00> : vector<16x32xf32>
    %87 = tpu.matmul %85, %86, %cst_35 {dimension_numbers = #tpu.dot_dimension_numbers<[1], [0], [0], [1], [0, 0, 1, 1], [], []>} : vector<16x8xf32>, vector<8x32xf32>, vector<16x32xf32> -> vector<16x32xf32>
    %88 = arith.addf %66, %87 : vector<16x32xf32>
    %89 = vector.extract_strided_slice %19 {offsets = [0, 24], sizes = [16, 8], strides = [1, 1]} : vector<16x96xf32> to vector<16x8xf32>
    %90 = vector.shape_cast %89 : vector<16x8xf32> to vector<2x8x8xf32>
    %91 = vector.extract_strided_slice %19 {offsets = [0, 56], sizes = [16, 8], strides = [1, 1]} : vector<16x96xf32> to vector<16x8xf32>
    %92 = vector.shape_cast %91 : vector<16x8xf32> to vector<2x8x8xf32>
    %93 = vector.extract_strided_slice %19 {offsets = [0, 88], sizes = [16, 8], strides = [1, 1]} : vector<16x96xf32> to vector<16x8xf32>
    %94 = vector.shape_cast %93 : vector<16x8xf32> to vector<2x8x8xf32>
    "tpu.trace_start"() <{level = 10 : i32, message = "bqd,bkd->bqk"}> : () -> ()
    %cst_36 = arith.constant dense<0.000000e+00> : vector<2x8x8xf32>
    %95 = tpu.matmul %90, %92, %cst_36 {dimension_numbers = #tpu.dot_dimension_numbers<[2], [2], [1], [1], [0, 0, 0, 1, 1, 1], [0], [0]>} : vector<2x8x8xf32>, vector<2x8x8xf32>, vector<2x8x8xf32> -> vector<2x8x8xf32>
    "tpu.trace_stop"() : () -> ()
    %cst_37 = arith.constant dense<0xFF800000> : vector<2x8xf32>
    %96 = vector.multi_reduction <maximumf>, %95, %cst_37 [2] : vector<2x8x8xf32> to vector<2x8xf32>
    %97 = vector.shape_cast %96 : vector<2x8xf32> to vector<2x8x1xf32>
    %98 = vector.broadcast %97 : vector<2x8x1xf32> to vector<2x8x8xf32>
    %99 = arith.subf %95, %98 : vector<2x8x8xf32>
    %100 = math.exp %99 : vector<2x8x8xf32>
    %cst_38 = arith.constant dense<0.000000e+00> : vector<2x8xf32>
    %101 = vector.multi_reduction <add>, %100, %cst_38 [2] : vector<2x8x8xf32> to vector<2x8xf32>
    %102 = vector.shape_cast %101 : vector<2x8xf32> to vector<2x8x1xf32>
    %103 = tpu.reciprocal %102 {approx = true} : vector<2x8x1xf32> -> vector<2x8x1xf32>
    %104 = vector.broadcast %103 : vector<2x8x1xf32> to vector<2x8x8xf32>
    %105 = arith.mulf %100, %104 : vector<2x8x8xf32>
    "tpu.trace_start"() <{level = 10 : i32, message = "bqk,bkd->bqd"}> : () -> ()
    %cst_39 = arith.constant dense<0.000000e+00> : vector<2x8x8xf32>
    %106 = tpu.matmul %105, %94, %cst_39 {dimension_numbers = #tpu.dot_dimension_numbers<[2], [1], [1], [2], [0, 0, 0, 1, 1, 2], [0], [0]>} : vector<2x8x8xf32>, vector<2x8x8xf32>, vector<2x8x8xf32> -> vector<2x8x8xf32>
    "tpu.trace_stop"() : () -> ()
    %107 = vector.shape_cast %106 : vector<2x8x8xf32> to vector<16x8xf32>
    %108 = vector.extract_strided_slice %21 {offsets = [24, 0], sizes = [8, 32], strides = [1, 1]} : vector<32x32xf32> to vector<8x32xf32>
    %cst_40 = arith.constant dense<0.000000e+00> : vector<16x32xf32>
    %109 = tpu.matmul %107, %108, %cst_40 {dimension_numbers = #tpu.dot_dimension_numbers<[1], [0], [0], [1], [0, 0, 1, 1], [], []>} : vector<16x8xf32>, vector<8x32xf32>, vector<16x32xf32> -> vector<16x32xf32>
    %110 = arith.addf %88, %109 : vector<16x32xf32>
    %c0_41 = arith.constant 0 : index
    %c0_42 = arith.constant 0 : index
    %c0_43 = arith.constant 0 : index
    %111 = vector.load %arg8[%c0_41, %c0_42, %c0_43] : memref<2x1x32xf32, #tpu.memory_space<vmem>>, vector<1x1x32xf32>
    %112 = vector.shape_cast %111 : vector<1x1x32xf32> to vector<1x32xf32>
    %113 = vector.broadcast %112 : vector<1x32xf32> to vector<16x32xf32>
    %114 = arith.addf %110, %113 : vector<16x32xf32>
    %115 = arith.addf %12, %114 : vector<16x32xf32>
    %c0_44 = arith.constant 0 : index
    %c0_45 = arith.constant 0 : index
    %c0_46 = arith.constant 0 : index
    %116 = vector.load %arg9[%c0_44, %c0_45, %c0_46] : memref<2x1x32xf32, #tpu.memory_space<vmem>>, vector<1x1x32xf32>
    %117 = vector.shape_cast %116 : vector<1x1x32xf32> to vector<1x32xf32>
    %c0_47 = arith.constant 0 : index
    %c0_48 = arith.constant 0 : index
    %c0_49 = arith.constant 0 : index
    %118 = vector.load %arg10[%c0_47, %c0_48, %c0_49] : memref<2x1x32xf32, #tpu.memory_space<vmem>>, vector<1x1x32xf32>
    %119 = vector.shape_cast %118 : vector<1x1x32xf32> to vector<1x32xf32>
    %cst_50 = arith.constant dense<0.000000e+00> : vector<16xf32>
    %120 = vector.multi_reduction <add>, %115, %cst_50 [1] : vector<16x32xf32> to vector<16xf32>
    %121 = vector.shape_cast %120 : vector<16xf32> to vector<16x1xf32>
    %cst_51 = arith.constant 3.200000e+01 : f32
    %122 = vector.broadcast %cst_51 : f32 to vector<16x1xf32>
    %123 = arith.divf %121, %122 : vector<16x1xf32>
    %124 = vector.broadcast %123 : vector<16x1xf32> to vector<16x32xf32>
    %125 = arith.subf %115, %124 : vector<16x32xf32>
    %126 = arith.mulf %125, %125 : vector<16x32xf32>
    %cst_52 = arith.constant dense<0.000000e+00> : vector<16xf32>
    %127 = vector.multi_reduction <add>, %126, %cst_52 [1] : vector<16x32xf32> to vector<16xf32>
    %128 = vector.shape_cast %127 : vector<16xf32> to vector<16x1xf32>
    %cst_53 = arith.constant 3.200000e+01 : f32
    %129 = vector.broadcast %cst_53 : f32 to vector<16x1xf32>
    %130 = arith.divf %128, %129 : vector<16x1xf32>
    %131 = vector.broadcast %123 : vector<16x1xf32> to vector<16x32xf32>
    %132 = arith.subf %115, %131 : vector<16x32xf32>
    %cst_54 = arith.constant 9.99999974E-6 : f32
    %133 = vector.broadcast %cst_54 : f32 to vector<16x1xf32>
    %134 = arith.addf %130, %133 : vector<16x1xf32>
    %135 = math.rsqrt %134 : vector<16x1xf32>
    %136 = vector.broadcast %135 : vector<16x1xf32> to vector<16x32xf32>
    %137 = arith.mulf %132, %136 : vector<16x32xf32>
    %138 = vector.broadcast %117 : vector<1x32xf32> to vector<16x32xf32>
    %139 = arith.mulf %137, %138 : vector<16x32xf32>
    %140 = vector.broadcast %119 : vector<1x32xf32> to vector<16x32xf32>
    %141 = arith.addf %139, %140 : vector<16x32xf32>
    %c0_55 = arith.constant 0 : index
    %c0_56 = arith.constant 0 : index
    %c0_57 = arith.constant 0 : index
    %142 = vector.load %arg11[%c0_55, %c0_56, %c0_57] : memref<2x32x64xf32, #tpu.memory_space<vmem>>, vector<1x32x64xf32>
    %143 = vector.shape_cast %142 : vector<1x32x64xf32> to vector<32x64xf32>
    %c0_58 = arith.constant 0 : index
    %c0_59 = arith.constant 0 : index
    %c0_60 = arith.constant 0 : index
    %144 = vector.load %arg12[%c0_58, %c0_59, %c0_60] : memref<2x1x64xf32, #tpu.memory_space<vmem>>, vector<1x1x64xf32>
    %145 = vector.shape_cast %144 : vector<1x1x64xf32> to vector<1x64xf32>
    %cst_61 = arith.constant dense<0.000000e+00> : vector<16x64xf32>
    %146 = tpu.matmul %141, %143, %cst_61 {dimension_numbers = #tpu.dot_dimension_numbers<[1], [0], [0], [1], [0, 0, 1, 1], [], []>} : vector<16x32xf32>, vector<32x64xf32>, vector<16x64xf32> -> vector<16x64xf32>
    %147 = vector.broadcast %145 : vector<1x64xf32> to vector<16x64xf32>
    %148 = arith.addf %146, %147 : vector<16x64xf32>
    %cst_62 = arith.constant 0.000000e+00 : f32
    %149 = vector.broadcast %cst_62 : f32 to vector<16x64xf32>
    %150 = arith.maximumf %148, %149 : vector<16x64xf32>
    %c0_63 = arith.constant 0 : index
    %c0_64 = arith.constant 0 : index
    %c0_65 = arith.constant 0 : index
    %151 = vector.load %arg13[%c0_63, %c0_64, %c0_65] : memref<2x64x32xf32, #tpu.memory_space<vmem>>, vector<1x64x32xf32>
    %152 = vector.shape_cast %151 : vector<1x64x32xf32> to vector<64x32xf32>
    %c0_66 = arith.constant 0 : index
    %c0_67 = arith.constant 0 : index
    %c0_68 = arith.constant 0 : index
    %153 = vector.load %arg14[%c0_66, %c0_67, %c0_68] : memref<2x1x32xf32, #tpu.memory_space<vmem>>, vector<1x1x32xf32>
    %154 = vector.shape_cast %153 : vector<1x1x32xf32> to vector<1x32xf32>
    %cst_69 = arith.constant dense<0.000000e+00> : vector<16x32xf32>
    %155 = tpu.matmul %150, %152, %cst_69 {dimension_numbers = #tpu.dot_dimension_numbers<[1], [0], [0], [1], [0, 0, 1, 1], [], []>} : vector<16x64xf32>, vector<64x32xf32>, vector<16x32xf32> -> vector<16x32xf32>
    %156 = vector.broadcast %154 : vector<1x32xf32> to vector<16x32xf32>
    %157 = arith.addf %155, %156 : vector<16x32xf32>
    %158 = arith.addf %141, %157 : vector<16x32xf32>
    %c0_70 = arith.constant 0 : index
    %c0_71 = arith.constant 0 : index
    %c0_72 = arith.constant 0 : index
    %159 = vector.load %arg15[%c0_70, %c0_71, %c0_72] : memref<2x1x32xf32, #tpu.memory_space<vmem>>, vector<1x1x32xf32>
    %160 = vector.shape_cast %159 : vector<1x1x32xf32> to vector<1x32xf32>
    %c0_73 = arith.constant 0 : index
    %c0_74 = arith.constant 0 : index
    %c0_75 = arith.constant 0 : index
    %161 = vector.load %arg16[%c0_73, %c0_74, %c0_75] : memref<2x1x32xf32, #tpu.memory_space<vmem>>, vector<1x1x32xf32>
    %162 = vector.shape_cast %161 : vector<1x1x32xf32> to vector<1x32xf32>
    %cst_76 = arith.constant dense<0.000000e+00> : vector<16xf32>
    %163 = vector.multi_reduction <add>, %158, %cst_76 [1] : vector<16x32xf32> to vector<16xf32>
    %164 = vector.shape_cast %163 : vector<16xf32> to vector<16x1xf32>
    %cst_77 = arith.constant 3.200000e+01 : f32
    %165 = vector.broadcast %cst_77 : f32 to vector<16x1xf32>
    %166 = arith.divf %164, %165 : vector<16x1xf32>
    %167 = vector.broadcast %166 : vector<16x1xf32> to vector<16x32xf32>
    %168 = arith.subf %158, %167 : vector<16x32xf32>
    %169 = arith.mulf %168, %168 : vector<16x32xf32>
    %cst_78 = arith.constant dense<0.000000e+00> : vector<16xf32>
    %170 = vector.multi_reduction <add>, %169, %cst_78 [1] : vector<16x32xf32> to vector<16xf32>
    %171 = vector.shape_cast %170 : vector<16xf32> to vector<16x1xf32>
    %cst_79 = arith.constant 3.200000e+01 : f32
    %172 = vector.broadcast %cst_79 : f32 to vector<16x1xf32>
    %173 = arith.divf %171, %172 : vector<16x1xf32>
    %174 = vector.broadcast %166 : vector<16x1xf32> to vector<16x32xf32>
    %175 = arith.subf %158, %174 : vector<16x32xf32>
    %cst_80 = arith.constant 9.99999974E-6 : f32
    %176 = vector.broadcast %cst_80 : f32 to vector<16x1xf32>
    %177 = arith.addf %173, %176 : vector<16x1xf32>
    %178 = math.rsqrt %177 : vector<16x1xf32>
    %179 = vector.broadcast %178 : vector<16x1xf32> to vector<16x32xf32>
    %180 = arith.mulf %175, %179 : vector<16x32xf32>
    %181 = vector.broadcast %160 : vector<1x32xf32> to vector<16x32xf32>
    %182 = arith.mulf %180, %181 : vector<16x32xf32>
    %183 = vector.broadcast %162 : vector<1x32xf32> to vector<16x32xf32>
    %184 = arith.addf %182, %183 : vector<16x32xf32>
    %c1 = arith.constant 1 : index
    %c0_81 = arith.constant 0 : index
    %c0_82 = arith.constant 0 : index
    %185 = vector.load %arg5[%c1, %c0_81, %c0_82] : memref<2x32x96xf32, #tpu.memory_space<vmem>>, vector<1x32x96xf32>
    %186 = vector.shape_cast %185 : vector<1x32x96xf32> to vector<32x96xf32>
    %c1_83 = arith.constant 1 : index
    %c0_84 = arith.constant 0 : index
    %c0_85 = arith.constant 0 : index
    %187 = vector.load %arg6[%c1_83, %c0_84, %c0_85] : memref<2x1x96xf32, #tpu.memory_space<vmem>>, vector<1x1x96xf32>
    %188 = vector.shape_cast %187 : vector<1x1x96xf32> to vector<1x96xf32>
    %cst_86 = arith.constant dense<0.000000e+00> : vector<16x96xf32>
    %189 = tpu.matmul %184, %186, %cst_86 {dimension_numbers = #tpu.dot_dimension_numbers<[1], [0], [0], [1], [0, 0, 1, 1], [], []>} : vector<16x32xf32>, vector<32x96xf32>, vector<16x96xf32> -> vector<16x96xf32>
    %190 = vector.broadcast %188 : vector<1x96xf32> to vector<16x96xf32>
    %191 = arith.addf %189, %190 : vector<16x96xf32>
    %c1_87 = arith.constant 1 : index
    %c0_88 = arith.constant 0 : index
    %c0_89 = arith.constant 0 : index
    %192 = vector.load %arg7[%c1_87, %c0_88, %c0_89] : memref<2x32x32xf32, #tpu.memory_space<vmem>>, vector<1x32x32xf32>
    %193 = vector.shape_cast %192 : vector<1x32x32xf32> to vector<32x32xf32>
    %cst_90 = arith.constant 0.000000e+00 : f32
    %194 = vector.broadcast %cst_90 : f32 to vector<16x32xf32>
    %195 = vector.extract_strided_slice %191 {offsets = [0, 0], sizes = [16, 8], strides = [1, 1]} : vector<16x96xf32> to vector<16x8xf32>
    %196 = vector.shape_cast %195 : vector<16x8xf32> to vector<2x8x8xf32>
    %197 = vector.extract_strided_slice %191 {offsets = [0, 32], sizes = [16, 8], strides = [1, 1]} : vector<16x96xf32> to vector<16x8xf32>
    %198 = vector.shape_cast %197 : vector<16x8xf32> to vector<2x8x8xf32>
    %199 = vector.extract_strided_slice %191 {offsets = [0, 64], sizes = [16, 8], strides = [1, 1]} : vector<16x96xf32> to vector<16x8xf32>
    %200 = vector.shape_cast %199 : vector<16x8xf32> to vector<2x8x8xf32>
    "tpu.trace_start"() <{level = 10 : i32, message = "bqd,bkd->bqk"}> : () -> ()
    %cst_91 = arith.constant dense<0.000000e+00> : vector<2x8x8xf32>
    %201 = tpu.matmul %196, %198, %cst_91 {dimension_numbers = #tpu.dot_dimension_numbers<[2], [2], [1], [1], [0, 0, 0, 1, 1, 1], [0], [0]>} : vector<2x8x8xf32>, vector<2x8x8xf32>, vector<2x8x8xf32> -> vector<2x8x8xf32>
    "tpu.trace_stop"() : () -> ()
    %cst_92 = arith.constant dense<0xFF800000> : vector<2x8xf32>
    %202 = vector.multi_reduction <maximumf>, %201, %cst_92 [2] : vector<2x8x8xf32> to vector<2x8xf32>
    %203 = vector.shape_cast %202 : vector<2x8xf32> to vector<2x8x1xf32>
    %204 = vector.broadcast %203 : vector<2x8x1xf32> to vector<2x8x8xf32>
    %205 = arith.subf %201, %204 : vector<2x8x8xf32>
    %206 = math.exp %205 : vector<2x8x8xf32>
    %cst_93 = arith.constant dense<0.000000e+00> : vector<2x8xf32>
    %207 = vector.multi_reduction <add>, %206, %cst_93 [2] : vector<2x8x8xf32> to vector<2x8xf32>
    %208 = vector.shape_cast %207 : vector<2x8xf32> to vector<2x8x1xf32>
    %209 = tpu.reciprocal %208 {approx = true} : vector<2x8x1xf32> -> vector<2x8x1xf32>
    %210 = vector.broadcast %209 : vector<2x8x1xf32> to vector<2x8x8xf32>
    %211 = arith.mulf %206, %210 : vector<2x8x8xf32>
    "tpu.trace_start"() <{level = 10 : i32, message = "bqk,bkd->bqd"}> : () -> ()
    %cst_94 = arith.constant dense<0.000000e+00> : vector<2x8x8xf32>
    %212 = tpu.matmul %211, %200, %cst_94 {dimension_numbers = #tpu.dot_dimension_numbers<[2], [1], [1], [2], [0, 0, 0, 1, 1, 2], [0], [0]>} : vector<2x8x8xf32>, vector<2x8x8xf32>, vector<2x8x8xf32> -> vector<2x8x8xf32>
    "tpu.trace_stop"() : () -> ()
    %213 = vector.shape_cast %212 : vector<2x8x8xf32> to vector<16x8xf32>
    %214 = vector.extract_strided_slice %193 {offsets = [0, 0], sizes = [8, 32], strides = [1, 1]} : vector<32x32xf32> to vector<8x32xf32>
    %cst_95 = arith.constant dense<0.000000e+00> : vector<16x32xf32>
    %215 = tpu.matmul %213, %214, %cst_95 {dimension_numbers = #tpu.dot_dimension_numbers<[1], [0], [0], [1], [0, 0, 1, 1], [], []>} : vector<16x8xf32>, vector<8x32xf32>, vector<16x32xf32> -> vector<16x32xf32>
    %216 = arith.addf %194, %215 : vector<16x32xf32>
    %217 = vector.extract_strided_slice %191 {offsets = [0, 8], sizes = [16, 8], strides = [1, 1]} : vector<16x96xf32> to vector<16x8xf32>
    %218 = vector.shape_cast %217 : vector<16x8xf32> to vector<2x8x8xf32>
    %219 = vector.extract_strided_slice %191 {offsets = [0, 40], sizes = [16, 8], strides = [1, 1]} : vector<16x96xf32> to vector<16x8xf32>
    %220 = vector.shape_cast %219 : vector<16x8xf32> to vector<2x8x8xf32>
    %221 = vector.extract_strided_slice %191 {offsets = [0, 72], sizes = [16, 8], strides = [1, 1]} : vector<16x96xf32> to vector<16x8xf32>
    %222 = vector.shape_cast %221 : vector<16x8xf32> to vector<2x8x8xf32>
    "tpu.trace_start"() <{level = 10 : i32, message = "bqd,bkd->bqk"}> : () -> ()
    %cst_96 = arith.constant dense<0.000000e+00> : vector<2x8x8xf32>
    %223 = tpu.matmul %218, %220, %cst_96 {dimension_numbers = #tpu.dot_dimension_numbers<[2], [2], [1], [1], [0, 0, 0, 1, 1, 1], [0], [0]>} : vector<2x8x8xf32>, vector<2x8x8xf32>, vector<2x8x8xf32> -> vector<2x8x8xf32>
    "tpu.trace_stop"() : () -> ()
    %cst_97 = arith.constant dense<0xFF800000> : vector<2x8xf32>
    %224 = vector.multi_reduction <maximumf>, %223, %cst_97 [2] : vector<2x8x8xf32> to vector<2x8xf32>
    %225 = vector.shape_cast %224 : vector<2x8xf32> to vector<2x8x1xf32>
    %226 = vector.broadcast %225 : vector<2x8x1xf32> to vector<2x8x8xf32>
    %227 = arith.subf %223, %226 : vector<2x8x8xf32>
    %228 = math.exp %227 : vector<2x8x8xf32>
    %cst_98 = arith.constant dense<0.000000e+00> : vector<2x8xf32>
    %229 = vector.multi_reduction <add>, %228, %cst_98 [2] : vector<2x8x8xf32> to vector<2x8xf32>
    %230 = vector.shape_cast %229 : vector<2x8xf32> to vector<2x8x1xf32>
    %231 = tpu.reciprocal %230 {approx = true} : vector<2x8x1xf32> -> vector<2x8x1xf32>
    %232 = vector.broadcast %231 : vector<2x8x1xf32> to vector<2x8x8xf32>
    %233 = arith.mulf %228, %232 : vector<2x8x8xf32>
    "tpu.trace_start"() <{level = 10 : i32, message = "bqk,bkd->bqd"}> : () -> ()
    %cst_99 = arith.constant dense<0.000000e+00> : vector<2x8x8xf32>
    %234 = tpu.matmul %233, %222, %cst_99 {dimension_numbers = #tpu.dot_dimension_numbers<[2], [1], [1], [2], [0, 0, 0, 1, 1, 2], [0], [0]>} : vector<2x8x8xf32>, vector<2x8x8xf32>, vector<2x8x8xf32> -> vector<2x8x8xf32>
    "tpu.trace_stop"() : () -> ()
    %235 = vector.shape_cast %234 : vector<2x8x8xf32> to vector<16x8xf32>
    %236 = vector.extract_strided_slice %193 {offsets = [8, 0], sizes = [8, 32], strides = [1, 1]} : vector<32x32xf32> to vector<8x32xf32>
    %cst_100 = arith.constant dense<0.000000e+00> : vector<16x32xf32>
    %237 = tpu.matmul %235, %236, %cst_100 {dimension_numbers = #tpu.dot_dimension_numbers<[1], [0], [0], [1], [0, 0, 1, 1], [], []>} : vector<16x8xf32>, vector<8x32xf32>, vector<16x32xf32> -> vector<16x32xf32>
    %238 = arith.addf %216, %237 : vector<16x32xf32>
    %239 = vector.extract_strided_slice %191 {offsets = [0, 16], sizes = [16, 8], strides = [1, 1]} : vector<16x96xf32> to vector<16x8xf32>
    %240 = vector.shape_cast %239 : vector<16x8xf32> to vector<2x8x8xf32>
    %241 = vector.extract_strided_slice %191 {offsets = [0, 48], sizes = [16, 8], strides = [1, 1]} : vector<16x96xf32> to vector<16x8xf32>
    %242 = vector.shape_cast %241 : vector<16x8xf32> to vector<2x8x8xf32>
    %243 = vector.extract_strided_slice %191 {offsets = [0, 80], sizes = [16, 8], strides = [1, 1]} : vector<16x96xf32> to vector<16x8xf32>
    %244 = vector.shape_cast %243 : vector<16x8xf32> to vector<2x8x8xf32>
    "tpu.trace_start"() <{level = 10 : i32, message = "bqd,bkd->bqk"}> : () -> ()
    %cst_101 = arith.constant dense<0.000000e+00> : vector<2x8x8xf32>
    %245 = tpu.matmul %240, %242, %cst_101 {dimension_numbers = #tpu.dot_dimension_numbers<[2], [2], [1], [1], [0, 0, 0, 1, 1, 1], [0], [0]>} : vector<2x8x8xf32>, vector<2x8x8xf32>, vector<2x8x8xf32> -> vector<2x8x8xf32>
    "tpu.trace_stop"() : () -> ()
    %cst_102 = arith.constant dense<0xFF800000> : vector<2x8xf32>
    %246 = vector.multi_reduction <maximumf>, %245, %cst_102 [2] : vector<2x8x8xf32> to vector<2x8xf32>
    %247 = vector.shape_cast %246 : vector<2x8xf32> to vector<2x8x1xf32>
    %248 = vector.broadcast %247 : vector<2x8x1xf32> to vector<2x8x8xf32>
    %249 = arith.subf %245, %248 : vector<2x8x8xf32>
    %250 = math.exp %249 : vector<2x8x8xf32>
    %cst_103 = arith.constant dense<0.000000e+00> : vector<2x8xf32>
    %251 = vector.multi_reduction <add>, %250, %cst_103 [2] : vector<2x8x8xf32> to vector<2x8xf32>
    %252 = vector.shape_cast %251 : vector<2x8xf32> to vector<2x8x1xf32>
    %253 = tpu.reciprocal %252 {approx = true} : vector<2x8x1xf32> -> vector<2x8x1xf32>
    %254 = vector.broadcast %253 : vector<2x8x1xf32> to vector<2x8x8xf32>
    %255 = arith.mulf %250, %254 : vector<2x8x8xf32>
    "tpu.trace_start"() <{level = 10 : i32, message = "bqk,bkd->bqd"}> : () -> ()
    %cst_104 = arith.constant dense<0.000000e+00> : vector<2x8x8xf32>
    %256 = tpu.matmul %255, %244, %cst_104 {dimension_numbers = #tpu.dot_dimension_numbers<[2], [1], [1], [2], [0, 0, 0, 1, 1, 2], [0], [0]>} : vector<2x8x8xf32>, vector<2x8x8xf32>, vector<2x8x8xf32> -> vector<2x8x8xf32>
    "tpu.trace_stop"() : () -> ()
    %257 = vector.shape_cast %256 : vector<2x8x8xf32> to vector<16x8xf32>
    %258 = vector.extract_strided_slice %193 {offsets = [16, 0], sizes = [8, 32], strides = [1, 1]} : vector<32x32xf32> to vector<8x32xf32>
    %cst_105 = arith.constant dense<0.000000e+00> : vector<16x32xf32>
    %259 = tpu.matmul %257, %258, %cst_105 {dimension_numbers = #tpu.dot_dimension_numbers<[1], [0], [0], [1], [0, 0, 1, 1], [], []>} : vector<16x8xf32>, vector<8x32xf32>, vector<16x32xf32> -> vector<16x32xf32>
    %260 = arith.addf %238, %259 : vector<16x32xf32>
    %261 = vector.extract_strided_slice %191 {offsets = [0, 24], sizes = [16, 8], strides = [1, 1]} : vector<16x96xf32> to vector<16x8xf32>
    %262 = vector.shape_cast %261 : vector<16x8xf32> to vector<2x8x8xf32>
    %263 = vector.extract_strided_slice %191 {offsets = [0, 56], sizes = [16, 8], strides = [1, 1]} : vector<16x96xf32> to vector<16x8xf32>
    %264 = vector.shape_cast %263 : vector<16x8xf32> to vector<2x8x8xf32>
    %265 = vector.extract_strided_slice %191 {offsets = [0, 88], sizes = [16, 8], strides = [1, 1]} : vector<16x96xf32> to vector<16x8xf32>
    %266 = vector.shape_cast %265 : vector<16x8xf32> to vector<2x8x8xf32>
    "tpu.trace_start"() <{level = 10 : i32, message = "bqd,bkd->bqk"}> : () -> ()
    %cst_106 = arith.constant dense<0.000000e+00> : vector<2x8x8xf32>
    %267 = tpu.matmul %262, %264, %cst_106 {dimension_numbers = #tpu.dot_dimension_numbers<[2], [2], [1], [1], [0, 0, 0, 1, 1, 1], [0], [0]>} : vector<2x8x8xf32>, vector<2x8x8xf32>, vector<2x8x8xf32> -> vector<2x8x8xf32>
    "tpu.trace_stop"() : () -> ()
    %cst_107 = arith.constant dense<0xFF800000> : vector<2x8xf32>
    %268 = vector.multi_reduction <maximumf>, %267, %cst_107 [2] : vector<2x8x8xf32> to vector<2x8xf32>
    %269 = vector.shape_cast %268 : vector<2x8xf32> to vector<2x8x1xf32>
    %270 = vector.broadcast %269 : vector<2x8x1xf32> to vector<2x8x8xf32>
    %271 = arith.subf %267, %270 : vector<2x8x8xf32>
    %272 = math.exp %271 : vector<2x8x8xf32>
    %cst_108 = arith.constant dense<0.000000e+00> : vector<2x8xf32>
    %273 = vector.multi_reduction <add>, %272, %cst_108 [2] : vector<2x8x8xf32> to vector<2x8xf32>
    %274 = vector.shape_cast %273 : vector<2x8xf32> to vector<2x8x1xf32>
    %275 = tpu.reciprocal %274 {approx = true} : vector<2x8x1xf32> -> vector<2x8x1xf32>
    %276 = vector.broadcast %275 : vector<2x8x1xf32> to vector<2x8x8xf32>
    %277 = arith.mulf %272, %276 : vector<2x8x8xf32>
    "tpu.trace_start"() <{level = 10 : i32, message = "bqk,bkd->bqd"}> : () -> ()
    %cst_109 = arith.constant dense<0.000000e+00> : vector<2x8x8xf32>
    %278 = tpu.matmul %277, %266, %cst_109 {dimension_numbers = #tpu.dot_dimension_numbers<[2], [1], [1], [2], [0, 0, 0, 1, 1, 2], [0], [0]>} : vector<2x8x8xf32>, vector<2x8x8xf32>, vector<2x8x8xf32> -> vector<2x8x8xf32>
    "tpu.trace_stop"() : () -> ()
    %279 = vector.shape_cast %278 : vector<2x8x8xf32> to vector<16x8xf32>
    %280 = vector.extract_strided_slice %193 {offsets = [24, 0], sizes = [8, 32], strides = [1, 1]} : vector<32x32xf32> to vector<8x32xf32>
    %cst_110 = arith.constant dense<0.000000e+00> : vector<16x32xf32>
    %281 = tpu.matmul %279, %280, %cst_110 {dimension_numbers = #tpu.dot_dimension_numbers<[1], [0], [0], [1], [0, 0, 1, 1], [], []>} : vector<16x8xf32>, vector<8x32xf32>, vector<16x32xf32> -> vector<16x32xf32>
    %282 = arith.addf %260, %281 : vector<16x32xf32>
    %c1_111 = arith.constant 1 : index
    %c0_112 = arith.constant 0 : index
    %c0_113 = arith.constant 0 : index
    %283 = vector.load %arg8[%c1_111, %c0_112, %c0_113] : memref<2x1x32xf32, #tpu.memory_space<vmem>>, vector<1x1x32xf32>
    %284 = vector.shape_cast %283 : vector<1x1x32xf32> to vector<1x32xf32>
    %285 = vector.broadcast %284 : vector<1x32xf32> to vector<16x32xf32>
    %286 = arith.addf %282, %285 : vector<16x32xf32>
    %287 = arith.addf %184, %286 : vector<16x32xf32>
    %c1_114 = arith.constant 1 : index
    %c0_115 = arith.constant 0 : index
    %c0_116 = arith.constant 0 : index
    %288 = vector.load %arg9[%c1_114, %c0_115, %c0_116] : memref<2x1x32xf32, #tpu.memory_space<vmem>>, vector<1x1x32xf32>
    %289 = vector.shape_cast %288 : vector<1x1x32xf32> to vector<1x32xf32>
    %c1_117 = arith.constant 1 : index
    %c0_118 = arith.constant 0 : index
    %c0_119 = arith.constant 0 : index
    %290 = vector.load %arg10[%c1_117, %c0_118, %c0_119] : memref<2x1x32xf32, #tpu.memory_space<vmem>>, vector<1x1x32xf32>
    %291 = vector.shape_cast %290 : vector<1x1x32xf32> to vector<1x32xf32>
    %cst_120 = arith.constant dense<0.000000e+00> : vector<16xf32>
    %292 = vector.multi_reduction <add>, %287, %cst_120 [1] : vector<16x32xf32> to vector<16xf32>
    %293 = vector.shape_cast %292 : vector<16xf32> to vector<16x1xf32>
    %cst_121 = arith.constant 3.200000e+01 : f32
    %294 = vector.broadcast %cst_121 : f32 to vector<16x1xf32>
    %295 = arith.divf %293, %294 : vector<16x1xf32>
    %296 = vector.broadcast %295 : vector<16x1xf32> to vector<16x32xf32>
    %297 = arith.subf %287, %296 : vector<16x32xf32>
    %298 = arith.mulf %297, %297 : vector<16x32xf32>
    %cst_122 = arith.constant dense<0.000000e+00> : vector<16xf32>
    %299 = vector.multi_reduction <add>, %298, %cst_122 [1] : vector<16x32xf32> to vector<16xf32>
    %300 = vector.shape_cast %299 : vector<16xf32> to vector<16x1xf32>
    %cst_123 = arith.constant 3.200000e+01 : f32
    %301 = vector.broadcast %cst_123 : f32 to vector<16x1xf32>
    %302 = arith.divf %300, %301 : vector<16x1xf32>
    %303 = vector.broadcast %295 : vector<16x1xf32> to vector<16x32xf32>
    %304 = arith.subf %287, %303 : vector<16x32xf32>
    %cst_124 = arith.constant 9.99999974E-6 : f32
    %305 = vector.broadcast %cst_124 : f32 to vector<16x1xf32>
    %306 = arith.addf %302, %305 : vector<16x1xf32>
    %307 = math.rsqrt %306 : vector<16x1xf32>
    %308 = vector.broadcast %307 : vector<16x1xf32> to vector<16x32xf32>
    %309 = arith.mulf %304, %308 : vector<16x32xf32>
    %310 = vector.broadcast %289 : vector<1x32xf32> to vector<16x32xf32>
    %311 = arith.mulf %309, %310 : vector<16x32xf32>
    %312 = vector.broadcast %291 : vector<1x32xf32> to vector<16x32xf32>
    %313 = arith.addf %311, %312 : vector<16x32xf32>
    %c1_125 = arith.constant 1 : index
    %c0_126 = arith.constant 0 : index
    %c0_127 = arith.constant 0 : index
    %314 = vector.load %arg11[%c1_125, %c0_126, %c0_127] : memref<2x32x64xf32, #tpu.memory_space<vmem>>, vector<1x32x64xf32>
    %315 = vector.shape_cast %314 : vector<1x32x64xf32> to vector<32x64xf32>
    %c1_128 = arith.constant 1 : index
    %c0_129 = arith.constant 0 : index
    %c0_130 = arith.constant 0 : index
    %316 = vector.load %arg12[%c1_128, %c0_129, %c0_130] : memref<2x1x64xf32, #tpu.memory_space<vmem>>, vector<1x1x64xf32>
    %317 = vector.shape_cast %316 : vector<1x1x64xf32> to vector<1x64xf32>
    %cst_131 = arith.constant dense<0.000000e+00> : vector<16x64xf32>
    %318 = tpu.matmul %313, %315, %cst_131 {dimension_numbers = #tpu.dot_dimension_numbers<[1], [0], [0], [1], [0, 0, 1, 1], [], []>} : vector<16x32xf32>, vector<32x64xf32>, vector<16x64xf32> -> vector<16x64xf32>
    %319 = vector.broadcast %317 : vector<1x64xf32> to vector<16x64xf32>
    %320 = arith.addf %318, %319 : vector<16x64xf32>
    %cst_132 = arith.constant 0.000000e+00 : f32
    %321 = vector.broadcast %cst_132 : f32 to vector<16x64xf32>
    %322 = arith.maximumf %320, %321 : vector<16x64xf32>
    %c1_133 = arith.constant 1 : index
    %c0_134 = arith.constant 0 : index
    %c0_135 = arith.constant 0 : index
    %323 = vector.load %arg13[%c1_133, %c0_134, %c0_135] : memref<2x64x32xf32, #tpu.memory_space<vmem>>, vector<1x64x32xf32>
    %324 = vector.shape_cast %323 : vector<1x64x32xf32> to vector<64x32xf32>
    %c1_136 = arith.constant 1 : index
    %c0_137 = arith.constant 0 : index
    %c0_138 = arith.constant 0 : index
    %325 = vector.load %arg14[%c1_136, %c0_137, %c0_138] : memref<2x1x32xf32, #tpu.memory_space<vmem>>, vector<1x1x32xf32>
    %326 = vector.shape_cast %325 : vector<1x1x32xf32> to vector<1x32xf32>
    %cst_139 = arith.constant dense<0.000000e+00> : vector<16x32xf32>
    %327 = tpu.matmul %322, %324, %cst_139 {dimension_numbers = #tpu.dot_dimension_numbers<[1], [0], [0], [1], [0, 0, 1, 1], [], []>} : vector<16x64xf32>, vector<64x32xf32>, vector<16x32xf32> -> vector<16x32xf32>
    %328 = vector.broadcast %326 : vector<1x32xf32> to vector<16x32xf32>
    %329 = arith.addf %327, %328 : vector<16x32xf32>
    %330 = arith.addf %313, %329 : vector<16x32xf32>
    %c1_140 = arith.constant 1 : index
    %c0_141 = arith.constant 0 : index
    %c0_142 = arith.constant 0 : index
    %331 = vector.load %arg15[%c1_140, %c0_141, %c0_142] : memref<2x1x32xf32, #tpu.memory_space<vmem>>, vector<1x1x32xf32>
    %332 = vector.shape_cast %331 : vector<1x1x32xf32> to vector<1x32xf32>
    %c1_143 = arith.constant 1 : index
    %c0_144 = arith.constant 0 : index
    %c0_145 = arith.constant 0 : index
    %333 = vector.load %arg16[%c1_143, %c0_144, %c0_145] : memref<2x1x32xf32, #tpu.memory_space<vmem>>, vector<1x1x32xf32>
    %334 = vector.shape_cast %333 : vector<1x1x32xf32> to vector<1x32xf32>
    %cst_146 = arith.constant dense<0.000000e+00> : vector<16xf32>
    %335 = vector.multi_reduction <add>, %330, %cst_146 [1] : vector<16x32xf32> to vector<16xf32>
    %336 = vector.shape_cast %335 : vector<16xf32> to vector<16x1xf32>
    %cst_147 = arith.constant 3.200000e+01 : f32
    %337 = vector.broadcast %cst_147 : f32 to vector<16x1xf32>
    %338 = arith.divf %336, %337 : vector<16x1xf32>
    %339 = vector.broadcast %338 : vector<16x1xf32> to vector<16x32xf32>
    %340 = arith.subf %330, %339 : vector<16x32xf32>
    %341 = arith.mulf %340, %340 : vector<16x32xf32>
    %cst_148 = arith.constant dense<0.000000e+00> : vector<16xf32>
    %342 = vector.multi_reduction <add>, %341, %cst_148 [1] : vector<16x32xf32> to vector<16xf32>
    %343 = vector.shape_cast %342 : vector<16xf32> to vector<16x1xf32>
    %cst_149 = arith.constant 3.200000e+01 : f32
    %344 = vector.broadcast %cst_149 : f32 to vector<16x1xf32>
    %345 = arith.divf %343, %344 : vector<16x1xf32>
    %346 = vector.broadcast %338 : vector<16x1xf32> to vector<16x32xf32>
    %347 = arith.subf %330, %346 : vector<16x32xf32>
    %cst_150 = arith.constant 9.99999974E-6 : f32
    %348 = vector.broadcast %cst_150 : f32 to vector<16x1xf32>
    %349 = arith.addf %345, %348 : vector<16x1xf32>
    %350 = math.rsqrt %349 : vector<16x1xf32>
    %351 = vector.broadcast %350 : vector<16x1xf32> to vector<16x32xf32>
    %352 = arith.mulf %347, %351 : vector<16x32xf32>
    %353 = vector.broadcast %332 : vector<1x32xf32> to vector<16x32xf32>
    %354 = arith.mulf %352, %353 : vector<16x32xf32>
    %355 = vector.broadcast %334 : vector<1x32xf32> to vector<16x32xf32>
    %356 = arith.addf %354, %355 : vector<16x32xf32>
    %357 = vector.shape_cast %356 : vector<16x32xf32> to vector<2x8x32xf32>
    %358 = vector.extract_strided_slice %357 {offsets = [0, 0, 0], sizes = [2, 1, 32], strides = [1, 1, 1]} : vector<2x8x32xf32> to vector<2x1x32xf32>
    %359 = vector.shape_cast %358 : vector<2x1x32xf32> to vector<2x32xf32>
    %c0_151 = arith.constant 0 : index
    %c0_152 = arith.constant 0 : index
    %c0_153 = arith.constant 0 : index
    %360 = vector.load %arg17[%c0_151, %c0_152, %c0_153] : memref<8x32x32xf32, #tpu.memory_space<vmem>>, vector<1x32x32xf32>
    %361 = vector.shape_cast %360 : vector<1x32x32xf32> to vector<32x32xf32>
    %cst_154 = arith.constant dense<0.000000e+00> : vector<2x32xf32>
    %362 = tpu.matmul %359, %361, %cst_154 {dimension_numbers = #tpu.dot_dimension_numbers<[1], [0], [0], [1], [0, 0, 1, 1], [], []>} : vector<2x32xf32>, vector<32x32xf32>, vector<2x32xf32> -> vector<2x32xf32>
    %363 = vector.extract_strided_slice %357 {offsets = [0, 1, 0], sizes = [2, 1, 32], strides = [1, 1, 1]} : vector<2x8x32xf32> to vector<2x1x32xf32>
    %364 = vector.shape_cast %363 : vector<2x1x32xf32> to vector<2x32xf32>
    %c1_155 = arith.constant 1 : index
    %c0_156 = arith.constant 0 : index
    %c0_157 = arith.constant 0 : index
    %365 = vector.load %arg17[%c1_155, %c0_156, %c0_157] : memref<8x32x32xf32, #tpu.memory_space<vmem>>, vector<1x32x32xf32>
    %366 = vector.shape_cast %365 : vector<1x32x32xf32> to vector<32x32xf32>
    %cst_158 = arith.constant dense<0.000000e+00> : vector<2x32xf32>
    %367 = tpu.matmul %364, %366, %cst_158 {dimension_numbers = #tpu.dot_dimension_numbers<[1], [0], [0], [1], [0, 0, 1, 1], [], []>} : vector<2x32xf32>, vector<32x32xf32>, vector<2x32xf32> -> vector<2x32xf32>
    %368 = arith.addf %362, %367 : vector<2x32xf32>
    %369 = vector.extract_strided_slice %357 {offsets = [0, 2, 0], sizes = [2, 1, 32], strides = [1, 1, 1]} : vector<2x8x32xf32> to vector<2x1x32xf32>
    %370 = vector.shape_cast %369 : vector<2x1x32xf32> to vector<2x32xf32>
    %c2 = arith.constant 2 : index
    %c0_159 = arith.constant 0 : index
    %c0_160 = arith.constant 0 : index
    %371 = vector.load %arg17[%c2, %c0_159, %c0_160] : memref<8x32x32xf32, #tpu.memory_space<vmem>>, vector<1x32x32xf32>
    %372 = vector.shape_cast %371 : vector<1x32x32xf32> to vector<32x32xf32>
    %cst_161 = arith.constant dense<0.000000e+00> : vector<2x32xf32>
    %373 = tpu.matmul %370, %372, %cst_161 {dimension_numbers = #tpu.dot_dimension_numbers<[1], [0], [0], [1], [0, 0, 1, 1], [], []>} : vector<2x32xf32>, vector<32x32xf32>, vector<2x32xf32> -> vector<2x32xf32>
    %374 = arith.addf %368, %373 : vector<2x32xf32>
    %375 = vector.extract_strided_slice %357 {offsets = [0, 3, 0], sizes = [2, 1, 32], strides = [1, 1, 1]} : vector<2x8x32xf32> to vector<2x1x32xf32>
    %376 = vector.shape_cast %375 : vector<2x1x32xf32> to vector<2x32xf32>
    %c3 = arith.constant 3 : index
    %c0_162 = arith.constant 0 : index
    %c0_163 = arith.constant 0 : index
    %377 = vector.load %arg17[%c3, %c0_162, %c0_163] : memref<8x32x32xf32, #tpu.memory_space<vmem>>, vector<1x32x32xf32>
    %378 = vector.shape_cast %377 : vector<1x32x32xf32> to vector<32x32xf32>
    %cst_164 = arith.constant dense<0.000000e+00> : vector<2x32xf32>
    %379 = tpu.matmul %376, %378, %cst_164 {dimension_numbers = #tpu.dot_dimension_numbers<[1], [0], [0], [1], [0, 0, 1, 1], [], []>} : vector<2x32xf32>, vector<32x32xf32>, vector<2x32xf32> -> vector<2x32xf32>
    %380 = arith.addf %374, %379 : vector<2x32xf32>
    %381 = vector.extract_strided_slice %357 {offsets = [0, 4, 0], sizes = [2, 1, 32], strides = [1, 1, 1]} : vector<2x8x32xf32> to vector<2x1x32xf32>
    %382 = vector.shape_cast %381 : vector<2x1x32xf32> to vector<2x32xf32>
    %c4 = arith.constant 4 : index
    %c0_165 = arith.constant 0 : index
    %c0_166 = arith.constant 0 : index
    %383 = vector.load %arg17[%c4, %c0_165, %c0_166] : memref<8x32x32xf32, #tpu.memory_space<vmem>>, vector<1x32x32xf32>
    %384 = vector.shape_cast %383 : vector<1x32x32xf32> to vector<32x32xf32>
    %cst_167 = arith.constant dense<0.000000e+00> : vector<2x32xf32>
    %385 = tpu.matmul %382, %384, %cst_167 {dimension_numbers = #tpu.dot_dimension_numbers<[1], [0], [0], [1], [0, 0, 1, 1], [], []>} : vector<2x32xf32>, vector<32x32xf32>, vector<2x32xf32> -> vector<2x32xf32>
    %386 = arith.addf %380, %385 : vector<2x32xf32>
    %387 = vector.extract_strided_slice %357 {offsets = [0, 5, 0], sizes = [2, 1, 32], strides = [1, 1, 1]} : vector<2x8x32xf32> to vector<2x1x32xf32>
    %388 = vector.shape_cast %387 : vector<2x1x32xf32> to vector<2x32xf32>
    %c5 = arith.constant 5 : index
    %c0_168 = arith.constant 0 : index
    %c0_169 = arith.constant 0 : index
    %389 = vector.load %arg17[%c5, %c0_168, %c0_169] : memref<8x32x32xf32, #tpu.memory_space<vmem>>, vector<1x32x32xf32>
    %390 = vector.shape_cast %389 : vector<1x32x32xf32> to vector<32x32xf32>
    %cst_170 = arith.constant dense<0.000000e+00> : vector<2x32xf32>
    %391 = tpu.matmul %388, %390, %cst_170 {dimension_numbers = #tpu.dot_dimension_numbers<[1], [0], [0], [1], [0, 0, 1, 1], [], []>} : vector<2x32xf32>, vector<32x32xf32>, vector<2x32xf32> -> vector<2x32xf32>
    %392 = arith.addf %386, %391 : vector<2x32xf32>
    %393 = vector.extract_strided_slice %357 {offsets = [0, 6, 0], sizes = [2, 1, 32], strides = [1, 1, 1]} : vector<2x8x32xf32> to vector<2x1x32xf32>
    %394 = vector.shape_cast %393 : vector<2x1x32xf32> to vector<2x32xf32>
    %c6 = arith.constant 6 : index
    %c0_171 = arith.constant 0 : index
    %c0_172 = arith.constant 0 : index
    %395 = vector.load %arg17[%c6, %c0_171, %c0_172] : memref<8x32x32xf32, #tpu.memory_space<vmem>>, vector<1x32x32xf32>
    %396 = vector.shape_cast %395 : vector<1x32x32xf32> to vector<32x32xf32>
    %cst_173 = arith.constant dense<0.000000e+00> : vector<2x32xf32>
    %397 = tpu.matmul %394, %396, %cst_173 {dimension_numbers = #tpu.dot_dimension_numbers<[1], [0], [0], [1], [0, 0, 1, 1], [], []>} : vector<2x32xf32>, vector<32x32xf32>, vector<2x32xf32> -> vector<2x32xf32>
    %398 = arith.addf %392, %397 : vector<2x32xf32>
    %399 = vector.extract_strided_slice %357 {offsets = [0, 7, 0], sizes = [2, 1, 32], strides = [1, 1, 1]} : vector<2x8x32xf32> to vector<2x1x32xf32>
    %400 = vector.shape_cast %399 : vector<2x1x32xf32> to vector<2x32xf32>
    %c7 = arith.constant 7 : index
    %c0_174 = arith.constant 0 : index
    %c0_175 = arith.constant 0 : index
    %401 = vector.load %arg17[%c7, %c0_174, %c0_175] : memref<8x32x32xf32, #tpu.memory_space<vmem>>, vector<1x32x32xf32>
    %402 = vector.shape_cast %401 : vector<1x32x32xf32> to vector<32x32xf32>
    %cst_176 = arith.constant dense<0.000000e+00> : vector<2x32xf32>
    %403 = tpu.matmul %400, %402, %cst_176 {dimension_numbers = #tpu.dot_dimension_numbers<[1], [0], [0], [1], [0, 0, 1, 1], [], []>} : vector<2x32xf32>, vector<32x32xf32>, vector<2x32xf32> -> vector<2x32xf32>
    %404 = arith.addf %398, %403 : vector<2x32xf32>
    %c0_177 = arith.constant 0 : index
    %c0_178 = arith.constant 0 : index
    %405 = vector.load %arg18[%c0_177, %c0_178] : memref<1x32xf32, #tpu.memory_space<vmem>>, vector<1x32xf32>
    %406 = vector.broadcast %405 : vector<1x32xf32> to vector<2x32xf32>
    %407 = arith.addf %404, %406 : vector<2x32xf32>
    %cst_179 = arith.constant 0.000000e+00 : f32
    %408 = vector.broadcast %cst_179 : f32 to vector<2x32xf32>
    %409 = arith.maximumf %407, %408 : vector<2x32xf32>
    %c0_180 = arith.constant 0 : index
    %c0_181 = arith.constant 0 : index
    %410 = vector.load %arg19[%c0_180, %c0_181] : memref<32x10xf32, #tpu.memory_space<vmem>>, vector<32x10xf32>
    %cst_182 = arith.constant dense<0.000000e+00> : vector<2x10xf32>
    %411 = tpu.matmul %409, %410, %cst_182 {dimension_numbers = #tpu.dot_dimension_numbers<[1], [0], [0], [1], [0, 0, 1, 1], [], []>} : vector<2x32xf32>, vector<32x10xf32>, vector<2x10xf32> -> vector<2x10xf32>
    %c0_183 = arith.constant 0 : index
    %c0_184 = arith.constant 0 : index
    %412 = vector.load %arg20[%c0_183, %c0_184] : memref<1x10xf32, #tpu.memory_space<vmem>>, vector<1x10xf32>
    %413 = vector.broadcast %412 : vector<1x10xf32> to vector<2x10xf32>
    %414 = arith.addf %411, %413 : vector<2x10xf32>
    %c0_185 = arith.constant 0 : index
    %c0_186 = arith.constant 0 : index
    %415 = vector.load %arg21[%c0_185, %c0_186] : memref<2x10xf32, #tpu.memory_space<vmem>>, vector<2x10xf32>
    tpu.vector_store %arg21[%c0_185, %c0_186], %414 {strides = array<i32>} : memref<2x10xf32, #tpu.memory_space<vmem>>, vector<2x10xf32>,
    return
  }
}

</mosaic_0001>

<llo_original>
// kernel: tpu_custom_call.1
$region0: #{tpu_custom_call.1}
  #allocation0 [shape = 'u32[]', space=smem, size = 0x4, offset = 0x4, fixed_abs, tag = 'smem constant byte address 0x4 - core index']
  #allocation1 [shape = 'u32[144,128]{1,0:T(1,128)}', space=vmem, size = 0x12000, scoped, tag = 'internal scratch']
  %s0 = inlined_call_operand.vmem [shape: f32[2,8,4], index: 0, kind: input, shape index: {}]
  %s1 = inlined_call_operand.hbm [shape: f32[1,4], index: 1, kind: input, shape index: {}]
  %s2 = inlined_call_operand.hbm [shape: f32[1,4], index: 2, kind: input, shape index: {}]
  %s3 = inlined_call_operand.vmem [shape: f32[4,32], index: 3, kind: input, shape index: {}]
  %s4 = inlined_call_operand.hbm [shape: f32[1,32], index: 4, kind: input, shape index: {}]
  %s5 = inlined_call_operand.vmem [shape: f32[2,32,96], index: 5, kind: input, shape index: {}]
  %s6 = inlined_call_operand.vmem [shape: f32[2,1,96], index: 6, kind: input, shape index: {}]
  %s7 = inlined_call_operand.hbm [shape: f32[2,32,32], index: 7, kind: input, shape index: {}]
  %s8 = inlined_call_operand.vmem [shape: f32[2,1,32], index: 8, kind: input, shape index: {}]
  %s9 = inlined_call_operand.hbm [shape: f32[2,1,32], index: 9, kind: input, shape index: {}]
  %s10 = inlined_call_operand.hbm [shape: f32[2,1,32], index: 10, kind: input, shape index: {}]
  %s11 = inlined_call_operand.hbm [shape: f32[2,32,64], index: 11, kind: input, shape index: {}]
  %s12 = inlined_call_operand.hbm [shape: f32[2,1,64], index: 12, kind: input, shape index: {}]
  %s13 = inlined_call_operand.vmem [shape: f32[2,64,32], index: 13, kind: input, shape index: {}]
  %s14 = inlined_call_operand.hbm [shape: f32[2,1,32], index: 14, kind: input, shape index: {}]
  %s15 = inlined_call_operand.hbm [shape: f32[2,1,32], index: 15, kind: input, shape index: {}]
  %s16 = inlined_call_operand.hbm [shape: f32[2,1,32], index: 16, kind: input, shape index: {}]
  %s17 = inlined_call_operand.vmem [shape: f32[8,32,32], index: 17, kind: input, shape index: {}]
  %s18 = inlined_call_operand.vmem [shape: f32[1,32], index: 18, kind: input, shape index: {}]
  %s19 = inlined_call_operand.vmem [shape: f32[32,10], index: 19, kind: input, shape index: {}]
  %s20 = inlined_call_operand.vmem [shape: f32[1,10], index: 20, kind: input, shape index: {}]
  %s21 = inlined_call_operand.hbm [shape: f32[2,10], index: 21, kind: output, shape index: {}]
  %s22 = sld [smem:[#allocation0]]
  $region138: #{tpu_custom_call.1} parent=0
    _
  %s24 = ssub.s32 1, %s22
  %s25 = scalar_select 0, %s24, %s22
  $region1: #{tpu_custom_call.1} parent=0
    #allocation2 [shape = 'u8[512]{0}', space=vmem, size = 0x400, scoped, tag = 'input window, operand 1, single buffered']
    #allocation3 [shape = 's32[1]{0}', space=sflag, size = 0x4, scoped, tag = 'scoped memory for tpu_custom_call.1']
    #allocation4 [shape = 's32[1]{0}', space=sflag, size = 0x4, scoped, tag = 'scoped memory for tpu_custom_call.1']
    #allocation5 [shape = 'u8[512]{0}', space=vmem, size = 0x400, scoped, tag = 'input window, operand 2, single buffered']
    #allocation6 [shape = 's32[1]{0}', space=sflag, size = 0x4, scoped, tag = 'scoped memory for tpu_custom_call.1']
    #allocation7 [shape = 'u8[512]{0}', space=vmem, size = 0x400, scoped, tag = 'input window, operand 4, single buffered']
    #allocation8 [shape = 'u8[32768]{0}', space=vmem, size = 0x8000, scoped, tag = 'input window, operand 7, single buffered']
    #allocation9 [shape = 's32[1]{0}', space=sflag, size = 0x4, scoped, tag = 'scoped memory for tpu_custom_call.1']
    #allocation10 [shape = 'u8[1024]{0}', space=vmem, size = 0x400, scoped, tag = 'input window, operand 9, single buffered']
    #allocation11 [shape = 'u8[1024]{0}', space=vmem, size = 0x400, scoped, tag = 'input window, operand 10, single buffered']
    #allocation12 [shape = 's32[1]{0}', space=sflag, size = 0x4, scoped, tag = 'scoped memory for tpu_custom_call.1']
    #allocation13 [shape = 'u8[32768]{0}', space=vmem, size = 0x8000, scoped, tag = 'input window, operand 11, single buffered']
    #allocation14 [shape = 'u8[1024]{0}', space=vmem, size = 0x400, scoped, tag = 'input window, operand 12, single buffered']
    #allocation15 [shape = 's32[1]{0}', space=sflag, size = 0x4, scoped, tag = 'scoped memory for tpu_custom_call.1']
    #allocation16 [shape = 'u8[1024]{0}', space=vmem, size = 0x400, scoped, tag = 'input window, operand 14, single buffered']
    #allocation17 [shape = 'u8[1024]{0}', space=vmem, size = 0x400, scoped, tag = 'input window, operand 15, single buffered']
    #allocation18 [shape = 's32[1]{0}', space=sflag, size = 0x4, scoped, tag = 'scoped memory for tpu_custom_call.1']
    #allocation19 [shape = 'u8[1024]{0}', space=vmem, size = 0x400, scoped, tag = 'input window, operand 16, single buffered']
    #allocation20 [shape = 'u8[1024]{0}', space=vmem, size = 0x400, scoped, tag = 'output window, operand 0, single buffered']
    %26 = vsyncpa [#allocation3], 0
    %27 = vsyncpa [#allocation6], 0
    %28 = vsyncpa [#allocation9], 0
    %29 = vsyncpa [#allocation12], 0
    %30 = vsyncpa [#allocation15], 0
    %31 = vsyncpa [#allocation18], 0
    %32 = vsyncpa [#allocation4], 0
    // Predicated region
    $region2: #{tpu_custom_call.1} parent=1 // pred_check
      _
    $region3: #{tpu_custom_call.1} parent=1 // pred_check_branch
      %34 = sbr.rel (0) target = $region5
    $region4: #{tpu_custom_call.1} parent=1 // pred_region
      _
    $region5: #{tpu_custom_call.1} parent=1 // pred_fallthru
      _
    // Predicated region
    $region6: #{tpu_custom_call.1} parent=1 // pred_check
      _
    $region7: #{tpu_custom_call.1} parent=1 // pred_check_branch
      %36 = sbr.rel (0) target = $region9
    $region8: #{tpu_custom_call.1} parent=1 // pred_region
      %s38 = ssub.s32 16, 16
      %39 = vsyncadd [#allocation3], %s38
      %s41 = sshll.u32 [#allocation2], 4
      %s42 = int_to_ptr.vmem [resolvable:$true] %s41
      %44 = dma.hbm_to_vmem [thread:$0]  %s1, 16, %s42, [#allocation3]
    $region9: #{tpu_custom_call.1} parent=1 // pred_fallthru
      _
    // Predicated region
    $region10: #{tpu_custom_call.1} parent=1 // pred_check
      _
    $region11: #{tpu_custom_call.1} parent=1 // pred_check_branch
      %46 = sbr.rel (0) target = $region13
    $region12: #{tpu_custom_call.1} parent=1 // pred_region
      %s48 = ssub.s32 16, 16
      %49 = vsyncadd [#allocation6], %s48
      %s51 = sshll.u32 [#allocation5], 4
      %s52 = int_to_ptr.vmem [resolvable:$true] %s51
      %54 = dma.hbm_to_vmem [thread:$0]  %s2, 16, %s52, [#allocation6]
    $region13: #{tpu_custom_call.1} parent=1 // pred_fallthru
      _
    // Predicated region
    $region14: #{tpu_custom_call.1} parent=1 // pred_check
      _
    $region15: #{tpu_custom_call.1} parent=1 // pred_check_branch
      %56 = sbr.rel (0) target = $region17
    $region16: #{tpu_custom_call.1} parent=1 // pred_region
      _
    $region17: #{tpu_custom_call.1} parent=1 // pred_fallthru
      _
    // Predicated region
    $region18: #{tpu_custom_call.1} parent=1 // pred_check
      _
    $region19: #{tpu_custom_call.1} parent=1 // pred_check_branch
      %58 = sbr.rel (0) target = $region21
    $region20: #{tpu_custom_call.1} parent=1 // pred_region
      %s60 = ssub.s32 16, 16
      %61 = vsyncadd [#allocation6], %s60
      %s63 = sshll.u32 [#allocation7], 4
      %s64 = int_to_ptr.vmem [resolvable:$true] %s63
      %66 = dma.hbm_to_vmem [thread:$0]  %s4, 16, %s64, [#allocation6]
    $region21: #{tpu_custom_call.1} parent=1 // pred_fallthru
      _
    // Predicated region
    $region22: #{tpu_custom_call.1} parent=1 // pred_check
      _
    $region23: #{tpu_custom_call.1} parent=1 // pred_check_branch
      %68 = sbr.rel (0) target = $region25
    $region24: #{tpu_custom_call.1} parent=1 // pred_region
      _
    $region25: #{tpu_custom_call.1} parent=1 // pred_fallthru
      _
    // Predicated region
    $region26: #{tpu_custom_call.1} parent=1 // pred_check
      _
    $region27: #{tpu_custom_call.1} parent=1 // pred_check_branch
      %70 = sbr.rel (0) target = $region29
    $region28: #{tpu_custom_call.1} parent=1 // pred_region
      _
    $region29: #{tpu_custom_call.1} parent=1 // pred_fallthru
      _
    // Predicated region
    $region30: #{tpu_custom_call.1} parent=1 // pred_check
      _
    $region31: #{tpu_custom_call.1} parent=1 // pred_check_branch
      %72 = sbr.rel (0) target = $region33
    $region32: #{tpu_custom_call.1} parent=1 // pred_region
      %s74 = ssub.s32 1024, 1024
      %75 = vsyncadd [#allocation9], %s74
      %s76 = sshll.u32 [#allocation8], 4
      %s77 = int_to_ptr.vmem [resolvable:$true] %s76
      %82 = dma.hbm_to_vmem [thread:$0]  %s7, 1024, %s77, [#allocation9], 128, 128, 8
    $region33: #{tpu_custom_call.1} parent=1 // pred_fallthru
      _
    // Predicated region
    $region34: #{tpu_custom_call.1} parent=1 // pred_check
      _
    $region35: #{tpu_custom_call.1} parent=1 // pred_check_branch
      %84 = sbr.rel (0) target = $region37
    $region36: #{tpu_custom_call.1} parent=1 // pred_region
      _
    $region37: #{tpu_custom_call.1} parent=1 // pred_fallthru
      _
    // Predicated region
    $region38: #{tpu_custom_call.1} parent=1 // pred_check
      _
    $region39: #{tpu_custom_call.1} parent=1 // pred_check_branch
      %86 = sbr.rel (0) target = $region41
    $region40: #{tpu_custom_call.1} parent=1 // pred_region
      %s88 = ssub.s32 32, 32
      %89 = vsyncadd [#allocation9], %s88
      %s90 = sshll.u32 [#allocation10], 4
      %s91 = int_to_ptr.vmem [resolvable:$true] %s90
      %96 = dma.hbm_to_vmem [thread:$0]  %s9, 32, %s91, [#allocation9], 16, 16, 1
    $region41: #{tpu_custom_call.1} parent=1 // pred_fallthru
      _
    // Predicated region
    $region42: #{tpu_custom_call.1} parent=1 // pred_check
      _
    $region43: #{tpu_custom_call.1} parent=1 // pred_check_branch
      %98 = sbr.rel (0) target = $region45
    $region44: #{tpu_custom_call.1} parent=1 // pred_region
      %s100 = ssub.s32 32, 32
      %101 = vsyncadd [#allocation12], %s100
      %s102 = sshll.u32 [#allocation11], 4
      %s103 = int_to_ptr.vmem [resolvable:$true] %s102
      %108 = dma.hbm_to_vmem [thread:$0]  %s10, 32, %s103, [#allocation12], 16, 16, 1
    $region45: #{tpu_custom_call.1} parent=1 // pred_fallthru
      _
    // Predicated region
    $region46: #{tpu_custom_call.1} parent=1 // pred_check
      _
    $region47: #{tpu_custom_call.1} parent=1 // pred_check_branch
      %110 = sbr.rel (0) target = $region49
    $region48: #{tpu_custom_call.1} parent=1 // pred_region
      %s112 = ssub.s32 1024, 1024
      %113 = vsyncadd [#allocation12], %s112
      %s114 = sshll.u32 [#allocation13], 4
      %s115 = int_to_ptr.vmem [resolvable:$true] %s114
      %120 = dma.hbm_to_vmem [thread:$0]  %s11, 1024, %s115, [#allocation12], 128, 128, 8
    $region49: #{tpu_custom_call.1} parent=1 // pred_fallthru
      _
    // Predicated region
    $region50: #{tpu_custom_call.1} parent=1 // pred_check
      _
    $region51: #{tpu_custom_call.1} parent=1 // pred_check_branch
      %122 = sbr.rel (0) target = $region53
    $region52: #{tpu_custom_call.1} parent=1 // pred_region
      %s124 = ssub.s32 32, 32
      %125 = vsyncadd [#allocation15], %s124
      %s126 = sshll.u32 [#allocation14], 4
      %s127 = int_to_ptr.vmem [resolvable:$true] %s126
      %132 = dma.hbm_to_vmem [thread:$0]  %s12, 32, %s127, [#allocation15], 16, 16, 1
    $region53: #{tpu_custom_call.1} parent=1 // pred_fallthru
      _
    // Predicated region
    $region54: #{tpu_custom_call.1} parent=1 // pred_check
      _
    $region55: #{tpu_custom_call.1} parent=1 // pred_check_branch
      %134 = sbr.rel (0) target = $region57
    $region56: #{tpu_custom_call.1} parent=1 // pred_region
      _
    $region57: #{tpu_custom_call.1} parent=1 // pred_fallthru
      _
    // Predicated region
    $region58: #{tpu_custom_call.1} parent=1 // pred_check
      _
    $region59: #{tpu_custom_call.1} parent=1 // pred_check_branch
      %136 = sbr.rel (0) target = $region61
    $region60: #{tpu_custom_call.1} parent=1 // pred_region
      %s138 = ssub.s32 32, 32
      %139 = vsyncadd [#allocation15], %s138
      %s140 = sshll.u32 [#allocation16], 4
      %s141 = int_to_ptr.vmem [resolvable:$true] %s140
      %146 = dma.hbm_to_vmem [thread:$0]  %s14, 32, %s141, [#allocation15], 16, 16, 1
    $region61: #{tpu_custom_call.1} parent=1 // pred_fallthru
      _
    // Predicated region
    $region62: #{tpu_custom_call.1} parent=1 // pred_check
      _
    $region63: #{tpu_custom_call.1} parent=1 // pred_check_branch
      %148 = sbr.rel (0) target = $region65
    $region64: #{tpu_custom_call.1} parent=1 // pred_region
      %s150 = ssub.s32 32, 32
      %151 = vsyncadd [#allocation18], %s150
      %s152 = sshll.u32 [#allocation17], 4
      %s153 = int_to_ptr.vmem [resolvable:$true] %s152
      %158 = dma.hbm_to_vmem [thread:$0]  %s15, 32, %s153, [#allocation18], 16, 16, 1
    $region65: #{tpu_custom_call.1} parent=1 // pred_fallthru
      _
    // Predicated region
    $region66: #{tpu_custom_call.1} parent=1 // pred_check
      _
    $region67: #{tpu_custom_call.1} parent=1 // pred_check_branch
      %160 = sbr.rel (0) target = $region69
    $region68: #{tpu_custom_call.1} parent=1 // pred_region
      %s162 = ssub.s32 32, 32
      %163 = vsyncadd [#allocation18], %s162
      %s164 = sshll.u32 [#allocation19], 4
      %s165 = int_to_ptr.vmem [resolvable:$true] %s164
      %170 = dma.hbm_to_vmem [thread:$0]  %s16, 32, %s165, [#allocation18], 16, 16, 1
    $region69: #{tpu_custom_call.1} parent=1 // pred_fallthru
      _
    // Predicated region
    $region70: #{tpu_custom_call.1} parent=1 // pred_check
      _
    $region71: #{tpu_custom_call.1} parent=1 // pred_check_branch
      %172 = sbr.rel (0) target = $region73
    $region72: #{tpu_custom_call.1} parent=1 // pred_region
      _
    $region73: #{tpu_custom_call.1} parent=1 // pred_fallthru
      _
    // Predicated region
    $region74: #{tpu_custom_call.1} parent=1 // pred_check
      _
    $region75: #{tpu_custom_call.1} parent=1 // pred_check_branch
      %174 = sbr.rel (0) target = $region77
    $region76: #{tpu_custom_call.1} parent=1 // pred_region
      _
    $region77: #{tpu_custom_call.1} parent=1 // pred_fallthru
      _
    // Predicated region
    $region78: #{tpu_custom_call.1} parent=1 // pred_check
      _
    $region79: #{tpu_custom_call.1} parent=1 // pred_check_branch
      %176 = sbr.rel (0) target = $region81
    $region80: #{tpu_custom_call.1} parent=1 // pred_region
      _
    $region81: #{tpu_custom_call.1} parent=1 // pred_fallthru
      _
    // Predicated region
    $region82: #{tpu_custom_call.1} parent=1 // pred_check
      _
    $region83: #{tpu_custom_call.1} parent=1 // pred_check_branch
      %178 = sbr.rel (0) target = $region85
    $region84: #{tpu_custom_call.1} parent=1 // pred_region
      _
    $region85: #{tpu_custom_call.1} parent=1 // pred_fallthru
      _
    // Predicated region
    $region86: #{tpu_custom_call.1} parent=1 // pred_check
      _
    $region87: #{tpu_custom_call.1} parent=1 // pred_check_branch
      %180 = sbr.rel (0) target = $region89
    $region88: #{tpu_custom_call.1} parent=1 // pred_region
      %181 = dma.done [#allocation3], 16
    $region89: #{tpu_custom_call.1} parent=1 // pred_fallthru
      _
    // Predicated region
    $region90: #{tpu_custom_call.1} parent=1 // pred_check
      _
    $region91: #{tpu_custom_call.1} parent=1 // pred_check_branch
      %183 = sbr.rel (0) target = $region93
    $region92: #{tpu_custom_call.1} parent=1 // pred_region
      %184 = dma.done [#allocation6], 16
    $region93: #{tpu_custom_call.1} parent=1 // pred_fallthru
      _
    // Predicated region
    $region94: #{tpu_custom_call.1} parent=1 // pred_check
      _
    $region95: #{tpu_custom_call.1} parent=1 // pred_check_branch
      %186 = sbr.rel (0) target = $region97
    $region96: #{tpu_custom_call.1} parent=1 // pred_region
      %187 = dma.done [#allocation6], 16
    $region97: #{tpu_custom_call.1} parent=1 // pred_fallthru
      _
    // Predicated region
    $region98: #{tpu_custom_call.1} parent=1 // pred_check
      _
    $region99: #{tpu_custom_call.1} parent=1 // pred_check_branch
      %189 = sbr.rel (0) target = $region101
    $region100: #{tpu_custom_call.1} parent=1 // pred_region
      %190 = dma.done [#allocation9], 1024
    $region101: #{tpu_custom_call.1} parent=1 // pred_fallthru
      _
    // Predicated region
    $region102: #{tpu_custom_call.1} parent=1 // pred_check
      _
    $region103: #{tpu_custom_call.1} parent=1 // pred_check_branch
      %192 = sbr.rel (0) target = $region105
    $region104: #{tpu_custom_call.1} parent=1 // pred_region
      %193 = dma.done [#allocation9], 32
    $region105: #{tpu_custom_call.1} parent=1 // pred_fallthru
      _
    // Predicated region
    $region106: #{tpu_custom_call.1} parent=1 // pred_check
      _
    $region107: #{tpu_custom_call.1} parent=1 // pred_check_branch
      %195 = sbr.rel (0) target = $region109
    $region108: #{tpu_custom_call.1} parent=1 // pred_region
      %196 = dma.done [#allocation12], 32
    $region109: #{tpu_custom_call.1} parent=1 // pred_fallthru
      _
    // Predicated region
    $region110: #{tpu_custom_call.1} parent=1 // pred_check
      _
    $region111: #{tpu_custom_call.1} parent=1 // pred_check_branch
      %198 = sbr.rel (0) target = $region113
    $region112: #{tpu_custom_call.1} parent=1 // pred_region
      %199 = dma.done [#allocation12], 1024
    $region113: #{tpu_custom_call.1} parent=1 // pred_fallthru
      _
    // Predicated region
    $region114: #{tpu_custom_call.1} parent=1 // pred_check
      _
    $region115: #{tpu_custom_call.1} parent=1 // pred_check_branch
      %201 = sbr.rel (0) target = $region117
    $region116: #{tpu_custom_call.1} parent=1 // pred_region
      %202 = dma.done [#allocation15], 32
    $region117: #{tpu_custom_call.1} parent=1 // pred_fallthru
      _
    // Predicated region
    $region118: #{tpu_custom_call.1} parent=1 // pred_check
      _
    $region119: #{tpu_custom_call.1} parent=1 // pred_check_branch
      %204 = sbr.rel (0) target = $region121
    $region120: #{tpu_custom_call.1} parent=1 // pred_region
      %205 = dma.done [#allocation15], 32
    $region121: #{tpu_custom_call.1} parent=1 // pred_fallthru
      _
    // Predicated region
    $region122: #{tpu_custom_call.1} parent=1 // pred_check
      _
    $region123: #{tpu_custom_call.1} parent=1 // pred_check_branch
      %207 = sbr.rel (0) target = $region125
    $region124: #{tpu_custom_call.1} parent=1 // pred_region
      %208 = dma.done [#allocation18], 32
    $region125: #{tpu_custom_call.1} parent=1 // pred_fallthru
      _
    // Predicated region
    $region126: #{tpu_custom_call.1} parent=1 // pred_check
      _
    $region127: #{tpu_custom_call.1} parent=1 // pred_check_branch
      %210 = sbr.rel (0) target = $region129
    $region128: #{tpu_custom_call.1} parent=1 // pred_region
      %211 = dma.done [#allocation18], 32
    $region129: #{tpu_custom_call.1} parent=1 // pred_fallthru
      _
    %v212 = vld [vmem:[%s0] sm:$0xff]
    %v213 = vld [vmem:[%s0 + $0x8] sm:$0xff]
    %v214 = vld [vmem:[#allocation2] sm:$0x1]
    %v216 = vlaneseq
    %v217 = vshrl.u32 %v216, 7
    %v218 = vsub.s32 0, %v217
    %v219 = vrot.slane %v214, %v218
    %v221 = vadd.f32 %v212, %v219
    %v222 = vadd.f32 %v213, %v219
    %v223 = vld [vmem:[#allocation5] sm:$0x1]
    %v225 = vlaneseq
    %v226 = vshrl.u32 %v225, 7
    %v227 = vsub.s32 0, %v226
    %v228 = vrot.slane %v223, %v227
    %v230 = vmul.f32 %v221, %v228
    %v231 = vmul.f32 %v222, %v228
    %v232 = vld [vmem:[%s3] sm:$0xf]
    %v233 = vld [vmem:[#allocation7] sm:$0x1]
    %v235 = vlaneseq
    %v236 = vshrl.u32 %v235, 7
    %v237 = vsub.s32 0, %v236
    %v238 = vrot.slane %v233, %v237
    %vm240 = vcmask 31744
    %v242 = vsel %vm240, %v230, 0
    %v245 = vsel %vm240, %v231, 0
    %vm247 = vcmask 1043456
    %v249 = vsel %vm247, %v232, 0
    %251 = vmatprep.subr.mxu0 0.0
    %252 = vmatpush1.msra.mxu0 %v249
    %253 = vmatprep.subr.mxu0 0.0
    %254 = vmatpush1.msra.mxu0 0.0
    %255 = vmatprep.subr.mxu0 0.0
    %256 = vmatpush1.msra.mxu0 0.0
    %257 = vmatprep.subr.mxu0 0.0
    %258 = vmatpush1.msra.mxu0 0.0
    %259 = vmatprep.subr.mxu0 0.0
    %260 = vmatpush1.msra.mxu0 0.0
    %261 = vmatprep.subr.mxu0 0.0
    %262 = vmatpush1.msra.mxu0 0.0
    %263 = vmatprep.subr.mxu0 0.0
    %264 = vmatpush1.msra.mxu0 0.0
    %265 = vmatprep.subr.mxu0 0.0
    %266 = vmatpush1.msra.mxu0 0.0
    %267 = vmatprep.subr.mxu0 0.0
    %268 = vmatpush1.msra.mxu0 0.0
    %269 = vmatprep.subr.mxu0 0.0
    %270 = vmatpush1.msra.mxu0 0.0
    %271 = vmatprep.subr.mxu0 0.0
    %272 = vmatpush1.msra.mxu0 0.0
    %273 = vmatprep.subr.mxu0 0.0
    %274 = vmatpush1.msra.mxu0 0.0
    %275 = vmatprep.subr.mxu0 0.0
    %276 = vmatpush1.msra.mxu0 0.0
    %277 = vmatprep.subr.mxu0 0.0
    %278 = vmatpush1.msra.mxu0 0.0
    %279 = vmatprep.subr.mxu0 0.0
    %280 = vmatpush1.msra.mxu0 0.0
    %281 = vmatprep.subr.mxu0 0.0
    %282 = vmatpush1.msra.mxu0 0.0
    %283 = vmatprep.subr.mxu0 0.0
    %284 = vmatpush1.msra.mxu0 0.0
    %285 = vmatprep.subr.mxu0 0.0
    %286 = vmatpush1.msra.mxu0 0.0
    %287 = vmatprep.subr.mxu0 0.0
    %288 = vmatpush1.msra.mxu0 0.0
    %289 = vmatprep.subr.mxu0 0.0
    %290 = vmatpush1.msra.mxu0 0.0
    %291 = vmatprep.subr.mxu0 0.0
    %292 = vmatpush1.msra.mxu0 0.0
    %293 = vmatprep.subr.mxu0 0.0
    %294 = vmatpush1.msra.mxu0 0.0
    %295 = vmatprep.subr.mxu0 0.0
    %296 = vmatpush1.msra.mxu0 0.0
    %297 = vmatprep.subr.mxu0 0.0
    %298 = vmatpush1.msra.mxu0 0.0
    %299 = vmatprep.subr.mxu0 0.0
    %300 = vmatpush1.msra.mxu0 0.0
    %301 = vmatprep.subr.mxu0 0.0
    %302 = vmatpush1.msra.mxu0 0.0
    %303 = vmatprep.subr.mxu0 0.0
    %304 = vmatpush1.msra.mxu0 0.0
    %305 = vmatprep.subr.mxu0 0.0
    %306 = vmatpush1.msra.mxu0 0.0
    %307 = vmatprep.subr.mxu0 0.0
    %308 = vmatpush1.msra.mxu0 0.0
    %309 = vmatprep.subr.mxu0 0.0
    %310 = vmatpush1.msra.mxu0 0.0
    %311 = vmatprep.subr.mxu0 0.0
    %312 = vmatpush1.msra.mxu0 0.0
    %313 = vmatprep.subr.mxu0 0.0
    %314 = vmatpush1.msra.mxu0 0.0
    %315 = vmatprep.mubr.f32.mxu0 0.0
    %316 = vmatmul.mubr.f32.gmra.mrb[0].mxu0 %v242
    %v317 = vpop.f32.mrb[0].mxu0
    %v318 = vadd.f32 %v238, %v317
    %v319 = vpop.f32.mrb[0].mxu0
    %320 = vmatprep.mubr.f32.mxu0 0.0
    %321 = vmatmul.mubr.f32.gmra.mrb[0].mxu0 %v245
    %v322 = vpop.f32.mrb[0].mxu0
    %v323 = vadd.f32 %v238, %v322
    %v324 = vpop.f32.mrb[0].mxu0
    %325 = vdwg.mxu0
    %v326 = vld [vmem:[%s5] sm:$0xff]
    %v327 = vld [vmem:[%s5 + $0x8] sm:$0xff]
    %v328 = vld [vmem:[%s5 + $0x10] sm:$0xff]
    %v329 = vld [vmem:[%s5 + $0x18] sm:$0xff]
    %v330 = vld [vmem:[%s6] sm:$0x1]
    %v332 = vlaneseq
    %v333 = vshrl.u32 %v332, 7
    %v334 = vsub.s32 0, %v333
    %v335 = vrot.slane %v330, %v334
    %vm337 = vcmask 261120
    %v339 = vsel %vm337, %v318, 0
    %v342 = vsel %vm337, %v323, 0
    %344 = vmatprep.subr.mxu0 0.0
    %345 = vmatpush1.msra.mxu0 %v326
    %346 = vmatprep.subr.mxu0 0.0
    %347 = vmatpush1.msra.mxu0 %v327
    %348 = vmatprep.subr.mxu0 0.0
    %349 = vmatpush1.msra.mxu0 %v328
    %350 = vmatprep.subr.mxu0 0.0
    %351 = vmatpush1.msra.mxu0 %v329
    %352 = vmatprep.subr.mxu0 0.0
    %353 = vmatpush1.msra.mxu0 0.0
    %354 = vmatprep.subr.mxu0 0.0
    %355 = vmatpush1.msra.mxu0 0.0
    %356 = vmatprep.subr.mxu0 0.0
    %357 = vmatpush1.msra.mxu0 0.0
    %358 = vmatprep.subr.mxu0 0.0
    %359 = vmatpush1.msra.mxu0 0.0
    %360 = vmatprep.subr.mxu0 0.0
    %361 = vmatpush1.msra.mxu0 0.0
    %362 = vmatprep.subr.mxu0 0.0
    %363 = vmatpush1.msra.mxu0 0.0
    %364 = vmatprep.subr.mxu0 0.0
    %365 = vmatpush1.msra.mxu0 0.0
    %366 = vmatprep.subr.mxu0 0.0
    %367 = vmatpush1.msra.mxu0 0.0
    %368 = vmatprep.subr.mxu0 0.0
    %369 = vmatpush1.msra.mxu0 0.0
    %370 = vmatprep.subr.mxu0 0.0
    %371 = vmatpush1.msra.mxu0 0.0
    %372 = vmatprep.subr.mxu0 0.0
    %373 = vmatpush1.msra.mxu0 0.0
    %374 = vmatprep.subr.mxu0 0.0
    %375 = vmatpush1.msra.mxu0 0.0
    %376 = vmatprep.subr.mxu0 0.0
    %377 = vmatpush1.msra.mxu0 0.0
    %378 = vmatprep.subr.mxu0 0.0
    %379 = vmatpush1.msra.mxu0 0.0
    %380 = vmatprep.subr.mxu0 0.0
    %381 = vmatpush1.msra.mxu0 0.0
    %382 = vmatprep.subr.mxu0 0.0
    %383 = vmatpush1.msra.mxu0 0.0
    %384 = vmatprep.subr.mxu0 0.0
    %385 = vmatpush1.msra.mxu0 0.0
    %386 = vmatprep.subr.mxu0 0.0
    %387 = vmatpush1.msra.mxu0 0.0
    %388 = vmatprep.subr.mxu0 0.0
    %389 = vmatpush1.msra.mxu0 0.0
    %390 = vmatprep.subr.mxu0 0.0
    %391 = vmatpush1.msra.mxu0 0.0
    %392 = vmatprep.subr.mxu0 0.0
    %393 = vmatpush1.msra.mxu0 0.0
    %394 = vmatprep.subr.mxu0 0.0
    %395 = vmatpush1.msra.mxu0 0.0
    %396 = vmatprep.subr.mxu0 0.0
    %397 = vmatpush1.msra.mxu0 0.0
    %398 = vmatprep.subr.mxu0 0.0
    %399 = vmatpush1.msra.mxu0 0.0
    %400 = vmatprep.subr.mxu0 0.0
    %401 = vmatpush1.msra.mxu0 0.0
    %402 = vmatprep.subr.mxu0 0.0
    %403 = vmatpush1.msra.mxu0 0.0
    %404 = vmatprep.subr.mxu0 0.0
    %405 = vmatpush1.msra.mxu0 0.0
    %406 = vmatprep.subr.mxu0 0.0
    %407 = vmatpush1.msra.mxu0 0.0
    %408 = vmatprep.mubr.f32.mxu0 0.0
    %409 = vmatmul.mubr.f32.gmra.mrb[0].mxu0 %v339
    %v410 = vpop.f32.mrb[0].mxu0
    %v411 = vadd.f32 %v335, %v410
    %v412 = vpop.f32.mrb[0].mxu0
    %413 = vmatprep.mubr.f32.mxu0 0.0
    %414 = vmatmul.mubr.f32.gmra.mrb[0].mxu0 %v342
    %v415 = vpop.f32.mrb[0].mxu0
    %v416 = vadd.f32 %v335, %v415
    %v417 = vpop.f32.mrb[0].mxu0
    %418 = vdwg.mxu0
    %v419 = vld [vmem:[#allocation8] sm:$0xff]
    %v420 = vld [vmem:[#allocation8 + $0x8] sm:$0xff]
    %v421 = vld [vmem:[#allocation8 + $0x10] sm:$0xff]
    %v422 = vld [vmem:[#allocation8 + $0x18] sm:$0xff]
    %424 = vrot.lane.b32.xlu0 %v411, 96
    %v425 = vpop.permute.xlu0 %424
    %vm426 = vcmask 64512
    %v427 = vsel %vm426, %v411, 0
    %v429 = vsel %vm426, %v425, 0
    %431 = vmatprep.subr.mxu0 0.0
    %432 = vmatpush1.xpose.msra.mxu0 %v429
    %433 = vmatprep.subr.mxu0 0.0
    %434 = vmatpush1.xpose.msra.mxu0 0.0
    %435 = vmatprep.subr.mxu0 0.0
    %436 = vmatpush1.xpose.msra.mxu0 0.0
    %437 = vmatprep.subr.mxu0 0.0
    %438 = vmatpush1.xpose.msra.mxu0 0.0
    %439 = vmatprep.subr.mxu0 0.0
    %440 = vmatpush1.xpose.msra.mxu0 0.0
    %441 = vmatprep.subr.mxu0 0.0
    %442 = vmatpush1.xpose.msra.mxu0 0.0
    %443 = vmatprep.subr.mxu0 0.0
    %444 = vmatpush1.xpose.msra.mxu0 0.0
    %445 = vmatprep.subr.mxu0 0.0
    %446 = vmatpush1.xpose.msra.mxu0 0.0
    %447 = vmatprep.subr.mxu0 0.0
    %448 = vmatpush1.xpose.msra.mxu0 0.0
    %449 = vmatprep.subr.mxu0 0.0
    %450 = vmatpush1.xpose.msra.mxu0 0.0
    %451 = vmatprep.subr.mxu0 0.0
    %452 = vmatpush1.xpose.msra.mxu0 0.0
    %453 = vmatprep.subr.mxu0 0.0
    %454 = vmatpush1.xpose.msra.mxu0 0.0
    %455 = vmatprep.subr.mxu0 0.0
    %456 = vmatpush1.xpose.msra.mxu0 0.0
    %457 = vmatprep.subr.mxu0 0.0
    %458 = vmatpush1.xpose.msra.mxu0 0.0
    %459 = vmatprep.subr.mxu0 0.0
    %460 = vmatpush1.xpose.msra.mxu0 0.0
    %461 = vmatprep.subr.mxu0 0.0
    %462 = vmatpush1.xpose.msra.mxu0 0.0
    %463 = vmatprep.subr.mxu0 0.0
    %464 = vmatpush1.xpose.msra.mxu0 0.0
    %465 = vmatprep.subr.mxu0 0.0
    %466 = vmatpush1.xpose.msra.mxu0 0.0
    %467 = vmatprep.subr.mxu0 0.0
    %468 = vmatpush1.xpose.msra.mxu0 0.0
    %469 = vmatprep.subr.mxu0 0.0
    %470 = vmatpush1.xpose.msra.mxu0 0.0
    %471 = vmatprep.subr.mxu0 0.0
    %472 = vmatpush1.xpose.msra.mxu0 0.0
    %473 = vmatprep.subr.mxu0 0.0
    %474 = vmatpush1.xpose.msra.mxu0 0.0
    %475 = vmatprep.subr.mxu0 0.0
    %476 = vmatpush1.xpose.msra.mxu0 0.0
    %477 = vmatprep.subr.mxu0 0.0
    %478 = vmatpush1.xpose.msra.mxu0 0.0
    %479 = vmatprep.subr.mxu0 0.0
    %480 = vmatpush1.xpose.msra.mxu0 0.0
    %481 = vmatprep.subr.mxu0 0.0
    %482 = vmatpush1.xpose.msra.mxu0 0.0
    %483 = vmatprep.subr.mxu0 0.0
    %484 = vmatpush1.xpose.msra.mxu0 0.0
    %485 = vmatprep.subr.mxu0 0.0
    %486 = vmatpush1.xpose.msra.mxu0 0.0
    %487 = vmatprep.subr.mxu0 0.0
    %488 = vmatpush1.xpose.msra.mxu0 0.0
    %489 = vmatprep.subr.mxu0 0.0
    %490 = vmatpush1.xpose.msra.mxu0 0.0
    %491 = vmatprep.subr.mxu0 0.0
    %492 = vmatpush1.xpose.msra.mxu0 0.0
    %493 = vmatprep.subr.mxu0 0.0
    %494 = vmatpush1.xpose.msra.mxu0 0.0
    %495 = vmatprep.mubr.f32.mxu0 0.0
    %496 = vmatmul.mubr.f32.gmra.mrb[0].mxu0 %v427
    %v497 = vpop.f32.mrb[0].mxu0
    %v498 = vadd.f32 0.0, %v497
    %v499 = vpop.f32.mrb[0].mxu0
    %500 = vdwg.mxu0
    %502 = vrot.lane.b32.xlu0 %v416, 96
    %v503 = vpop.permute.xlu0 %502
    %v504 = vsel %vm426, %v416, 0
    %v506 = vsel %vm426, %v503, 0
    %508 = vmatprep.subr.mxu0 0.0
    %509 = vmatpush1.xpose.msra.mxu0 %v506
    %510 = vmatprep.subr.mxu0 0.0
    %511 = vmatpush1.xpose.msra.mxu0 0.0
    %512 = vmatprep.subr.mxu0 0.0
    %513 = vmatpush1.xpose.msra.mxu0 0.0
    %514 = vmatprep.subr.mxu0 0.0
    %515 = vmatpush1.xpose.msra.mxu0 0.0
    %516 = vmatprep.subr.mxu0 0.0
    %517 = vmatpush1.xpose.msra.mxu0 0.0
    %518 = vmatprep.subr.mxu0 0.0
    %519 = vmatpush1.xpose.msra.mxu0 0.0
    %520 = vmatprep.subr.mxu0 0.0
    %521 = vmatpush1.xpose.msra.mxu0 0.0
    %522 = vmatprep.subr.mxu0 0.0
    %523 = vmatpush1.xpose.msra.mxu0 0.0
    %524 = vmatprep.subr.mxu0 0.0
    %525 = vmatpush1.xpose.msra.mxu0 0.0
    %526 = vmatprep.subr.mxu0 0.0
    %527 = vmatpush1.xpose.msra.mxu0 0.0
    %528 = vmatprep.subr.mxu0 0.0
    %529 = vmatpush1.xpose.msra.mxu0 0.0
    %530 = vmatprep.subr.mxu0 0.0
    %531 = vmatpush1.xpose.msra.mxu0 0.0
    %532 = vmatprep.subr.mxu0 0.0
    %533 = vmatpush1.xpose.msra.mxu0 0.0
    %534 = vmatprep.subr.mxu0 0.0
    %535 = vmatpush1.xpose.msra.mxu0 0.0
    %536 = vmatprep.subr.mxu0 0.0
    %537 = vmatpush1.xpose.msra.mxu0 0.0
    %538 = vmatprep.subr.mxu0 0.0
    %539 = vmatpush1.xpose.msra.mxu0 0.0
    %540 = vmatprep.subr.mxu0 0.0
    %541 = vmatpush1.xpose.msra.mxu0 0.0
    %542 = vmatprep.subr.mxu0 0.0
    %543 = vmatpush1.xpose.msra.mxu0 0.0
    %544 = vmatprep.subr.mxu0 0.0
    %545 = vmatpush1.xpose.msra.mxu0 0.0
    %546 = vmatprep.subr.mxu0 0.0
    %547 = vmatpush1.xpose.msra.mxu0 0.0
    %548 = vmatprep.subr.mxu0 0.0
    %549 = vmatpush1.xpose.msra.mxu0 0.0
    %550 = vmatprep.subr.mxu0 0.0
    %551 = vmatpush1.xpose.msra.mxu0 0.0
    %552 = vmatprep.subr.mxu0 0.0
    %553 = vmatpush1.xpose.msra.mxu0 0.0
    %554 = vmatprep.subr.mxu0 0.0
    %555 = vmatpush1.xpose.msra.mxu0 0.0
    %556 = vmatprep.subr.mxu0 0.0
    %557 = vmatpush1.xpose.msra.mxu0 0.0
    %558 = vmatprep.subr.mxu0 0.0
    %559 = vmatpush1.xpose.msra.mxu0 0.0
    %560 = vmatprep.subr.mxu0 0.0
    %561 = vmatpush1.xpose.msra.mxu0 0.0
    %562 = vmatprep.subr.mxu0 0.0
    %563 = vmatpush1.xpose.msra.mxu0 0.0
    %564 = vmatprep.subr.mxu0 0.0
    %565 = vmatpush1.xpose.msra.mxu0 0.0
    %566 = vmatprep.subr.mxu0 0.0
    %567 = vmatpush1.xpose.msra.mxu0 0.0
    %568 = vmatprep.subr.mxu0 0.0
    %569 = vmatpush1.xpose.msra.mxu0 0.0
    %570 = vmatprep.subr.mxu0 0.0
    %571 = vmatpush1.xpose.msra.mxu0 0.0
    %572 = vmatprep.mubr.f32.mxu0 0.0
    %573 = vmatmul.mubr.f32.gmra.mrb[0].mxu0 %v504
    %v574 = vpop.f32.mrb[0].mxu0
    %v575 = vadd.f32 0.0, %v574
    %v576 = vpop.f32.mrb[0].mxu0
    %577 = vdwg.mxu0
    %v578 = vsel %vm426, %v498, -inf
    %579 = vmax.xlane.f32.xlu0 %v578
    %v580 = vpop.xlane.xlu0 %579
    %v581 = vsel %vm426, %v575, -inf
    %582 = vmax.xlane.f32.xlu0 %v581
    %v583 = vpop.xlane.xlu0 %582
    %v584 = vsub.f32 %v498, %v580
    %v585 = vsub.f32 %v575, %v583
    %v586 = vmul.f32 %v584, 1.442695
    %v587 = vpow.pop %v586
    %v588 = vmul.f32 %v585, 1.442695
    %v589 = vpow.pop %v588
    %v590 = vsel %vm426, %v587, 0.0
    %591 = vadd.xlane.f32.xlu0 %v590
    %v592 = vpop.xlane.xlu0 %591
    %v593 = vsel %vm426, %v589, 0.0
    %594 = vadd.xlane.f32.xlu0 %v593
    %v595 = vpop.xlane.xlu0 %594
    %v596 = vrcp.pop %v592
    %v597 = vrcp.pop %v595
    %v598 = vmul.f32 %v587, %v596
    %v599 = vmul.f32 %v589, %v597
    %600 = vrot.lane.b32.xlu0 %v411, 64
    %v601 = vpop.permute.xlu0 %600
    %v604 = vsel %vm426, %v598, 0
    %606 = vmatprep.subr.mxu0 0.0
    %607 = vmatpush1.msra.mxu0 %v601
    %608 = vmatprep.subr.mxu0 0.0
    %609 = vmatpush1.msra.mxu0 0.0
    %610 = vmatprep.subr.mxu0 0.0
    %611 = vmatpush1.msra.mxu0 0.0
    %612 = vmatprep.subr.mxu0 0.0
    %613 = vmatpush1.msra.mxu0 0.0
    %614 = vmatprep.subr.mxu0 0.0
    %615 = vmatpush1.msra.mxu0 0.0
    %616 = vmatprep.subr.mxu0 0.0
    %617 = vmatpush1.msra.mxu0 0.0
    %618 = vmatprep.subr.mxu0 0.0
    %619 = vmatpush1.msra.mxu0 0.0
    %620 = vmatprep.subr.mxu0 0.0
    %621 = vmatpush1.msra.mxu0 0.0
    %622 = vmatprep.subr.mxu0 0.0
    %623 = vmatpush1.msra.mxu0 0.0
    %624 = vmatprep.subr.mxu0 0.0
    %625 = vmatpush1.msra.mxu0 0.0
    %626 = vmatprep.subr.mxu0 0.0
    %627 = vmatpush1.msra.mxu0 0.0
    %628 = vmatprep.subr.mxu0 0.0
    %629 = vmatpush1.msra.mxu0 0.0
    %630 = vmatprep.subr.mxu0 0.0
    %631 = vmatpush1.msra.mxu0 0.0
    %632 = vmatprep.subr.mxu0 0.0
    %633 = vmatpush1.msra.mxu0 0.0
    %634 = vmatprep.subr.mxu0 0.0
    %635 = vmatpush1.msra.mxu0 0.0
    %636 = vmatprep.subr.mxu0 0.0
    %637 = vmatpush1.msra.mxu0 0.0
    %638 = vmatprep.subr.mxu0 0.0
    %639 = vmatpush1.msra.mxu0 0.0
    %640 = vmatprep.subr.mxu0 0.0
    %641 = vmatpush1.msra.mxu0 0.0
    %642 = vmatprep.subr.mxu0 0.0
    %643 = vmatpush1.msra.mxu0 0.0
    %644 = vmatprep.subr.mxu0 0.0
    %645 = vmatpush1.msra.mxu0 0.0
    %646 = vmatprep.subr.mxu0 0.0
    %647 = vmatpush1.msra.mxu0 0.0
    %648 = vmatprep.subr.mxu0 0.0
    %649 = vmatpush1.msra.mxu0 0.0
    %650 = vmatprep.subr.mxu0 0.0
    %651 = vmatpush1.msra.mxu0 0.0
    %652 = vmatprep.subr.mxu0 0.0
    %653 = vmatpush1.msra.mxu0 0.0
    %654 = vmatprep.subr.mxu0 0.0
    %655 = vmatpush1.msra.mxu0 0.0
    %656 = vmatprep.subr.mxu0 0.0
    %657 = vmatpush1.msra.mxu0 0.0
    %658 = vmatprep.subr.mxu0 0.0
    %659 = vmatpush1.msra.mxu0 0.0
    %660 = vmatprep.subr.mxu0 0.0
    %661 = vmatpush1.msra.mxu0 0.0
    %662 = vmatprep.subr.mxu0 0.0
    %663 = vmatpush1.msra.mxu0 0.0
    %664 = vmatprep.subr.mxu0 0.0
    %665 = vmatpush1.msra.mxu0 0.0
    %666 = vmatprep.subr.mxu0 0.0
    %667 = vmatpush1.msra.mxu0 0.0
    %668 = vmatprep.subr.mxu0 0.0
    %669 = vmatpush1.msra.mxu0 0.0
    %670 = vmatprep.mubr.f32.mxu0 0.0
    %671 = vmatmul.mubr.f32.gmra.mrb[0].mxu0 %v604
    %v672 = vpop.f32.mrb[0].mxu0
    %v673 = vadd.f32 0.0, %v672
    %v674 = vpop.f32.mrb[0].mxu0
    %675 = vdwg.mxu0
    %676 = vrot.lane.b32.xlu0 %v416, 64
    %v677 = vpop.permute.xlu0 %676
    %v680 = vsel %vm426, %v599, 0
    %682 = vmatprep.subr.mxu0 0.0
    %683 = vmatpush1.msra.mxu0 %v677
    %684 = vmatprep.subr.mxu0 0.0
    %685 = vmatpush1.msra.mxu0 0.0
    %686 = vmatprep.subr.mxu0 0.0
    %687 = vmatpush1.msra.mxu0 0.0
    %688 = vmatprep.subr.mxu0 0.0
    %689 = vmatpush1.msra.mxu0 0.0
    %690 = vmatprep.subr.mxu0 0.0
    %691 = vmatpush1.msra.mxu0 0.0
    %692 = vmatprep.subr.mxu0 0.0
    %693 = vmatpush1.msra.mxu0 0.0
    %694 = vmatprep.subr.mxu0 0.0
    %695 = vmatpush1.msra.mxu0 0.0
    %696 = vmatprep.subr.mxu0 0.0
    %697 = vmatpush1.msra.mxu0 0.0
    %698 = vmatprep.subr.mxu0 0.0
    %699 = vmatpush1.msra.mxu0 0.0
    %700 = vmatprep.subr.mxu0 0.0
    %701 = vmatpush1.msra.mxu0 0.0
    %702 = vmatprep.subr.mxu0 0.0
    %703 = vmatpush1.msra.mxu0 0.0
    %704 = vmatprep.subr.mxu0 0.0
    %705 = vmatpush1.msra.mxu0 0.0
    %706 = vmatprep.subr.mxu0 0.0
    %707 = vmatpush1.msra.mxu0 0.0
    %708 = vmatprep.subr.mxu0 0.0
    %709 = vmatpush1.msra.mxu0 0.0
    %710 = vmatprep.subr.mxu0 0.0
    %711 = vmatpush1.msra.mxu0 0.0
    %712 = vmatprep.subr.mxu0 0.0
    %713 = vmatpush1.msra.mxu0 0.0
    %714 = vmatprep.subr.mxu0 0.0
    %715 = vmatpush1.msra.mxu0 0.0
    %716 = vmatprep.subr.mxu0 0.0
    %717 = vmatpush1.msra.mxu0 0.0
    %718 = vmatprep.subr.mxu0 0.0
    %719 = vmatpush1.msra.mxu0 0.0
    %720 = vmatprep.subr.mxu0 0.0
    %721 = vmatpush1.msra.mxu0 0.0
    %722 = vmatprep.subr.mxu0 0.0
    %723 = vmatpush1.msra.mxu0 0.0
    %724 = vmatprep.subr.mxu0 0.0
    %725 = vmatpush1.msra.mxu0 0.0
    %726 = vmatprep.subr.mxu0 0.0
    %727 = vmatpush1.msra.mxu0 0.0
    %728 = vmatprep.subr.mxu0 0.0
    %729 = vmatpush1.msra.mxu0 0.0
    %730 = vmatprep.subr.mxu0 0.0
    %731 = vmatpush1.msra.mxu0 0.0
    %732 = vmatprep.subr.mxu0 0.0
    %733 = vmatpush1.msra.mxu0 0.0
    %734 = vmatprep.subr.mxu0 0.0
    %735 = vmatpush1.msra.mxu0 0.0
    %736 = vmatprep.subr.mxu0 0.0
    %737 = vmatpush1.msra.mxu0 0.0
    %738 = vmatprep.subr.mxu0 0.0
    %739 = vmatpush1.msra.mxu0 0.0
    %740 = vmatprep.subr.mxu0 0.0
    %741 = vmatpush1.msra.mxu0 0.0
    %742 = vmatprep.subr.mxu0 0.0
    %743 = vmatpush1.msra.mxu0 0.0
    %744 = vmatprep.subr.mxu0 0.0
    %745 = vmatpush1.msra.mxu0 0.0
    %746 = vmatprep.mubr.f32.mxu0 0.0
    %747 = vmatmul.mubr.f32.gmra.mrb[0].mxu0 %v680
    %v748 = vpop.f32.mrb[0].mxu0
    %v749 = vadd.f32 0.0, %v748
    %v750 = vpop.f32.mrb[0].mxu0
    %751 = vdwg.mxu0
    %752 = vrot.lane.b32.xlu0 %v411, 120
    %v753 = vpop.permute.xlu0 %752
    %754 = vrot.lane.b32.xlu0 %v411, 88
    %v755 = vpop.permute.xlu0 %754
    %v756 = vsel %vm426, %v753, 0
    %v758 = vsel %vm426, %v755, 0
    %760 = vmatprep.subr.mxu0 0.0
    %761 = vmatpush1.xpose.msra.mxu0 %v758
    %762 = vmatprep.subr.mxu0 0.0
    %763 = vmatpush1.xpose.msra.mxu0 0.0
    %764 = vmatprep.subr.mxu0 0.0
    %765 = vmatpush1.xpose.msra.mxu0 0.0
    %766 = vmatprep.subr.mxu0 0.0
    %767 = vmatpush1.xpose.msra.mxu0 0.0
    %768 = vmatprep.subr.mxu0 0.0
    %769 = vmatpush1.xpose.msra.mxu0 0.0
    %770 = vmatprep.subr.mxu0 0.0
    %771 = vmatpush1.xpose.msra.mxu0 0.0
    %772 = vmatprep.subr.mxu0 0.0
    %773 = vmatpush1.xpose.msra.mxu0 0.0
    %774 = vmatprep.subr.mxu0 0.0
    %775 = vmatpush1.xpose.msra.mxu0 0.0
    %776 = vmatprep.subr.mxu0 0.0
    %777 = vmatpush1.xpose.msra.mxu0 0.0
    %778 = vmatprep.subr.mxu0 0.0
    %779 = vmatpush1.xpose.msra.mxu0 0.0
    %780 = vmatprep.subr.mxu0 0.0
    %781 = vmatpush1.xpose.msra.mxu0 0.0
    %782 = vmatprep.subr.mxu0 0.0
    %783 = vmatpush1.xpose.msra.mxu0 0.0
    %784 = vmatprep.subr.mxu0 0.0
    %785 = vmatpush1.xpose.msra.mxu0 0.0
    %786 = vmatprep.subr.mxu0 0.0
    %787 = vmatpush1.xpose.msra.mxu0 0.0
    %788 = vmatprep.subr.mxu0 0.0
    %789 = vmatpush1.xpose.msra.mxu0 0.0
    %790 = vmatprep.subr.mxu0 0.0
    %791 = vmatpush1.xpose.msra.mxu0 0.0
    %792 = vmatprep.subr.mxu0 0.0
    %793 = vmatpush1.xpose.msra.mxu0 0.0
    %794 = vmatprep.subr.mxu0 0.0
    %795 = vmatpush1.xpose.msra.mxu0 0.0
    %796 = vmatprep.subr.mxu0 0.0
    %797 = vmatpush1.xpose.msra.mxu0 0.0
    %798 = vmatprep.subr.mxu0 0.0
    %799 = vmatpush1.xpose.msra.mxu0 0.0
    %800 = vmatprep.subr.mxu0 0.0
    %801 = vmatpush1.xpose.msra.mxu0 0.0
    %802 = vmatprep.subr.mxu0 0.0
    %803 = vmatpush1.xpose.msra.mxu0 0.0
    %804 = vmatprep.subr.mxu0 0.0
    %805 = vmatpush1.xpose.msra.mxu0 0.0
    %806 = vmatprep.subr.mxu0 0.0
    %807 = vmatpush1.xpose.msra.mxu0 0.0
    %808 = vmatprep.subr.mxu0 0.0
    %809 = vmatpush1.xpose.msra.mxu0 0.0
    %810 = vmatprep.subr.mxu0 0.0
    %811 = vmatpush1.xpose.msra.mxu0 0.0
    %812 = vmatprep.subr.mxu0 0.0
    %813 = vmatpush1.xpose.msra.mxu0 0.0
    %814 = vmatprep.subr.mxu0 0.0
    %815 = vmatpush1.xpose.msra.mxu0 0.0
    %816 = vmatprep.subr.mxu0 0.0
    %817 = vmatpush1.xpose.msra.mxu0 0.0
    %818 = vmatprep.subr.mxu0 0.0
    %819 = vmatpush1.xpose.msra.mxu0 0.0
    %820 = vmatprep.subr.mxu0 0.0
    %821 = vmatpush1.xpose.msra.mxu0 0.0
    %822 = vmatprep.subr.mxu0 0.0
    %823 = vmatpush1.xpose.msra.mxu0 0.0
    %824 = vmatprep.mubr.f32.mxu0 0.0
    %825 = vmatmul.mubr.f32.gmra.mrb[0].mxu0 %v756
    %v826 = vpop.f32.mrb[0].mxu0
    %v827 = vadd.f32 0.0, %v826
    %v828 = vpop.f32.mrb[0].mxu0
    %829 = vdwg.mxu0
    %830 = vrot.lane.b32.xlu0 %v416, 120
    %v831 = vpop.permute.xlu0 %830
    %832 = vrot.lane.b32.xlu0 %v416, 88
    %v833 = vpop.permute.xlu0 %832
    %v834 = vsel %vm426, %v831, 0
    %v836 = vsel %vm426, %v833, 0
    %838 = vmatprep.subr.mxu0 0.0
    %839 = vmatpush1.xpose.msra.mxu0 %v836
    %840 = vmatprep.subr.mxu0 0.0
    %841 = vmatpush1.xpose.msra.mxu0 0.0
    %842 = vmatprep.subr.mxu0 0.0
    %843 = vmatpush1.xpose.msra.mxu0 0.0
    %844 = vmatprep.subr.mxu0 0.0
    %845 = vmatpush1.xpose.msra.mxu0 0.0
    %846 = vmatprep.subr.mxu0 0.0
    %847 = vmatpush1.xpose.msra.mxu0 0.0
    %848 = vmatprep.subr.mxu0 0.0
    %849 = vmatpush1.xpose.msra.mxu0 0.0
    %850 = vmatprep.subr.mxu0 0.0
    %851 = vmatpush1.xpose.msra.mxu0 0.0
    %852 = vmatprep.subr.mxu0 0.0
    %853 = vmatpush1.xpose.msra.mxu0 0.0
    %854 = vmatprep.subr.mxu0 0.0
    %855 = vmatpush1.xpose.msra.mxu0 0.0
    %856 = vmatprep.subr.mxu0 0.0
    %857 = vmatpush1.xpose.msra.mxu0 0.0
    %858 = vmatprep.subr.mxu0 0.0
    %859 = vmatpush1.xpose.msra.mxu0 0.0
    %860 = vmatprep.subr.mxu0 0.0
    %861 = vmatpush1.xpose.msra.mxu0 0.0
    %862 = vmatprep.subr.mxu0 0.0
    %863 = vmatpush1.xpose.msra.mxu0 0.0
    %864 = vmatprep.subr.mxu0 0.0
    %865 = vmatpush1.xpose.msra.mxu0 0.0
    %866 = vmatprep.subr.mxu0 0.0
    %867 = vmatpush1.xpose.msra.mxu0 0.0
    %868 = vmatprep.subr.mxu0 0.0
    %869 = vmatpush1.xpose.msra.mxu0 0.0
    %870 = vmatprep.subr.mxu0 0.0
    %871 = vmatpush1.xpose.msra.mxu0 0.0
    %872 = vmatprep.subr.mxu0 0.0
    %873 = vmatpush1.xpose.msra.mxu0 0.0
    %874 = vmatprep.subr.mxu0 0.0
    %875 = vmatpush1.xpose.msra.mxu0 0.0
    %876 = vmatprep.subr.mxu0 0.0
    %877 = vmatpush1.xpose.msra.mxu0 0.0
    %878 = vmatprep.subr.mxu0 0.0
    %879 = vmatpush1.xpose.msra.mxu0 0.0
    %880 = vmatprep.subr.mxu0 0.0
    %881 = vmatpush1.xpose.msra.mxu0 0.0
    %882 = vmatprep.subr.mxu0 0.0
    %883 = vmatpush1.xpose.msra.mxu0 0.0
    %884 = vmatprep.subr.mxu0 0.0
    %885 = vmatpush1.xpose.msra.mxu0 0.0
    %886 = vmatprep.subr.mxu0 0.0
    %887 = vmatpush1.xpose.msra.mxu0 0.0
    %888 = vmatprep.subr.mxu0 0.0
    %889 = vmatpush1.xpose.msra.mxu0 0.0
    %890 = vmatprep.subr.mxu0 0.0
    %891 = vmatpush1.xpose.msra.mxu0 0.0
    %892 = vmatprep.subr.mxu0 0.0
    %893 = vmatpush1.xpose.msra.mxu0 0.0
    %894 = vmatprep.subr.mxu0 0.0
    %895 = vmatpush1.xpose.msra.mxu0 0.0
    %896 = vmatprep.subr.mxu0 0.0
    %897 = vmatpush1.xpose.msra.mxu0 0.0
    %898 = vmatprep.subr.mxu0 0.0
    %899 = vmatpush1.xpose.msra.mxu0 0.0
    %900 = vmatprep.subr.mxu0 0.0
    %901 = vmatpush1.xpose.msra.mxu0 0.0
    %902 = vmatprep.mubr.f32.mxu0 0.0
    %903 = vmatmul.mubr.f32.gmra.mrb[0].mxu0 %v834
    %v904 = vpop.f32.mrb[0].mxu0
    %v905 = vadd.f32 0.0, %v904
    %v906 = vpop.f32.mrb[0].mxu0
    %907 = vdwg.mxu0
    %v908 = vsel %vm426, %v827, -inf
    %909 = vmax.xlane.f32.xlu0 %v908
    %v910 = vpop.xlane.xlu0 %909
    %v911 = vsel %vm426, %v905, -inf
    %912 = vmax.xlane.f32.xlu0 %v911
    %v913 = vpop.xlane.xlu0 %912
    %v914 = vsub.f32 %v827, %v910
    %v915 = vsub.f32 %v905, %v913
    %v916 = vmul.f32 %v914, 1.442695
    %v917 = vpow.pop %v916
    %v918 = vmul.f32 %v915, 1.442695
    %v919 = vpow.pop %v918
    %v920 = vsel %vm426, %v917, 0.0
    %921 = vadd.xlane.f32.xlu0 %v920
    %v922 = vpop.xlane.xlu0 %921
    %v923 = vsel %vm426, %v919, 0.0
    %924 = vadd.xlane.f32.xlu0 %v923
    %v925 = vpop.xlane.xlu0 %924
    %v926 = vrcp.pop %v922
    %v927 = vrcp.pop %v925
    %v928 = vmul.f32 %v917, %v926
    %v929 = vmul.f32 %v919, %v927
    %930 = vrot.lane.b32.xlu0 %v411, 56
    %v931 = vpop.permute.xlu0 %930
    %v934 = vsel %vm426, %v928, 0
    %936 = vmatprep.subr.mxu0 0.0
    %937 = vmatpush1.msra.mxu0 %v931
    %938 = vmatprep.subr.mxu0 0.0
    %939 = vmatpush1.msra.mxu0 0.0
    %940 = vmatprep.subr.mxu0 0.0
    %941 = vmatpush1.msra.mxu0 0.0
    %942 = vmatprep.subr.mxu0 0.0
    %943 = vmatpush1.msra.mxu0 0.0
    %944 = vmatprep.subr.mxu0 0.0
    %945 = vmatpush1.msra.mxu0 0.0
    %946 = vmatprep.subr.mxu0 0.0
    %947 = vmatpush1.msra.mxu0 0.0
    %948 = vmatprep.subr.mxu0 0.0
    %949 = vmatpush1.msra.mxu0 0.0
    %950 = vmatprep.subr.mxu0 0.0
    %951 = vmatpush1.msra.mxu0 0.0
    %952 = vmatprep.subr.mxu0 0.0
    %953 = vmatpush1.msra.mxu0 0.0
    %954 = vmatprep.subr.mxu0 0.0
    %955 = vmatpush1.msra.mxu0 0.0
    %956 = vmatprep.subr.mxu0 0.0
    %957 = vmatpush1.msra.mxu0 0.0
    %958 = vmatprep.subr.mxu0 0.0
    %959 = vmatpush1.msra.mxu0 0.0
    %960 = vmatprep.subr.mxu0 0.0
    %961 = vmatpush1.msra.mxu0 0.0
    %962 = vmatprep.subr.mxu0 0.0
    %963 = vmatpush1.msra.mxu0 0.0
    %964 = vmatprep.subr.mxu0 0.0
    %965 = vmatpush1.msra.mxu0 0.0
    %966 = vmatprep.subr.mxu0 0.0
    %967 = vmatpush1.msra.mxu0 0.0
    %968 = vmatprep.subr.mxu0 0.0
    %969 = vmatpush1.msra.mxu0 0.0
    %970 = vmatprep.subr.mxu0 0.0
    %971 = vmatpush1.msra.mxu0 0.0
    %972 = vmatprep.subr.mxu0 0.0
    %973 = vmatpush1.msra.mxu0 0.0
    %974 = vmatprep.subr.mxu0 0.0
    %975 = vmatpush1.msra.mxu0 0.0
    %976 = vmatprep.subr.mxu0 0.0
    %977 = vmatpush1.msra.mxu0 0.0
    %978 = vmatprep.subr.mxu0 0.0
    %979 = vmatpush1.msra.mxu0 0.0
    %980 = vmatprep.subr.mxu0 0.0
    %981 = vmatpush1.msra.mxu0 0.0
    %982 = vmatprep.subr.mxu0 0.0
    %983 = vmatpush1.msra.mxu0 0.0
    %984 = vmatprep.subr.mxu0 0.0
    %985 = vmatpush1.msra.mxu0 0.0
    %986 = vmatprep.subr.mxu0 0.0
    %987 = vmatpush1.msra.mxu0 0.0
    %988 = vmatprep.subr.mxu0 0.0
    %989 = vmatpush1.msra.mxu0 0.0
    %990 = vmatprep.subr.mxu0 0.0
    %991 = vmatpush1.msra.mxu0 0.0
    %992 = vmatprep.subr.mxu0 0.0
    %993 = vmatpush1.msra.mxu0 0.0
    %994 = vmatprep.subr.mxu0 0.0
    %995 = vmatpush1.msra.mxu0 0.0
    %996 = vmatprep.subr.mxu0 0.0
    %997 = vmatpush1.msra.mxu0 0.0
    %998 = vmatprep.subr.mxu0 0.0
    %999 = vmatpush1.msra.mxu0 0.0
    %1000 = vmatprep.mubr.f32.mxu0 0.0
    %1001 = vmatmul.mubr.f32.gmra.mrb[0].mxu0 %v934
    %v1002 = vpop.f32.mrb[0].mxu0
    %v1003 = vadd.f32 0.0, %v1002
    %v1004 = vpop.f32.mrb[0].mxu0
    %1005 = vdwg.mxu0
    %1006 = vrot.lane.b32.xlu0 %v416, 56
    %v1007 = vpop.permute.xlu0 %1006
    %v1010 = vsel %vm426, %v929, 0
    %1012 = vmatprep.subr.mxu0 0.0
    %1013 = vmatpush1.msra.mxu0 %v1007
    %1014 = vmatprep.subr.mxu0 0.0
    %1015 = vmatpush1.msra.mxu0 0.0
    %1016 = vmatprep.subr.mxu0 0.0
    %1017 = vmatpush1.msra.mxu0 0.0
    %1018 = vmatprep.subr.mxu0 0.0
    %1019 = vmatpush1.msra.mxu0 0.0
    %1020 = vmatprep.subr.mxu0 0.0
    %1021 = vmatpush1.msra.mxu0 0.0
    %1022 = vmatprep.subr.mxu0 0.0
    %1023 = vmatpush1.msra.mxu0 0.0
    %1024 = vmatprep.subr.mxu0 0.0
    %1025 = vmatpush1.msra.mxu0 0.0
    %1026 = vmatprep.subr.mxu0 0.0
    %1027 = vmatpush1.msra.mxu0 0.0
    %1028 = vmatprep.subr.mxu0 0.0
    %1029 = vmatpush1.msra.mxu0 0.0
    %1030 = vmatprep.subr.mxu0 0.0
    %1031 = vmatpush1.msra.mxu0 0.0
    %1032 = vmatprep.subr.mxu0 0.0
    %1033 = vmatpush1.msra.mxu0 0.0
    %1034 = vmatprep.subr.mxu0 0.0
    %1035 = vmatpush1.msra.mxu0 0.0
    %1036 = vmatprep.subr.mxu0 0.0
    %1037 = vmatpush1.msra.mxu0 0.0
    %1038 = vmatprep.subr.mxu0 0.0
    %1039 = vmatpush1.msra.mxu0 0.0
    %1040 = vmatprep.subr.mxu0 0.0
    %1041 = vmatpush1.msra.mxu0 0.0
    %1042 = vmatprep.subr.mxu0 0.0
    %1043 = vmatpush1.msra.mxu0 0.0
    %1044 = vmatprep.subr.mxu0 0.0
    %1045 = vmatpush1.msra.mxu0 0.0
    %1046 = vmatprep.subr.mxu0 0.0
    %1047 = vmatpush1.msra.mxu0 0.0
    %1048 = vmatprep.subr.mxu0 0.0
    %1049 = vmatpush1.msra.mxu0 0.0
    %1050 = vmatprep.subr.mxu0 0.0
    %1051 = vmatpush1.msra.mxu0 0.0
    %1052 = vmatprep.subr.mxu0 0.0
    %1053 = vmatpush1.msra.mxu0 0.0
    %1054 = vmatprep.subr.mxu0 0.0
    %1055 = vmatpush1.msra.mxu0 0.0
    %1056 = vmatprep.subr.mxu0 0.0
    %1057 = vmatpush1.msra.mxu0 0.0
    %1058 = vmatprep.subr.mxu0 0.0
    %1059 = vmatpush1.msra.mxu0 0.0
    %1060 = vmatprep.subr.mxu0 0.0
    %1061 = vmatpush1.msra.mxu0 0.0
    %1062 = vmatprep.subr.mxu0 0.0
    %1063 = vmatpush1.msra.mxu0 0.0
    %1064 = vmatprep.subr.mxu0 0.0
    %1065 = vmatpush1.msra.mxu0 0.0
    %1066 = vmatprep.subr.mxu0 0.0
    %1067 = vmatpush1.msra.mxu0 0.0
    %1068 = vmatprep.subr.mxu0 0.0
    %1069 = vmatpush1.msra.mxu0 0.0
    %1070 = vmatprep.subr.mxu0 0.0
    %1071 = vmatpush1.msra.mxu0 0.0
    %1072 = vmatprep.subr.mxu0 0.0
    %1073 = vmatpush1.msra.mxu0 0.0
    %1074 = vmatprep.subr.mxu0 0.0
    %1075 = vmatpush1.msra.mxu0 0.0
    %1076 = vmatprep.mubr.f32.mxu0 0.0
    %1077 = vmatmul.mubr.f32.gmra.mrb[0].mxu0 %v1010
    %v1078 = vpop.f32.mrb[0].mxu0
    %v1079 = vadd.f32 0.0, %v1078
    %v1080 = vpop.f32.mrb[0].mxu0
    %1081 = vdwg.mxu0
    %v1083 = vsel %vm426, %v1003, 0
    %v1086 = vsel %vm426, %v1079, 0
    %1088 = vmatprep.subr.mxu0 0.0
    %1089 = vmatpush1.msra.mxu0 %v420
    %1090 = vmatprep.subr.mxu0 0.0
    %1091 = vmatpush1.msra.mxu0 0.0
    %1092 = vmatprep.subr.mxu0 0.0
    %1093 = vmatpush1.msra.mxu0 0.0
    %1094 = vmatprep.subr.mxu0 0.0
    %1095 = vmatpush1.msra.mxu0 0.0
    %1096 = vmatprep.subr.mxu0 0.0
    %1097 = vmatpush1.msra.mxu0 0.0
    %1098 = vmatprep.subr.mxu0 0.0
    %1099 = vmatpush1.msra.mxu0 0.0
    %1100 = vmatprep.subr.mxu0 0.0
    %1101 = vmatpush1.msra.mxu0 0.0
    %1102 = vmatprep.subr.mxu0 0.0
    %1103 = vmatpush1.msra.mxu0 0.0
    %1104 = vmatprep.subr.mxu0 0.0
    %1105 = vmatpush1.msra.mxu0 0.0
    %1106 = vmatprep.subr.mxu0 0.0
    %1107 = vmatpush1.msra.mxu0 0.0
    %1108 = vmatprep.subr.mxu0 0.0
    %1109 = vmatpush1.msra.mxu0 0.0
    %1110 = vmatprep.subr.mxu0 0.0
    %1111 = vmatpush1.msra.mxu0 0.0
    %1112 = vmatprep.subr.mxu0 0.0
    %1113 = vmatpush1.msra.mxu0 0.0
    %1114 = vmatprep.subr.mxu0 0.0
    %1115 = vmatpush1.msra.mxu0 0.0
    %1116 = vmatprep.subr.mxu0 0.0
    %1117 = vmatpush1.msra.mxu0 0.0
    %1118 = vmatprep.subr.mxu0 0.0
    %1119 = vmatpush1.msra.mxu0 0.0
    %1120 = vmatprep.subr.mxu0 0.0
    %1121 = vmatpush1.msra.mxu0 0.0
    %1122 = vmatprep.subr.mxu0 0.0
    %1123 = vmatpush1.msra.mxu0 0.0
    %1124 = vmatprep.subr.mxu0 0.0
    %1125 = vmatpush1.msra.mxu0 0.0
    %1126 = vmatprep.subr.mxu0 0.0
    %1127 = vmatpush1.msra.mxu0 0.0
    %1128 = vmatprep.subr.mxu0 0.0
    %1129 = vmatpush1.msra.mxu0 0.0
    %1130 = vmatprep.subr.mxu0 0.0
    %1131 = vmatpush1.msra.mxu0 0.0
    %1132 = vmatprep.subr.mxu0 0.0
    %1133 = vmatpush1.msra.mxu0 0.0
    %1134 = vmatprep.subr.mxu0 0.0
    %1135 = vmatpush1.msra.mxu0 0.0
    %1136 = vmatprep.subr.mxu0 0.0
    %1137 = vmatpush1.msra.mxu0 0.0
    %1138 = vmatprep.subr.mxu0 0.0
    %1139 = vmatpush1.msra.mxu0 0.0
    %1140 = vmatprep.subr.mxu0 0.0
    %1141 = vmatpush1.msra.mxu0 0.0
    %1142 = vmatprep.subr.mxu0 0.0
    %1143 = vmatpush1.msra.mxu0 0.0
    %1144 = vmatprep.subr.mxu0 0.0
    %1145 = vmatpush1.msra.mxu0 0.0
    %1146 = vmatprep.subr.mxu0 0.0
    %1147 = vmatpush1.msra.mxu0 0.0
    %1148 = vmatprep.subr.mxu0 0.0
    %1149 = vmatpush1.msra.mxu0 0.0
    %1150 = vmatprep.subr.mxu0 0.0
    %1151 = vmatpush1.msra.mxu0 0.0
    %1152 = vmatprep.mubr.f32.mxu0 0.0
    %1153 = vmatmul.mubr.f32.gmra.mrb[0].mxu0 %v1083
    %v1154 = vpop.f32.mrb[0].mxu0
    %v1155 = vadd.f32 0.0, %v1154
    %v1156 = vpop.f32.mrb[0].mxu0
    %1157 = vmatprep.mubr.f32.mxu0 0.0
    %1158 = vmatmul.mubr.f32.gmra.mrb[0].mxu0 %v1086
    %v1159 = vpop.f32.mrb[0].mxu0
    %v1160 = vadd.f32 0.0, %v1159
    %v1161 = vpop.f32.mrb[0].mxu0
    %1162 = vdwg.mxu0
    %v1164 = vsel %vm426, %v673, 0
    %v1167 = vsel %vm426, %v749, 0
    %1169 = vmatprep.subr.mxu0 0.0
    %1170 = vmatpush1.msra.mxu0 %v419
    %1171 = vmatprep.subr.mxu0 0.0
    %1172 = vmatpush1.msra.mxu0 0.0
    %1173 = vmatprep.subr.mxu0 0.0
    %1174 = vmatpush1.msra.mxu0 0.0
    %1175 = vmatprep.subr.mxu0 0.0
    %1176 = vmatpush1.msra.mxu0 0.0
    %1177 = vmatprep.subr.mxu0 0.0
    %1178 = vmatpush1.msra.mxu0 0.0
    %1179 = vmatprep.subr.mxu0 0.0
    %1180 = vmatpush1.msra.mxu0 0.0
    %1181 = vmatprep.subr.mxu0 0.0
    %1182 = vmatpush1.msra.mxu0 0.0
    %1183 = vmatprep.subr.mxu0 0.0
    %1184 = vmatpush1.msra.mxu0 0.0
    %1185 = vmatprep.subr.mxu0 0.0
    %1186 = vmatpush1.msra.mxu0 0.0
    %1187 = vmatprep.subr.mxu0 0.0
    %1188 = vmatpush1.msra.mxu0 0.0
    %1189 = vmatprep.subr.mxu0 0.0
    %1190 = vmatpush1.msra.mxu0 0.0
    %1191 = vmatprep.subr.mxu0 0.0
    %1192 = vmatpush1.msra.mxu0 0.0
    %1193 = vmatprep.subr.mxu0 0.0
    %1194 = vmatpush1.msra.mxu0 0.0
    %1195 = vmatprep.subr.mxu0 0.0
    %1196 = vmatpush1.msra.mxu0 0.0
    %1197 = vmatprep.subr.mxu0 0.0
    %1198 = vmatpush1.msra.mxu0 0.0
    %1199 = vmatprep.subr.mxu0 0.0
    %1200 = vmatpush1.msra.mxu0 0.0
    %1201 = vmatprep.subr.mxu0 0.0
    %1202 = vmatpush1.msra.mxu0 0.0
    %1203 = vmatprep.subr.mxu0 0.0
    %1204 = vmatpush1.msra.mxu0 0.0
    %1205 = vmatprep.subr.mxu0 0.0
    %1206 = vmatpush1.msra.mxu0 0.0
    %1207 = vmatprep.subr.mxu0 0.0
    %1208 = vmatpush1.msra.mxu0 0.0
    %1209 = vmatprep.subr.mxu0 0.0
    %1210 = vmatpush1.msra.mxu0 0.0
    %1211 = vmatprep.subr.mxu0 0.0
    %1212 = vmatpush1.msra.mxu0 0.0
    %1213 = vmatprep.subr.mxu0 0.0
    %1214 = vmatpush1.msra.mxu0 0.0
    %1215 = vmatprep.subr.mxu0 0.0
    %1216 = vmatpush1.msra.mxu0 0.0
    %1217 = vmatprep.subr.mxu0 0.0
    %1218 = vmatpush1.msra.mxu0 0.0
    %1219 = vmatprep.subr.mxu0 0.0
    %1220 = vmatpush1.msra.mxu0 0.0
    %1221 = vmatprep.subr.mxu0 0.0
    %1222 = vmatpush1.msra.mxu0 0.0
    %1223 = vmatprep.subr.mxu0 0.0
    %1224 = vmatpush1.msra.mxu0 0.0
    %1225 = vmatprep.subr.mxu0 0.0
    %1226 = vmatpush1.msra.mxu0 0.0
    %1227 = vmatprep.subr.mxu0 0.0
    %1228 = vmatpush1.msra.mxu0 0.0
    %1229 = vmatprep.subr.mxu0 0.0
    %1230 = vmatpush1.msra.mxu0 0.0
    %1231 = vmatprep.subr.mxu0 0.0
    %1232 = vmatpush1.msra.mxu0 0.0
    %1233 = vmatprep.mubr.f32.mxu0 0.0
    %1234 = vmatmul.mubr.f32.gmra.mrb[0].mxu0 %v1164
    %v1235 = vpop.f32.mrb[0].mxu0
    %v1236 = vadd.f32 %v1155, %v1235
    %v1237 = vpop.f32.mrb[0].mxu0
    %1238 = vmatprep.mubr.f32.mxu0 0.0
    %1239 = vmatmul.mubr.f32.gmra.mrb[0].mxu0 %v1167
    %v1240 = vpop.f32.mrb[0].mxu0
    %v1241 = vadd.f32 %v1160, %v1240
    %v1242 = vpop.f32.mrb[0].mxu0
    %1243 = vdwg.mxu0
    %1244 = vrot.lane.b32.xlu0 %v411, 112
    %v1245 = vpop.permute.xlu0 %1244
    %1246 = vrot.lane.b32.xlu0 %v411, 80
    %v1247 = vpop.permute.xlu0 %1246
    %v1248 = vsel %vm426, %v1245, 0
    %v1250 = vsel %vm426, %v1247, 0
    %1252 = vmatprep.subr.mxu0 0.0
    %1253 = vmatpush1.xpose.msra.mxu0 %v1250
    %1254 = vmatprep.subr.mxu0 0.0
    %1255 = vmatpush1.xpose.msra.mxu0 0.0
    %1256 = vmatprep.subr.mxu0 0.0
    %1257 = vmatpush1.xpose.msra.mxu0 0.0
    %1258 = vmatprep.subr.mxu0 0.0
    %1259 = vmatpush1.xpose.msra.mxu0 0.0
    %1260 = vmatprep.subr.mxu0 0.0
    %1261 = vmatpush1.xpose.msra.mxu0 0.0
    %1262 = vmatprep.subr.mxu0 0.0
    %1263 = vmatpush1.xpose.msra.mxu0 0.0
    %1264 = vmatprep.subr.mxu0 0.0
    %1265 = vmatpush1.xpose.msra.mxu0 0.0
    %1266 = vmatprep.subr.mxu0 0.0
    %1267 = vmatpush1.xpose.msra.mxu0 0.0
    %1268 = vmatprep.subr.mxu0 0.0
    %1269 = vmatpush1.xpose.msra.mxu0 0.0
    %1270 = vmatprep.subr.mxu0 0.0
    %1271 = vmatpush1.xpose.msra.mxu0 0.0
    %1272 = vmatprep.subr.mxu0 0.0
    %1273 = vmatpush1.xpose.msra.mxu0 0.0
    %1274 = vmatprep.subr.mxu0 0.0
    %1275 = vmatpush1.xpose.msra.mxu0 0.0
    %1276 = vmatprep.subr.mxu0 0.0
    %1277 = vmatpush1.xpose.msra.mxu0 0.0
    %1278 = vmatprep.subr.mxu0 0.0
    %1279 = vmatpush1.xpose.msra.mxu0 0.0
    %1280 = vmatprep.subr.mxu0 0.0
    %1281 = vmatpush1.xpose.msra.mxu0 0.0
    %1282 = vmatprep.subr.mxu0 0.0
    %1283 = vmatpush1.xpose.msra.mxu0 0.0
    %1284 = vmatprep.subr.mxu0 0.0
    %1285 = vmatpush1.xpose.msra.mxu0 0.0
    %1286 = vmatprep.subr.mxu0 0.0
    %1287 = vmatpush1.xpose.msra.mxu0 0.0
    %1288 = vmatprep.subr.mxu0 0.0
    %1289 = vmatpush1.xpose.msra.mxu0 0.0
    %1290 = vmatprep.subr.mxu0 0.0
    %1291 = vmatpush1.xpose.msra.mxu0 0.0
    %1292 = vmatprep.subr.mxu0 0.0
    %1293 = vmatpush1.xpose.msra.mxu0 0.0
    %1294 = vmatprep.subr.mxu0 0.0
    %1295 = vmatpush1.xpose.msra.mxu0 0.0
    %1296 = vmatprep.subr.mxu0 0.0
    %1297 = vmatpush1.xpose.msra.mxu0 0.0
    %1298 = vmatprep.subr.mxu0 0.0
    %1299 = vmatpush1.xpose.msra.mxu0 0.0
    %1300 = vmatprep.subr.mxu0 0.0
    %1301 = vmatpush1.xpose.msra.mxu0 0.0
    %1302 = vmatprep.subr.mxu0 0.0
    %1303 = vmatpush1.xpose.msra.mxu0 0.0
    %1304 = vmatprep.subr.mxu0 0.0
    %1305 = vmatpush1.xpose.msra.mxu0 0.0
    %1306 = vmatprep.subr.mxu0 0.0
    %1307 = vmatpush1.xpose.msra.mxu0 0.0
    %1308 = vmatprep.subr.mxu0 0.0
    %1309 = vmatpush1.xpose.msra.mxu0 0.0
    %1310 = vmatprep.subr.mxu0 0.0
    %1311 = vmatpush1.xpose.msra.mxu0 0.0
    %1312 = vmatprep.subr.mxu0 0.0
    %1313 = vmatpush1.xpose.msra.mxu0 0.0
    %1314 = vmatprep.subr.mxu0 0.0
    %1315 = vmatpush1.xpose.msra.mxu0 0.0
    %1316 = vmatprep.mubr.f32.mxu0 0.0
    %1317 = vmatmul.mubr.f32.gmra.mrb[0].mxu0 %v1248
    %v1318 = vpop.f32.mrb[0].mxu0
    %v1319 = vadd.f32 0.0, %v1318
    %v1320 = vpop.f32.mrb[0].mxu0
    %1321 = vdwg.mxu0
    %1322 = vrot.lane.b32.xlu0 %v416, 112
    %v1323 = vpop.permute.xlu0 %1322
    %1324 = vrot.lane.b32.xlu0 %v416, 80
    %v1325 = vpop.permute.xlu0 %1324
    %v1326 = vsel %vm426, %v1323, 0
    %v1328 = vsel %vm426, %v1325, 0
    %1330 = vmatprep.subr.mxu0 0.0
    %1331 = vmatpush1.xpose.msra.mxu0 %v1328
    %1332 = vmatprep.subr.mxu0 0.0
    %1333 = vmatpush1.xpose.msra.mxu0 0.0
    %1334 = vmatprep.subr.mxu0 0.0
    %1335 = vmatpush1.xpose.msra.mxu0 0.0
    %1336 = vmatprep.subr.mxu0 0.0
    %1337 = vmatpush1.xpose.msra.mxu0 0.0
    %1338 = vmatprep.subr.mxu0 0.0
    %1339 = vmatpush1.xpose.msra.mxu0 0.0
    %1340 = vmatprep.subr.mxu0 0.0
    %1341 = vmatpush1.xpose.msra.mxu0 0.0
    %1342 = vmatprep.subr.mxu0 0.0
    %1343 = vmatpush1.xpose.msra.mxu0 0.0
    %1344 = vmatprep.subr.mxu0 0.0
    %1345 = vmatpush1.xpose.msra.mxu0 0.0
    %1346 = vmatprep.subr.mxu0 0.0
    %1347 = vmatpush1.xpose.msra.mxu0 0.0
    %1348 = vmatprep.subr.mxu0 0.0
    %1349 = vmatpush1.xpose.msra.mxu0 0.0
    %1350 = vmatprep.subr.mxu0 0.0
    %1351 = vmatpush1.xpose.msra.mxu0 0.0
    %1352 = vmatprep.subr.mxu0 0.0
    %1353 = vmatpush1.xpose.msra.mxu0 0.0
    %1354 = vmatprep.subr.mxu0 0.0
    %1355 = vmatpush1.xpose.msra.mxu0 0.0
    %1356 = vmatprep.subr.mxu0 0.0
    %1357 = vmatpush1.xpose.msra.mxu0 0.0
    %1358 = vmatprep.subr.mxu0 0.0
    %1359 = vmatpush1.xpose.msra.mxu0 0.0
    %1360 = vmatprep.subr.mxu0 0.0
    %1361 = vmatpush1.xpose.msra.mxu0 0.0
    %1362 = vmatprep.subr.mxu0 0.0
    %1363 = vmatpush1.xpose.msra.mxu0 0.0
    %1364 = vmatprep.subr.mxu0 0.0
    %1365 = vmatpush1.xpose.msra.mxu0 0.0
    %1366 = vmatprep.subr.mxu0 0.0
    %1367 = vmatpush1.xpose.msra.mxu0 0.0
    %1368 = vmatprep.subr.mxu0 0.0
    %1369 = vmatpush1.xpose.msra.mxu0 0.0
    %1370 = vmatprep.subr.mxu0 0.0
    %1371 = vmatpush1.xpose.msra.mxu0 0.0
    %1372 = vmatprep.subr.mxu0 0.0
    %1373 = vmatpush1.xpose.msra.mxu0 0.0
    %1374 = vmatprep.subr.mxu0 0.0
    %1375 = vmatpush1.xpose.msra.mxu0 0.0
    %1376 = vmatprep.subr.mxu0 0.0
    %1377 = vmatpush1.xpose.msra.mxu0 0.0
    %1378 = vmatprep.subr.mxu0 0.0
    %1379 = vmatpush1.xpose.msra.mxu0 0.0
    %1380 = vmatprep.subr.mxu0 0.0
    %1381 = vmatpush1.xpose.msra.mxu0 0.0
    %1382 = vmatprep.subr.mxu0 0.0
    %1383 = vmatpush1.xpose.msra.mxu0 0.0
    %1384 = vmatprep.subr.mxu0 0.0
    %1385 = vmatpush1.xpose.msra.mxu0 0.0
    %1386 = vmatprep.subr.mxu0 0.0
    %1387 = vmatpush1.xpose.msra.mxu0 0.0
    %1388 = vmatprep.subr.mxu0 0.0
    %1389 = vmatpush1.xpose.msra.mxu0 0.0
    %1390 = vmatprep.subr.mxu0 0.0
    %1391 = vmatpush1.xpose.msra.mxu0 0.0
    %1392 = vmatprep.subr.mxu0 0.0
    %1393 = vmatpush1.xpose.msra.mxu0 0.0
    %1394 = vmatprep.mubr.f32.mxu0 0.0
    %1395 = vmatmul.mubr.f32.gmra.mrb[0].mxu0 %v1326
    %v1396 = vpop.f32.mrb[0].mxu0
    %v1397 = vadd.f32 0.0, %v1396
    %v1398 = vpop.f32.mrb[0].mxu0
    %1399 = vdwg.mxu0
    %v1400 = vsel %vm426, %v1319, -inf
    %1401 = vmax.xlane.f32.xlu0 %v1400
    %v1402 = vpop.xlane.xlu0 %1401
    %v1403 = vsel %vm426, %v1397, -inf
    %1404 = vmax.xlane.f32.xlu0 %v1403
    %v1405 = vpop.xlane.xlu0 %1404
    %v1406 = vsub.f32 %v1319, %v1402
    %v1407 = vsub.f32 %v1397, %v1405
    %v1408 = vmul.f32 %v1406, 1.442695
    %v1409 = vpow.pop %v1408
    %v1410 = vmul.f32 %v1407, 1.442695
    %v1411 = vpow.pop %v1410
    %v1412 = vsel %vm426, %v1409, 0.0
    %1413 = vadd.xlane.f32.xlu0 %v1412
    %v1414 = vpop.xlane.xlu0 %1413
    %v1415 = vsel %vm426, %v1411, 0.0
    %1416 = vadd.xlane.f32.xlu0 %v1415
    %v1417 = vpop.xlane.xlu0 %1416
    %v1418 = vrcp.pop %v1414
    %v1419 = vrcp.pop %v1417
    %v1420 = vmul.f32 %v1409, %v1418
    %v1421 = vmul.f32 %v1411, %v1419
    %1422 = vrot.lane.b32.xlu0 %v411, 48
    %v1423 = vpop.permute.xlu0 %1422
    %v1426 = vsel %vm426, %v1420, 0
    %1428 = vmatprep.subr.mxu0 0.0
    %1429 = vmatpush1.msra.mxu0 %v1423
    %1430 = vmatprep.subr.mxu0 0.0
    %1431 = vmatpush1.msra.mxu0 0.0
    %1432 = vmatprep.subr.mxu0 0.0
    %1433 = vmatpush1.msra.mxu0 0.0
    %1434 = vmatprep.subr.mxu0 0.0
    %1435 = vmatpush1.msra.mxu0 0.0
    %1436 = vmatprep.subr.mxu0 0.0
    %1437 = vmatpush1.msra.mxu0 0.0
    %1438 = vmatprep.subr.mxu0 0.0
    %1439 = vmatpush1.msra.mxu0 0.0
    %1440 = vmatprep.subr.mxu0 0.0
    %1441 = vmatpush1.msra.mxu0 0.0
    %1442 = vmatprep.subr.mxu0 0.0
    %1443 = vmatpush1.msra.mxu0 0.0
    %1444 = vmatprep.subr.mxu0 0.0
    %1445 = vmatpush1.msra.mxu0 0.0
    %1446 = vmatprep.subr.mxu0 0.0
    %1447 = vmatpush1.msra.mxu0 0.0
    %1448 = vmatprep.subr.mxu0 0.0
    %1449 = vmatpush1.msra.mxu0 0.0
    %1450 = vmatprep.subr.mxu0 0.0
    %1451 = vmatpush1.msra.mxu0 0.0
    %1452 = vmatprep.subr.mxu0 0.0
    %1453 = vmatpush1.msra.mxu0 0.0
    %1454 = vmatprep.subr.mxu0 0.0
    %1455 = vmatpush1.msra.mxu0 0.0
    %1456 = vmatprep.subr.mxu0 0.0
    %1457 = vmatpush1.msra.mxu0 0.0
    %1458 = vmatprep.subr.mxu0 0.0
    %1459 = vmatpush1.msra.mxu0 0.0
    %1460 = vmatprep.subr.mxu0 0.0
    %1461 = vmatpush1.msra.mxu0 0.0
    %1462 = vmatprep.subr.mxu0 0.0
    %1463 = vmatpush1.msra.mxu0 0.0
    %1464 = vmatprep.subr.mxu0 0.0
    %1465 = vmatpush1.msra.mxu0 0.0
    %1466 = vmatprep.subr.mxu0 0.0
    %1467 = vmatpush1.msra.mxu0 0.0
    %1468 = vmatprep.subr.mxu0 0.0
    %1469 = vmatpush1.msra.mxu0 0.0
    %1470 = vmatprep.subr.mxu0 0.0
    %1471 = vmatpush1.msra.mxu0 0.0
    %1472 = vmatprep.subr.mxu0 0.0
    %1473 = vmatpush1.msra.mxu0 0.0
    %1474 = vmatprep.subr.mxu0 0.0
    %1475 = vmatpush1.msra.mxu0 0.0
    %1476 = vmatprep.subr.mxu0 0.0
    %1477 = vmatpush1.msra.mxu0 0.0
    %1478 = vmatprep.subr.mxu0 0.0
    %1479 = vmatpush1.msra.mxu0 0.0
    %1480 = vmatprep.subr.mxu0 0.0
    %1481 = vmatpush1.msra.mxu0 0.0
    %1482 = vmatprep.subr.mxu0 0.0
    %1483 = vmatpush1.msra.mxu0 0.0
    %1484 = vmatprep.subr.mxu0 0.0
    %1485 = vmatpush1.msra.mxu0 0.0
    %1486 = vmatprep.subr.mxu0 0.0
    %1487 = vmatpush1.msra.mxu0 0.0
    %1488 = vmatprep.subr.mxu0 0.0
    %1489 = vmatpush1.msra.mxu0 0.0
    %1490 = vmatprep.subr.mxu0 0.0
    %1491 = vmatpush1.msra.mxu0 0.0
    %1492 = vmatprep.mubr.f32.mxu0 0.0
    %1493 = vmatmul.mubr.f32.gmra.mrb[0].mxu0 %v1426
    %v1494 = vpop.f32.mrb[0].mxu0
    %v1495 = vadd.f32 0.0, %v1494
    %v1496 = vpop.f32.mrb[0].mxu0
    %1497 = vdwg.mxu0
    %1498 = vrot.lane.b32.xlu0 %v416, 48
    %v1499 = vpop.permute.xlu0 %1498
    %v1502 = vsel %vm426, %v1421, 0
    %1504 = vmatprep.subr.mxu0 0.0
    %1505 = vmatpush1.msra.mxu0 %v1499
    %1506 = vmatprep.subr.mxu0 0.0
    %1507 = vmatpush1.msra.mxu0 0.0
    %1508 = vmatprep.subr.mxu0 0.0
    %1509 = vmatpush1.msra.mxu0 0.0
    %1510 = vmatprep.subr.mxu0 0.0
    %1511 = vmatpush1.msra.mxu0 0.0
    %1512 = vmatprep.subr.mxu0 0.0
    %1513 = vmatpush1.msra.mxu0 0.0
    %1514 = vmatprep.subr.mxu0 0.0
    %1515 = vmatpush1.msra.mxu0 0.0
    %1516 = vmatprep.subr.mxu0 0.0
    %1517 = vmatpush1.msra.mxu0 0.0
    %1518 = vmatprep.subr.mxu0 0.0
    %1519 = vmatpush1.msra.mxu0 0.0
    %1520 = vmatprep.subr.mxu0 0.0
    %1521 = vmatpush1.msra.mxu0 0.0
    %1522 = vmatprep.subr.mxu0 0.0
    %1523 = vmatpush1.msra.mxu0 0.0
    %1524 = vmatprep.subr.mxu0 0.0
    %1525 = vmatpush1.msra.mxu0 0.0
    %1526 = vmatprep.subr.mxu0 0.0
    %1527 = vmatpush1.msra.mxu0 0.0
    %1528 = vmatprep.subr.mxu0 0.0
    %1529 = vmatpush1.msra.mxu0 0.0
    %1530 = vmatprep.subr.mxu0 0.0
    %1531 = vmatpush1.msra.mxu0 0.0
    %1532 = vmatprep.subr.mxu0 0.0
    %1533 = vmatpush1.msra.mxu0 0.0
    %1534 = vmatprep.subr.mxu0 0.0
    %1535 = vmatpush1.msra.mxu0 0.0
    %1536 = vmatprep.subr.mxu0 0.0
    %1537 = vmatpush1.msra.mxu0 0.0
    %1538 = vmatprep.subr.mxu0 0.0
    %1539 = vmatpush1.msra.mxu0 0.0
    %1540 = vmatprep.subr.mxu0 0.0
    %1541 = vmatpush1.msra.mxu0 0.0
    %1542 = vmatprep.subr.mxu0 0.0
    %1543 = vmatpush1.msra.mxu0 0.0
    %1544 = vmatprep.subr.mxu0 0.0
    %1545 = vmatpush1.msra.mxu0 0.0
    %1546 = vmatprep.subr.mxu0 0.0
    %1547 = vmatpush1.msra.mxu0 0.0
    %1548 = vmatprep.subr.mxu0 0.0
    %1549 = vmatpush1.msra.mxu0 0.0
    %1550 = vmatprep.subr.mxu0 0.0
    %1551 = vmatpush1.msra.mxu0 0.0
    %1552 = vmatprep.subr.mxu0 0.0
    %1553 = vmatpush1.msra.mxu0 0.0
    %1554 = vmatprep.subr.mxu0 0.0
    %1555 = vmatpush1.msra.mxu0 0.0
    %1556 = vmatprep.subr.mxu0 0.0
    %1557 = vmatpush1.msra.mxu0 0.0
    %1558 = vmatprep.subr.mxu0 0.0
    %1559 = vmatpush1.msra.mxu0 0.0
    %1560 = vmatprep.subr.mxu0 0.0
    %1561 = vmatpush1.msra.mxu0 0.0
    %1562 = vmatprep.subr.mxu0 0.0
    %1563 = vmatpush1.msra.mxu0 0.0
    %1564 = vmatprep.subr.mxu0 0.0
    %1565 = vmatpush1.msra.mxu0 0.0
    %1566 = vmatprep.subr.mxu0 0.0
    %1567 = vmatpush1.msra.mxu0 0.0
    %1568 = vmatprep.mubr.f32.mxu0 0.0
    %1569 = vmatmul.mubr.f32.gmra.mrb[0].mxu0 %v1502
    %v1570 = vpop.f32.mrb[0].mxu0
    %v1571 = vadd.f32 0.0, %v1570
    %v1572 = vpop.f32.mrb[0].mxu0
    %1573 = vdwg.mxu0
    %v1575 = vsel %vm426, %v1495, 0
    %v1578 = vsel %vm426, %v1571, 0
    %1580 = vmatprep.subr.mxu0 0.0
    %1581 = vmatpush1.msra.mxu0 %v421
    %1582 = vmatprep.subr.mxu0 0.0
    %1583 = vmatpush1.msra.mxu0 0.0
    %1584 = vmatprep.subr.mxu0 0.0
    %1585 = vmatpush1.msra.mxu0 0.0
    %1586 = vmatprep.subr.mxu0 0.0
    %1587 = vmatpush1.msra.mxu0 0.0
    %1588 = vmatprep.subr.mxu0 0.0
    %1589 = vmatpush1.msra.mxu0 0.0
    %1590 = vmatprep.subr.mxu0 0.0
    %1591 = vmatpush1.msra.mxu0 0.0
    %1592 = vmatprep.subr.mxu0 0.0
    %1593 = vmatpush1.msra.mxu0 0.0
    %1594 = vmatprep.subr.mxu0 0.0
    %1595 = vmatpush1.msra.mxu0 0.0
    %1596 = vmatprep.subr.mxu0 0.0
    %1597 = vmatpush1.msra.mxu0 0.0
    %1598 = vmatprep.subr.mxu0 0.0
    %1599 = vmatpush1.msra.mxu0 0.0
    %1600 = vmatprep.subr.mxu0 0.0
    %1601 = vmatpush1.msra.mxu0 0.0
    %1602 = vmatprep.subr.mxu0 0.0
    %1603 = vmatpush1.msra.mxu0 0.0
    %1604 = vmatprep.subr.mxu0 0.0
    %1605 = vmatpush1.msra.mxu0 0.0
    %1606 = vmatprep.subr.mxu0 0.0
    %1607 = vmatpush1.msra.mxu0 0.0
    %1608 = vmatprep.subr.mxu0 0.0
    %1609 = vmatpush1.msra.mxu0 0.0
    %1610 = vmatprep.subr.mxu0 0.0
    %1611 = vmatpush1.msra.mxu0 0.0
    %1612 = vmatprep.subr.mxu0 0.0
    %1613 = vmatpush1.msra.mxu0 0.0
    %1614 = vmatprep.subr.mxu0 0.0
    %1615 = vmatpush1.msra.mxu0 0.0
    %1616 = vmatprep.subr.mxu0 0.0
    %1617 = vmatpush1.msra.mxu0 0.0
    %1618 = vmatprep.subr.mxu0 0.0
    %1619 = vmatpush1.msra.mxu0 0.0
    %1620 = vmatprep.subr.mxu0 0.0
    %1621 = vmatpush1.msra.mxu0 0.0
    %1622 = vmatprep.subr.mxu0 0.0
    %1623 = vmatpush1.msra.mxu0 0.0
    %1624 = vmatprep.subr.mxu0 0.0
    %1625 = vmatpush1.msra.mxu0 0.0
    %1626 = vmatprep.subr.mxu0 0.0
    %1627 = vmatpush1.msra.mxu0 0.0
    %1628 = vmatprep.subr.mxu0 0.0
    %1629 = vmatpush1.msra.mxu0 0.0
    %1630 = vmatprep.subr.mxu0 0.0
    %1631 = vmatpush1.msra.mxu0 0.0
    %1632 = vmatprep.subr.mxu0 0.0
    %1633 = vmatpush1.msra.mxu0 0.0
    %1634 = vmatprep.subr.mxu0 0.0
    %1635 = vmatpush1.msra.mxu0 0.0
    %1636 = vmatprep.subr.mxu0 0.0
    %1637 = vmatpush1.msra.mxu0 0.0
    %1638 = vmatprep.subr.mxu0 0.0
    %1639 = vmatpush1.msra.mxu0 0.0
    %1640 = vmatprep.subr.mxu0 0.0
    %1641 = vmatpush1.msra.mxu0 0.0
    %1642 = vmatprep.subr.mxu0 0.0
    %1643 = vmatpush1.msra.mxu0 0.0
    %1644 = vmatprep.mubr.f32.mxu0 0.0
    %1645 = vmatmul.mubr.f32.gmra.mrb[0].mxu0 %v1575
    %v1646 = vpop.f32.mrb[0].mxu0
    %v1647 = vadd.f32 0.0, %v1646
    %v1648 = vpop.f32.mrb[0].mxu0
    %1649 = vmatprep.mubr.f32.mxu0 0.0
    %1650 = vmatmul.mubr.f32.gmra.mrb[0].mxu0 %v1578
    %v1651 = vpop.f32.mrb[0].mxu0
    %v1652 = vadd.f32 0.0, %v1651
    %v1653 = vpop.f32.mrb[0].mxu0
    %1654 = vdwg.mxu0
    %v1655 = vadd.f32 %v1236, %v1647
    %v1656 = vadd.f32 %v1241, %v1652
    %1657 = vrot.lane.b32.xlu0 %v411, 104
    %v1658 = vpop.permute.xlu0 %1657
    %1659 = vrot.lane.b32.xlu0 %v411, 72
    %v1660 = vpop.permute.xlu0 %1659
    %v1661 = vsel %vm426, %v1658, 0
    %v1663 = vsel %vm426, %v1660, 0
    %1665 = vmatprep.subr.mxu0 0.0
    %1666 = vmatpush1.xpose.msra.mxu0 %v1663
    %1667 = vmatprep.subr.mxu0 0.0
    %1668 = vmatpush1.xpose.msra.mxu0 0.0
    %1669 = vmatprep.subr.mxu0 0.0
    %1670 = vmatpush1.xpose.msra.mxu0 0.0
    %1671 = vmatprep.subr.mxu0 0.0
    %1672 = vmatpush1.xpose.msra.mxu0 0.0
    %1673 = vmatprep.subr.mxu0 0.0
    %1674 = vmatpush1.xpose.msra.mxu0 0.0
    %1675 = vmatprep.subr.mxu0 0.0
    %1676 = vmatpush1.xpose.msra.mxu0 0.0
    %1677 = vmatprep.subr.mxu0 0.0
    %1678 = vmatpush1.xpose.msra.mxu0 0.0
    %1679 = vmatprep.subr.mxu0 0.0
    %1680 = vmatpush1.xpose.msra.mxu0 0.0
    %1681 = vmatprep.subr.mxu0 0.0
    %1682 = vmatpush1.xpose.msra.mxu0 0.0
    %1683 = vmatprep.subr.mxu0 0.0
    %1684 = vmatpush1.xpose.msra.mxu0 0.0
    %1685 = vmatprep.subr.mxu0 0.0
    %1686 = vmatpush1.xpose.msra.mxu0 0.0
    %1687 = vmatprep.subr.mxu0 0.0
    %1688 = vmatpush1.xpose.msra.mxu0 0.0
    %1689 = vmatprep.subr.mxu0 0.0
    %1690 = vmatpush1.xpose.msra.mxu0 0.0
    %1691 = vmatprep.subr.mxu0 0.0
    %1692 = vmatpush1.xpose.msra.mxu0 0.0
    %1693 = vmatprep.subr.mxu0 0.0
    %1694 = vmatpush1.xpose.msra.mxu0 0.0
    %1695 = vmatprep.subr.mxu0 0.0
    %1696 = vmatpush1.xpose.msra.mxu0 0.0
    %1697 = vmatprep.subr.mxu0 0.0
    %1698 = vmatpush1.xpose.msra.mxu0 0.0
    %1699 = vmatprep.subr.mxu0 0.0
    %1700 = vmatpush1.xpose.msra.mxu0 0.0
    %1701 = vmatprep.subr.mxu0 0.0
    %1702 = vmatpush1.xpose.msra.mxu0 0.0
    %1703 = vmatprep.subr.mxu0 0.0
    %1704 = vmatpush1.xpose.msra.mxu0 0.0
    %1705 = vmatprep.subr.mxu0 0.0
    %1706 = vmatpush1.xpose.msra.mxu0 0.0
    %1707 = vmatprep.subr.mxu0 0.0
    %1708 = vmatpush1.xpose.msra.mxu0 0.0
    %1709 = vmatprep.subr.mxu0 0.0
    %1710 = vmatpush1.xpose.msra.mxu0 0.0
    %1711 = vmatprep.subr.mxu0 0.0
    %1712 = vmatpush1.xpose.msra.mxu0 0.0
    %1713 = vmatprep.subr.mxu0 0.0
    %1714 = vmatpush1.xpose.msra.mxu0 0.0
    %1715 = vmatprep.subr.mxu0 0.0
    %1716 = vmatpush1.xpose.msra.mxu0 0.0
    %1717 = vmatprep.subr.mxu0 0.0
    %1718 = vmatpush1.xpose.msra.mxu0 0.0
    %1719 = vmatprep.subr.mxu0 0.0
    %1720 = vmatpush1.xpose.msra.mxu0 0.0
    %1721 = vmatprep.subr.mxu0 0.0
    %1722 = vmatpush1.xpose.msra.mxu0 0.0
    %1723 = vmatprep.subr.mxu0 0.0
    %1724 = vmatpush1.xpose.msra.mxu0 0.0
    %1725 = vmatprep.subr.mxu0 0.0
    %1726 = vmatpush1.xpose.msra.mxu0 0.0
    %1727 = vmatprep.subr.mxu0 0.0
    %1728 = vmatpush1.xpose.msra.mxu0 0.0
    %1729 = vmatprep.mubr.f32.mxu0 0.0
    %1730 = vmatmul.mubr.f32.gmra.mrb[0].mxu0 %v1661
    %v1731 = vpop.f32.mrb[0].mxu0
    %v1732 = vadd.f32 0.0, %v1731
    %v1733 = vpop.f32.mrb[0].mxu0
    %1734 = vdwg.mxu0
    %1735 = vrot.lane.b32.xlu0 %v416, 104
    %v1736 = vpop.permute.xlu0 %1735
    %1737 = vrot.lane.b32.xlu0 %v416, 72
    %v1738 = vpop.permute.xlu0 %1737
    %v1739 = vsel %vm426, %v1736, 0
    %v1741 = vsel %vm426, %v1738, 0
    %1743 = vmatprep.subr.mxu0 0.0
    %1744 = vmatpush1.xpose.msra.mxu0 %v1741
    %1745 = vmatprep.subr.mxu0 0.0
    %1746 = vmatpush1.xpose.msra.mxu0 0.0
    %1747 = vmatprep.subr.mxu0 0.0
    %1748 = vmatpush1.xpose.msra.mxu0 0.0
    %1749 = vmatprep.subr.mxu0 0.0
    %1750 = vmatpush1.xpose.msra.mxu0 0.0
    %1751 = vmatprep.subr.mxu0 0.0
    %1752 = vmatpush1.xpose.msra.mxu0 0.0
    %1753 = vmatprep.subr.mxu0 0.0
    %1754 = vmatpush1.xpose.msra.mxu0 0.0
    %1755 = vmatprep.subr.mxu0 0.0
    %1756 = vmatpush1.xpose.msra.mxu0 0.0
    %1757 = vmatprep.subr.mxu0 0.0
    %1758 = vmatpush1.xpose.msra.mxu0 0.0
    %1759 = vmatprep.subr.mxu0 0.0
    %1760 = vmatpush1.xpose.msra.mxu0 0.0
    %1761 = vmatprep.subr.mxu0 0.0
    %1762 = vmatpush1.xpose.msra.mxu0 0.0
    %1763 = vmatprep.subr.mxu0 0.0
    %1764 = vmatpush1.xpose.msra.mxu0 0.0
    %1765 = vmatprep.subr.mxu0 0.0
    %1766 = vmatpush1.xpose.msra.mxu0 0.0
    %1767 = vmatprep.subr.mxu0 0.0
    %1768 = vmatpush1.xpose.msra.mxu0 0.0
    %1769 = vmatprep.subr.mxu0 0.0
    %1770 = vmatpush1.xpose.msra.mxu0 0.0
    %1771 = vmatprep.subr.mxu0 0.0
    %1772 = vmatpush1.xpose.msra.mxu0 0.0
    %1773 = vmatprep.subr.mxu0 0.0
    %1774 = vmatpush1.xpose.msra.mxu0 0.0
    %1775 = vmatprep.subr.mxu0 0.0
    %1776 = vmatpush1.xpose.msra.mxu0 0.0
    %1777 = vmatprep.subr.mxu0 0.0
    %1778 = vmatpush1.xpose.msra.mxu0 0.0
    %1779 = vmatprep.subr.mxu0 0.0
    %1780 = vmatpush1.xpose.msra.mxu0 0.0
    %1781 = vmatprep.subr.mxu0 0.0
    %1782 = vmatpush1.xpose.msra.mxu0 0.0
    %1783 = vmatprep.subr.mxu0 0.0
    %1784 = vmatpush1.xpose.msra.mxu0 0.0
    %1785 = vmatprep.subr.mxu0 0.0
    %1786 = vmatpush1.xpose.msra.mxu0 0.0
    %1787 = vmatprep.subr.mxu0 0.0
    %1788 = vmatpush1.xpose.msra.mxu0 0.0
    %1789 = vmatprep.subr.mxu0 0.0
    %1790 = vmatpush1.xpose.msra.mxu0 0.0
    %1791 = vmatprep.subr.mxu0 0.0
    %1792 = vmatpush1.xpose.msra.mxu0 0.0
    %1793 = vmatprep.subr.mxu0 0.0
    %1794 = vmatpush1.xpose.msra.mxu0 0.0
    %1795 = vmatprep.subr.mxu0 0.0
    %1796 = vmatpush1.xpose.msra.mxu0 0.0
    %1797 = vmatprep.subr.mxu0 0.0
    %1798 = vmatpush1.xpose.msra.mxu0 0.0
    %1799 = vmatprep.subr.mxu0 0.0
    %1800 = vmatpush1.xpose.msra.mxu0 0.0
    %1801 = vmatprep.subr.mxu0 0.0
    %1802 = vmatpush1.xpose.msra.mxu0 0.0
    %1803 = vmatprep.subr.mxu0 0.0
    %1804 = vmatpush1.xpose.msra.mxu0 0.0
    %1805 = vmatprep.subr.mxu0 0.0
    %1806 = vmatpush1.xpose.msra.mxu0 0.0
    %1807 = vmatprep.mubr.f32.mxu0 0.0
    %1808 = vmatmul.mubr.f32.gmra.mrb[0].mxu0 %v1739
    %v1809 = vpop.f32.mrb[0].mxu0
    %v1810 = vadd.f32 0.0, %v1809
    %v1811 = vpop.f32.mrb[0].mxu0
    %1812 = vdwg.mxu0
    %v1813 = vsel %vm426, %v1732, -inf
    %1814 = vmax.xlane.f32.xlu0 %v1813
    %v1815 = vpop.xlane.xlu0 %1814
    %v1816 = vsel %vm426, %v1810, -inf
    %1817 = vmax.xlane.f32.xlu0 %v1816
    %v1818 = vpop.xlane.xlu0 %1817
    %v1819 = vsub.f32 %v1732, %v1815
    %v1820 = vsub.f32 %v1810, %v1818
    %v1821 = vmul.f32 %v1819, 1.442695
    %v1822 = vpow.pop %v1821
    %v1823 = vmul.f32 %v1820, 1.442695
    %v1824 = vpow.pop %v1823
    %v1825 = vsel %vm426, %v1822, 0.0
    %1826 = vadd.xlane.f32.xlu0 %v1825
    %v1827 = vpop.xlane.xlu0 %1826
    %v1828 = vsel %vm426, %v1824, 0.0
    %1829 = vadd.xlane.f32.xlu0 %v1828
    %v1830 = vpop.xlane.xlu0 %1829
    %v1831 = vrcp.pop %v1827
    %v1832 = vrcp.pop %v1830
    %v1833 = vmul.f32 %v1822, %v1831
    %v1834 = vmul.f32 %v1824, %v1832
    %1835 = vrot.lane.b32.xlu0 %v411, 40
    %v1836 = vpop.permute.xlu0 %1835
    %v1839 = vsel %vm426, %v1833, 0
    %1841 = vmatprep.subr.mxu0 0.0
    %1842 = vmatpush1.msra.mxu0 %v1836
    %1843 = vmatprep.subr.mxu0 0.0
    %1844 = vmatpush1.msra.mxu0 0.0
    %1845 = vmatprep.subr.mxu0 0.0
    %1846 = vmatpush1.msra.mxu0 0.0
    %1847 = vmatprep.subr.mxu0 0.0
    %1848 = vmatpush1.msra.mxu0 0.0
    %1849 = vmatprep.subr.mxu0 0.0
    %1850 = vmatpush1.msra.mxu0 0.0
    %1851 = vmatprep.subr.mxu0 0.0
    %1852 = vmatpush1.msra.mxu0 0.0
    %1853 = vmatprep.subr.mxu0 0.0
    %1854 = vmatpush1.msra.mxu0 0.0
    %1855 = vmatprep.subr.mxu0 0.0
    %1856 = vmatpush1.msra.mxu0 0.0
    %1857 = vmatprep.subr.mxu0 0.0
    %1858 = vmatpush1.msra.mxu0 0.0
    %1859 = vmatprep.subr.mxu0 0.0
    %1860 = vmatpush1.msra.mxu0 0.0
    %1861 = vmatprep.subr.mxu0 0.0
    %1862 = vmatpush1.msra.mxu0 0.0
    %1863 = vmatprep.subr.mxu0 0.0
    %1864 = vmatpush1.msra.mxu0 0.0
    %1865 = vmatprep.subr.mxu0 0.0
    %1866 = vmatpush1.msra.mxu0 0.0
    %1867 = vmatprep.subr.mxu0 0.0
    %1868 = vmatpush1.msra.mxu0 0.0
    %1869 = vmatprep.subr.mxu0 0.0
    %1870 = vmatpush1.msra.mxu0 0.0
    %1871 = vmatprep.subr.mxu0 0.0
    %1872 = vmatpush1.msra.mxu0 0.0
    %1873 = vmatprep.subr.mxu0 0.0
    %1874 = vmatpush1.msra.mxu0 0.0
    %1875 = vmatprep.subr.mxu0 0.0
    %1876 = vmatpush1.msra.mxu0 0.0
    %1877 = vmatprep.subr.mxu0 0.0
    %1878 = vmatpush1.msra.mxu0 0.0
    %1879 = vmatprep.subr.mxu0 0.0
    %1880 = vmatpush1.msra.mxu0 0.0
    %1881 = vmatprep.subr.mxu0 0.0
    %1882 = vmatpush1.msra.mxu0 0.0
    %1883 = vmatprep.subr.mxu0 0.0
    %1884 = vmatpush1.msra.mxu0 0.0
    %1885 = vmatprep.subr.mxu0 0.0
    %1886 = vmatpush1.msra.mxu0 0.0
    %1887 = vmatprep.subr.mxu0 0.0
    %1888 = vmatpush1.msra.mxu0 0.0
    %1889 = vmatprep.subr.mxu0 0.0
    %1890 = vmatpush1.msra.mxu0 0.0
    %1891 = vmatprep.subr.mxu0 0.0
    %1892 = vmatpush1.msra.mxu0 0.0
    %1893 = vmatprep.subr.mxu0 0.0
    %1894 = vmatpush1.msra.mxu0 0.0
    %1895 = vmatprep.subr.mxu0 0.0
    %1896 = vmatpush1.msra.mxu0 0.0
    %1897 = vmatprep.subr.mxu0 0.0
    %1898 = vmatpush1.msra.mxu0 0.0
    %1899 = vmatprep.subr.mxu0 0.0
    %1900 = vmatpush1.msra.mxu0 0.0
    %1901 = vmatprep.subr.mxu0 0.0
    %1902 = vmatpush1.msra.mxu0 0.0
    %1903 = vmatprep.subr.mxu0 0.0
    %1904 = vmatpush1.msra.mxu0 0.0
    %1905 = vmatprep.mubr.f32.mxu0 0.0
    %1906 = vmatmul.mubr.f32.gmra.mrb[0].mxu0 %v1839
    %v1907 = vpop.f32.mrb[0].mxu0
    %v1908 = vadd.f32 0.0, %v1907
    %v1909 = vpop.f32.mrb[0].mxu0
    %1910 = vdwg.mxu0
    %1911 = vrot.lane.b32.xlu0 %v416, 40
    %v1912 = vpop.permute.xlu0 %1911
    %v1915 = vsel %vm426, %v1834, 0
    %1917 = vmatprep.subr.mxu0 0.0
    %1918 = vmatpush1.msra.mxu0 %v1912
    %1919 = vmatprep.subr.mxu0 0.0
    %1920 = vmatpush1.msra.mxu0 0.0
    %1921 = vmatprep.subr.mxu0 0.0
    %1922 = vmatpush1.msra.mxu0 0.0
    %1923 = vmatprep.subr.mxu0 0.0
    %1924 = vmatpush1.msra.mxu0 0.0
    %1925 = vmatprep.subr.mxu0 0.0
    %1926 = vmatpush1.msra.mxu0 0.0
    %1927 = vmatprep.subr.mxu0 0.0
    %1928 = vmatpush1.msra.mxu0 0.0
    %1929 = vmatprep.subr.mxu0 0.0
    %1930 = vmatpush1.msra.mxu0 0.0
    %1931 = vmatprep.subr.mxu0 0.0
    %1932 = vmatpush1.msra.mxu0 0.0
    %1933 = vmatprep.subr.mxu0 0.0
    %1934 = vmatpush1.msra.mxu0 0.0
    %1935 = vmatprep.subr.mxu0 0.0
    %1936 = vmatpush1.msra.mxu0 0.0
    %1937 = vmatprep.subr.mxu0 0.0
    %1938 = vmatpush1.msra.mxu0 0.0
    %1939 = vmatprep.subr.mxu0 0.0
    %1940 = vmatpush1.msra.mxu0 0.0
    %1941 = vmatprep.subr.mxu0 0.0
    %1942 = vmatpush1.msra.mxu0 0.0
    %1943 = vmatprep.subr.mxu0 0.0
    %1944 = vmatpush1.msra.mxu0 0.0
    %1945 = vmatprep.subr.mxu0 0.0
    %1946 = vmatpush1.msra.mxu0 0.0
    %1947 = vmatprep.subr.mxu0 0.0
    %1948 = vmatpush1.msra.mxu0 0.0
    %1949 = vmatprep.subr.mxu0 0.0
    %1950 = vmatpush1.msra.mxu0 0.0
    %1951 = vmatprep.subr.mxu0 0.0
    %1952 = vmatpush1.msra.mxu0 0.0
    %1953 = vmatprep.subr.mxu0 0.0
    %1954 = vmatpush1.msra.mxu0 0.0
    %1955 = vmatprep.subr.mxu0 0.0
    %1956 = vmatpush1.msra.mxu0 0.0
    %1957 = vmatprep.subr.mxu0 0.0
    %1958 = vmatpush1.msra.mxu0 0.0
    %1959 = vmatprep.subr.mxu0 0.0
    %1960 = vmatpush1.msra.mxu0 0.0
    %1961 = vmatprep.subr.mxu0 0.0
    %1962 = vmatpush1.msra.mxu0 0.0
    %1963 = vmatprep.subr.mxu0 0.0
    %1964 = vmatpush1.msra.mxu0 0.0
    %1965 = vmatprep.subr.mxu0 0.0
    %1966 = vmatpush1.msra.mxu0 0.0
    %1967 = vmatprep.subr.mxu0 0.0
    %1968 = vmatpush1.msra.mxu0 0.0
    %1969 = vmatprep.subr.mxu0 0.0
    %1970 = vmatpush1.msra.mxu0 0.0
    %1971 = vmatprep.subr.mxu0 0.0
    %1972 = vmatpush1.msra.mxu0 0.0
    %1973 = vmatprep.subr.mxu0 0.0
    %1974 = vmatpush1.msra.mxu0 0.0
    %1975 = vmatprep.subr.mxu0 0.0
    %1976 = vmatpush1.msra.mxu0 0.0
    %1977 = vmatprep.subr.mxu0 0.0
    %1978 = vmatpush1.msra.mxu0 0.0
    %1979 = vmatprep.subr.mxu0 0.0
    %1980 = vmatpush1.msra.mxu0 0.0
    %1981 = vmatprep.mubr.f32.mxu0 0.0
    %1982 = vmatmul.mubr.f32.gmra.mrb[0].mxu0 %v1915
    %v1983 = vpop.f32.mrb[0].mxu0
    %v1984 = vadd.f32 0.0, %v1983
    %v1985 = vpop.f32.mrb[0].mxu0
    %1986 = vdwg.mxu0
    %v1988 = vsel %vm426, %v1908, 0
    %v1991 = vsel %vm426, %v1984, 0
    %1993 = vmatprep.subr.mxu0 0.0
    %1994 = vmatpush1.msra.mxu0 %v422
    %1995 = vmatprep.subr.mxu0 0.0
    %1996 = vmatpush1.msra.mxu0 0.0
    %1997 = vmatprep.subr.mxu0 0.0
    %1998 = vmatpush1.msra.mxu0 0.0
    %1999 = vmatprep.subr.mxu0 0.0
    %2000 = vmatpush1.msra.mxu0 0.0
    %2001 = vmatprep.subr.mxu0 0.0
    %2002 = vmatpush1.msra.mxu0 0.0
    %2003 = vmatprep.subr.mxu0 0.0
    %2004 = vmatpush1.msra.mxu0 0.0
    %2005 = vmatprep.subr.mxu0 0.0
    %2006 = vmatpush1.msra.mxu0 0.0
    %2007 = vmatprep.subr.mxu0 0.0
    %2008 = vmatpush1.msra.mxu0 0.0
    %2009 = vmatprep.subr.mxu0 0.0
    %2010 = vmatpush1.msra.mxu0 0.0
    %2011 = vmatprep.subr.mxu0 0.0
    %2012 = vmatpush1.msra.mxu0 0.0
    %2013 = vmatprep.subr.mxu0 0.0
    %2014 = vmatpush1.msra.mxu0 0.0
    %2015 = vmatprep.subr.mxu0 0.0
    %2016 = vmatpush1.msra.mxu0 0.0
    %2017 = vmatprep.subr.mxu0 0.0
    %2018 = vmatpush1.msra.mxu0 0.0
    %2019 = vmatprep.subr.mxu0 0.0
    %2020 = vmatpush1.msra.mxu0 0.0
    %2021 = vmatprep.subr.mxu0 0.0
    %2022 = vmatpush1.msra.mxu0 0.0
    %2023 = vmatprep.subr.mxu0 0.0
    %2024 = vmatpush1.msra.mxu0 0.0
    %2025 = vmatprep.subr.mxu0 0.0
    %2026 = vmatpush1.msra.mxu0 0.0
    %2027 = vmatprep.subr.mxu0 0.0
    %2028 = vmatpush1.msra.mxu0 0.0
    %2029 = vmatprep.subr.mxu0 0.0
    %2030 = vmatpush1.msra.mxu0 0.0
    %2031 = vmatprep.subr.mxu0 0.0
    %2032 = vmatpush1.msra.mxu0 0.0
    %2033 = vmatprep.subr.mxu0 0.0
    %2034 = vmatpush1.msra.mxu0 0.0
    %2035 = vmatprep.subr.mxu0 0.0
    %2036 = vmatpush1.msra.mxu0 0.0
    %2037 = vmatprep.subr.mxu0 0.0
    %2038 = vmatpush1.msra.mxu0 0.0
    %2039 = vmatprep.subr.mxu0 0.0
    %2040 = vmatpush1.msra.mxu0 0.0
    %2041 = vmatprep.subr.mxu0 0.0
    %2042 = vmatpush1.msra.mxu0 0.0
    %2043 = vmatprep.subr.mxu0 0.0
    %2044 = vmatpush1.msra.mxu0 0.0
    %2045 = vmatprep.subr.mxu0 0.0
    %2046 = vmatpush1.msra.mxu0 0.0
    %2047 = vmatprep.subr.mxu0 0.0
    %2048 = vmatpush1.msra.mxu0 0.0
    %2049 = vmatprep.subr.mxu0 0.0
    %2050 = vmatpush1.msra.mxu0 0.0
    %2051 = vmatprep.subr.mxu0 0.0
    %2052 = vmatpush1.msra.mxu0 0.0
    %2053 = vmatprep.subr.mxu0 0.0
    %2054 = vmatpush1.msra.mxu0 0.0
    %2055 = vmatprep.subr.mxu0 0.0
    %2056 = vmatpush1.msra.mxu0 0.0
    %2057 = vmatprep.mubr.f32.mxu0 0.0
    %2058 = vmatmul.mubr.f32.gmra.mrb[0].mxu0 %v1988
    %v2059 = vpop.f32.mrb[0].mxu0
    %v2060 = vadd.f32 0.0, %v2059
    %v2061 = vpop.f32.mrb[0].mxu0
    %2062 = vmatprep.mubr.f32.mxu0 0.0
    %2063 = vmatmul.mubr.f32.gmra.mrb[0].mxu0 %v1991
    %v2064 = vpop.f32.mrb[0].mxu0
    %v2065 = vadd.f32 0.0, %v2064
    %v2066 = vpop.f32.mrb[0].mxu0
    %2067 = vdwg.mxu0
    %v2068 = vadd.f32 %v1655, %v2060
    %v2069 = vadd.f32 %v1656, %v2065
    %v2070 = vld [vmem:[%s8] sm:$0x1]
    %v2072 = vlaneseq
    %v2073 = vshrl.u32 %v2072, 7
    %v2074 = vsub.s32 0, %v2073
    %v2075 = vrot.slane %v2070, %v2074
    %v2077 = vadd.f32 %v2068, %v2075
    %v2078 = vadd.f32 %v2069, %v2075
    %v2079 = vadd.f32 %v318, %v2077
    %v2080 = vadd.f32 %v323, %v2078
    %v2081 = vld [vmem:[#allocation10] sm:$0x1]
    %v2082 = vld [vmem:[#allocation11] sm:$0x1]
    %v2083 = vsel %vm337, %v2079, 0.0
    %2084 = vadd.xlane.f32.xlu0 %v2083
    %v2085 = vpop.xlane.xlu0 %2084
    %v2086 = vsel %vm337, %v2080, 0.0
    %2087 = vadd.xlane.f32.xlu0 %v2086
    %v2088 = vpop.xlane.xlu0 %2087
    %v2089 = vrcp.pop 32.0
    %v2090 = vmul.f32 %v2085, %v2089
    %v2091 = vmul.f32 %v2088, %v2089
    %v2092 = vsub.f32 %v2079, %v2090
    %v2093 = vsub.f32 %v2080, %v2091
    %v2094 = vmul.f32 %v2092, %v2092
    %v2095 = vmul.f32 %v2093, %v2093
    %v2096 = vsel %vm337, %v2094, 0.0
    %2097 = vadd.xlane.f32.xlu0 %v2096
    %v2098 = vpop.xlane.xlu0 %2097
    %v2099 = vsel %vm337, %v2095, 0.0
    %2100 = vadd.xlane.f32.xlu0 %v2099
    %v2101 = vpop.xlane.xlu0 %2100
    %v2102 = vmul.f32 %v2098, %v2089
    %v2103 = vmul.f32 %v2101, %v2089
    %v2104 = vadd.f32 %v2102, 1e-05
    %v2105 = vadd.f32 %v2103, 1e-05
    %v2106 = vrsqrt.pop %v2104
    %v2107 = vrsqrt.pop %v2105
    %v2108 = vmul.f32 %v2092, %v2106
    %v2109 = vmul.f32 %v2093, %v2107
    %v2111 = vlaneseq
    %v2112 = vshrl.u32 %v2111, 7
    %v2113 = vsub.s32 0, %v2112
    %v2114 = vrot.slane %v2081, %v2113
    %v2116 = vmul.f32 %v2108, %v2114
    %v2117 = vmul.f32 %v2109, %v2114
    %v2119 = vlaneseq
    %v2120 = vshrl.u32 %v2119, 7
    %v2121 = vsub.s32 0, %v2120
    %v2122 = vrot.slane %v2082, %v2121
    %v2124 = vadd.f32 %v2116, %v2122
    %v2125 = vadd.f32 %v2117, %v2122
    %v2126 = vld [vmem:[#allocation13] sm:$0xff]
    %v2127 = vld [vmem:[#allocation13 + $0x8] sm:$0xff]
    %v2128 = vld [vmem:[#allocation13 + $0x10] sm:$0xff]
    %v2129 = vld [vmem:[#allocation13 + $0x18] sm:$0xff]
    %v2130 = vld [vmem:[#allocation14] sm:$0x1]
    %v2132 = vlaneseq
    %v2133 = vshrl.u32 %v2132, 7
    %v2134 = vsub.s32 0, %v2133
    %v2135 = vrot.slane %v2130, %v2134
    %v2138 = vsel %vm337, %v2124, 0
    %v2141 = vsel %vm337, %v2125, 0
    %2143 = vmatprep.subr.mxu0 0.0
    %2144 = vmatpush1.msra.mxu0 %v2126
    %2145 = vmatprep.subr.mxu0 0.0
    %2146 = vmatpush1.msra.mxu0 %v2127
    %2147 = vmatprep.subr.mxu0 0.0
    %2148 = vmatpush1.msra.mxu0 %v2128
    %2149 = vmatprep.subr.mxu0 0.0
    %2150 = vmatpush1.msra.mxu0 %v2129
    %2151 = vmatprep.subr.mxu0 0.0
    %2152 = vmatpush1.msra.mxu0 0.0
    %2153 = vmatprep.subr.mxu0 0.0
    %2154 = vmatpush1.msra.mxu0 0.0
    %2155 = vmatprep.subr.mxu0 0.0
    %2156 = vmatpush1.msra.mxu0 0.0
    %2157 = vmatprep.subr.mxu0 0.0
    %2158 = vmatpush1.msra.mxu0 0.0
    %2159 = vmatprep.subr.mxu0 0.0
    %2160 = vmatpush1.msra.mxu0 0.0
    %2161 = vmatprep.subr.mxu0 0.0
    %2162 = vmatpush1.msra.mxu0 0.0
    %2163 = vmatprep.subr.mxu0 0.0
    %2164 = vmatpush1.msra.mxu0 0.0
    %2165 = vmatprep.subr.mxu0 0.0
    %2166 = vmatpush1.msra.mxu0 0.0
    %2167 = vmatprep.subr.mxu0 0.0
    %2168 = vmatpush1.msra.mxu0 0.0
    %2169 = vmatprep.subr.mxu0 0.0
    %2170 = vmatpush1.msra.mxu0 0.0
    %2171 = vmatprep.subr.mxu0 0.0
    %2172 = vmatpush1.msra.mxu0 0.0
    %2173 = vmatprep.subr.mxu0 0.0
    %2174 = vmatpush1.msra.mxu0 0.0
    %2175 = vmatprep.subr.mxu0 0.0
    %2176 = vmatpush1.msra.mxu0 0.0
    %2177 = vmatprep.subr.mxu0 0.0
    %2178 = vmatpush1.msra.mxu0 0.0
    %2179 = vmatprep.subr.mxu0 0.0
    %2180 = vmatpush1.msra.mxu0 0.0
    %2181 = vmatprep.subr.mxu0 0.0
    %2182 = vmatpush1.msra.mxu0 0.0
    %2183 = vmatprep.subr.mxu0 0.0
    %2184 = vmatpush1.msra.mxu0 0.0
    %2185 = vmatprep.subr.mxu0 0.0
    %2186 = vmatpush1.msra.mxu0 0.0
    %2187 = vmatprep.subr.mxu0 0.0
    %2188 = vmatpush1.msra.mxu0 0.0
    %2189 = vmatprep.subr.mxu0 0.0
    %2190 = vmatpush1.msra.mxu0 0.0
    %2191 = vmatprep.subr.mxu0 0.0
    %2192 = vmatpush1.msra.mxu0 0.0
    %2193 = vmatprep.subr.mxu0 0.0
    %2194 = vmatpush1.msra.mxu0 0.0
    %2195 = vmatprep.subr.mxu0 0.0
    %2196 = vmatpush1.msra.mxu0 0.0
    %2197 = vmatprep.subr.mxu0 0.0
    %2198 = vmatpush1.msra.mxu0 0.0
    %2199 = vmatprep.subr.mxu0 0.0
    %2200 = vmatpush1.msra.mxu0 0.0
    %2201 = vmatprep.subr.mxu0 0.0
    %2202 = vmatpush1.msra.mxu0 0.0
    %2203 = vmatprep.subr.mxu0 0.0
    %2204 = vmatpush1.msra.mxu0 0.0
    %2205 = vmatprep.subr.mxu0 0.0
    %2206 = vmatpush1.msra.mxu0 0.0
    %2207 = vmatprep.mubr.f32.mxu0 0.0
    %2208 = vmatmul.mubr.f32.gmra.mrb[0].mxu0 %v2138
    %v2209 = vpop.f32.mrb[0].mxu0
    %v2210 = vadd.f32 %v2135, %v2209
    %v2211 = vpop.f32.mrb[0].mxu0
    %2212 = vmatprep.mubr.f32.mxu0 0.0
    %2213 = vmatmul.mubr.f32.gmra.mrb[0].mxu0 %v2141
    %v2214 = vpop.f32.mrb[0].mxu0
    %v2215 = vadd.f32 %v2135, %v2214
    %v2216 = vpop.f32.mrb[0].mxu0
    %2217 = vdwg.mxu0
    %v2218 = vmax.f32 %v2210, 0.0
    %v2219 = vmax.f32 %v2215, 0.0
    %v2220 = vld [vmem:[%s13] sm:$0xff]
    %v2221 = vld [vmem:[%s13 + $0x8] sm:$0xff]
    %v2222 = vld [vmem:[%s13 + $0x10] sm:$0xff]
    %v2223 = vld [vmem:[%s13 + $0x18] sm:$0xff]
    %v2224 = vld [vmem:[%s13 + $0x20] sm:$0xff]
    %v2225 = vld [vmem:[%s13 + $0x28] sm:$0xff]
    %v2226 = vld [vmem:[%s13 + $0x30] sm:$0xff]
    %v2227 = vld [vmem:[%s13 + $0x38] sm:$0xff]
    %v2228 = vld [vmem:[#allocation16] sm:$0x1]
    %v2230 = vlaneseq
    %v2231 = vshrl.u32 %v2230, 7
    %v2232 = vsub.s32 0, %v2231
    %v2233 = vrot.slane %v2228, %v2232
    %vm2235 = vcmask 523264
    %v2237 = vsel %vm2235, %v2218, 0
    %v2240 = vsel %vm2235, %v2219, 0
    %2242 = vmatprep.subr.mxu0 0.0
    %2243 = vmatpush1.msra.mxu0 %v2220
    %2244 = vmatprep.subr.mxu0 0.0
    %2245 = vmatpush1.msra.mxu0 %v2221
    %2246 = vmatprep.subr.mxu0 0.0
    %2247 = vmatpush1.msra.mxu0 %v2222
    %2248 = vmatprep.subr.mxu0 0.0
    %2249 = vmatpush1.msra.mxu0 %v2223
    %2250 = vmatprep.subr.mxu0 0.0
    %2251 = vmatpush1.msra.mxu0 %v2224
    %2252 = vmatprep.subr.mxu0 0.0
    %2253 = vmatpush1.msra.mxu0 %v2225
    %2254 = vmatprep.subr.mxu0 0.0
    %2255 = vmatpush1.msra.mxu0 %v2226
    %2256 = vmatprep.subr.mxu0 0.0
    %2257 = vmatpush1.msra.mxu0 %v2227
    %2258 = vmatprep.subr.mxu0 0.0
    %2259 = vmatpush1.msra.mxu0 0.0
    %2260 = vmatprep.subr.mxu0 0.0
    %2261 = vmatpush1.msra.mxu0 0.0
    %2262 = vmatprep.subr.mxu0 0.0
    %2263 = vmatpush1.msra.mxu0 0.0
    %2264 = vmatprep.subr.mxu0 0.0
    %2265 = vmatpush1.msra.mxu0 0.0
    %2266 = vmatprep.subr.mxu0 0.0
    %2267 = vmatpush1.msra.mxu0 0.0
    %2268 = vmatprep.subr.mxu0 0.0
    %2269 = vmatpush1.msra.mxu0 0.0
    %2270 = vmatprep.subr.mxu0 0.0
    %2271 = vmatpush1.msra.mxu0 0.0
    %2272 = vmatprep.subr.mxu0 0.0
    %2273 = vmatpush1.msra.mxu0 0.0
    %2274 = vmatprep.subr.mxu0 0.0
    %2275 = vmatpush1.msra.mxu0 0.0
    %2276 = vmatprep.subr.mxu0 0.0
    %2277 = vmatpush1.msra.mxu0 0.0
    %2278 = vmatprep.subr.mxu0 0.0
    %2279 = vmatpush1.msra.mxu0 0.0
    %2280 = vmatprep.subr.mxu0 0.0
    %2281 = vmatpush1.msra.mxu0 0.0
    %2282 = vmatprep.subr.mxu0 0.0
    %2283 = vmatpush1.msra.mxu0 0.0
    %2284 = vmatprep.subr.mxu0 0.0
    %2285 = vmatpush1.msra.mxu0 0.0
    %2286 = vmatprep.subr.mxu0 0.0
    %2287 = vmatpush1.msra.mxu0 0.0
    %2288 = vmatprep.subr.mxu0 0.0
    %2289 = vmatpush1.msra.mxu0 0.0
    %2290 = vmatprep.subr.mxu0 0.0
    %2291 = vmatpush1.msra.mxu0 0.0
    %2292 = vmatprep.subr.mxu0 0.0
    %2293 = vmatpush1.msra.mxu0 0.0
    %2294 = vmatprep.subr.mxu0 0.0
    %2295 = vmatpush1.msra.mxu0 0.0
    %2296 = vmatprep.subr.mxu0 0.0
    %2297 = vmatpush1.msra.mxu0 0.0
    %2298 = vmatprep.subr.mxu0 0.0
    %2299 = vmatpush1.msra.mxu0 0.0
    %2300 = vmatprep.subr.mxu0 0.0
    %2301 = vmatpush1.msra.mxu0 0.0
    %2302 = vmatprep.subr.mxu0 0.0
    %2303 = vmatpush1.msra.mxu0 0.0
    %2304 = vmatprep.subr.mxu0 0.0
    %2305 = vmatpush1.msra.mxu0 0.0
    %2306 = vmatprep.mubr.f32.mxu0 0.0
    %2307 = vmatmul.mubr.f32.gmra.mrb[0].mxu0 %v2237
    %v2308 = vpop.f32.mrb[0].mxu0
    %v2309 = vadd.f32 %v2233, %v2308
    %v2310 = vpop.f32.mrb[0].mxu0
    %2311 = vmatprep.mubr.f32.mxu0 0.0
    %2312 = vmatmul.mubr.f32.gmra.mrb[0].mxu0 %v2240
    %v2313 = vpop.f32.mrb[0].mxu0
    %v2314 = vadd.f32 %v2233, %v2313
    %v2315 = vpop.f32.mrb[0].mxu0
    %2316 = vdwg.mxu0
    %v2317 = vadd.f32 %v2124, %v2309
    %v2318 = vadd.f32 %v2125, %v2314
    %v2319 = vld [vmem:[#allocation17] sm:$0x1]
    %v2320 = vld [vmem:[#allocation19] sm:$0x1]
    %v2321 = vsel %vm337, %v2317, 0.0
    %2322 = vadd.xlane.f32.xlu0 %v2321
    %v2323 = vpop.xlane.xlu0 %2322
    %v2324 = vsel %vm337, %v2318, 0.0
    %2325 = vadd.xlane.f32.xlu0 %v2324
    %v2326 = vpop.xlane.xlu0 %2325
    %v2327 = vmul.f32 %v2323, %v2089
    %v2328 = vmul.f32 %v2326, %v2089
    %v2329 = vsub.f32 %v2317, %v2327
    %v2330 = vsub.f32 %v2318, %v2328
    %v2331 = vmul.f32 %v2329, %v2329
    %v2332 = vmul.f32 %v2330, %v2330
    %v2333 = vsel %vm337, %v2331, 0.0
    %2334 = vadd.xlane.f32.xlu0 %v2333
    %v2335 = vpop.xlane.xlu0 %2334
    %v2336 = vsel %vm337, %v2332, 0.0
    %2337 = vadd.xlane.f32.xlu0 %v2336
    %v2338 = vpop.xlane.xlu0 %2337
    %v2339 = vmul.f32 %v2335, %v2089
    %v2340 = vmul.f32 %v2338, %v2089
    %v2341 = vadd.f32 %v2339, 1e-05
    %v2342 = vadd.f32 %v2340, 1e-05
    %v2343 = vrsqrt.pop %v2341
    %v2344 = vrsqrt.pop %v2342
    %v2345 = vmul.f32 %v2329, %v2343
    %v2346 = vmul.f32 %v2330, %v2344
    %v2348 = vlaneseq
    %v2349 = vshrl.u32 %v2348, 7
    %v2350 = vsub.s32 0, %v2349
    %v2351 = vrot.slane %v2319, %v2350
    %v2353 = vmul.f32 %v2345, %v2351
    %v2354 = vmul.f32 %v2346, %v2351
    %v2356 = vlaneseq
    %v2357 = vshrl.u32 %v2356, 7
    %v2358 = vsub.s32 0, %v2357
    %v2359 = vrot.slane %v2320, %v2358
    %v2361 = vadd.f32 %v2353, %v2359
    %v2362 = vadd.f32 %v2354, %v2359
    %s2363 = scalar_lea.vmem %s5, 32
    %v2364 = vld [vmem:[%s2363] sm:$0xff]
    %v2365 = vld [vmem:[%s2363 + $0x8] sm:$0xff]
    %v2366 = vld [vmem:[%s2363 + $0x10] sm:$0xff]
    %v2367 = vld [vmem:[%s2363 + $0x18] sm:$0xff]
    %s2368 = scalar_lea.vmem %s6, 1
    %v2369 = vld [vmem:[%s2368] sm:$0x1]
    %v2371 = vlaneseq
    %v2372 = vshrl.u32 %v2371, 7
    %v2373 = vsub.s32 0, %v2372
    %v2374 = vrot.slane %v2369, %v2373
    %v2377 = vsel %vm337, %v2361, 0
    %v2380 = vsel %vm337, %v2362, 0
    %2382 = vmatprep.subr.mxu0 0.0
    %2383 = vmatpush1.msra.mxu0 %v2364
    %2384 = vmatprep.subr.mxu0 0.0
    %2385 = vmatpush1.msra.mxu0 %v2365
    %2386 = vmatprep.subr.mxu0 0.0
    %2387 = vmatpush1.msra.mxu0 %v2366
    %2388 = vmatprep.subr.mxu0 0.0
    %2389 = vmatpush1.msra.mxu0 %v2367
    %2390 = vmatprep.subr.mxu0 0.0
    %2391 = vmatpush1.msra.mxu0 0.0
    %2392 = vmatprep.subr.mxu0 0.0
    %2393 = vmatpush1.msra.mxu0 0.0
    %2394 = vmatprep.subr.mxu0 0.0
    %2395 = vmatpush1.msra.mxu0 0.0
    %2396 = vmatprep.subr.mxu0 0.0
    %2397 = vmatpush1.msra.mxu0 0.0
    %2398 = vmatprep.subr.mxu0 0.0
    %2399 = vmatpush1.msra.mxu0 0.0
    %2400 = vmatprep.subr.mxu0 0.0
    %2401 = vmatpush1.msra.mxu0 0.0
    %2402 = vmatprep.subr.mxu0 0.0
    %2403 = vmatpush1.msra.mxu0 0.0
    %2404 = vmatprep.subr.mxu0 0.0
    %2405 = vmatpush1.msra.mxu0 0.0
    %2406 = vmatprep.subr.mxu0 0.0
    %2407 = vmatpush1.msra.mxu0 0.0
    %2408 = vmatprep.subr.mxu0 0.0
    %2409 = vmatpush1.msra.mxu0 0.0
    %2410 = vmatprep.subr.mxu0 0.0
    %2411 = vmatpush1.msra.mxu0 0.0
    %2412 = vmatprep.subr.mxu0 0.0
    %2413 = vmatpush1.msra.mxu0 0.0
    %2414 = vmatprep.subr.mxu0 0.0
    %2415 = vmatpush1.msra.mxu0 0.0
    %2416 = vmatprep.subr.mxu0 0.0
    %2417 = vmatpush1.msra.mxu0 0.0
    %2418 = vmatprep.subr.mxu0 0.0
    %2419 = vmatpush1.msra.mxu0 0.0
    %2420 = vmatprep.subr.mxu0 0.0
    %2421 = vmatpush1.msra.mxu0 0.0
    %2422 = vmatprep.subr.mxu0 0.0
    %2423 = vmatpush1.msra.mxu0 0.0
    %2424 = vmatprep.subr.mxu0 0.0
    %2425 = vmatpush1.msra.mxu0 0.0
    %2426 = vmatprep.subr.mxu0 0.0
    %2427 = vmatpush1.msra.mxu0 0.0
    %2428 = vmatprep.subr.mxu0 0.0
    %2429 = vmatpush1.msra.mxu0 0.0
    %2430 = vmatprep.subr.mxu0 0.0
    %2431 = vmatpush1.msra.mxu0 0.0
    %2432 = vmatprep.subr.mxu0 0.0
    %2433 = vmatpush1.msra.mxu0 0.0
    %2434 = vmatprep.subr.mxu0 0.0
    %2435 = vmatpush1.msra.mxu0 0.0
    %2436 = vmatprep.subr.mxu0 0.0
    %2437 = vmatpush1.msra.mxu0 0.0
    %2438 = vmatprep.subr.mxu0 0.0
    %2439 = vmatpush1.msra.mxu0 0.0
    %2440 = vmatprep.subr.mxu0 0.0
    %2441 = vmatpush1.msra.mxu0 0.0
    %2442 = vmatprep.subr.mxu0 0.0
    %2443 = vmatpush1.msra.mxu0 0.0
    %2444 = vmatprep.subr.mxu0 0.0
    %2445 = vmatpush1.msra.mxu0 0.0
    %2446 = vmatprep.mubr.f32.mxu0 0.0
    %2447 = vmatmul.mubr.f32.gmra.mrb[0].mxu0 %v2377
    %v2448 = vpop.f32.mrb[0].mxu0
    %v2449 = vadd.f32 %v2374, %v2448
    %v2450 = vpop.f32.mrb[0].mxu0
    %2451 = vmatprep.mubr.f32.mxu0 0.0
    %2452 = vmatmul.mubr.f32.gmra.mrb[0].mxu0 %v2380
    %v2453 = vpop.f32.mrb[0].mxu0
    %v2454 = vadd.f32 %v2374, %v2453
    %v2455 = vpop.f32.mrb[0].mxu0
    %2456 = vdwg.mxu0
    %s2457 = scalar_lea.vmem [#allocation8], 32
    %v2458 = vld [vmem:[%s2457] sm:$0xff]
    %v2459 = vld [vmem:[%s2457 + $0x8] sm:$0xff]
    %v2460 = vld [vmem:[%s2457 + $0x10] sm:$0xff]
    %v2461 = vld [vmem:[%s2457 + $0x18] sm:$0xff]
    %2463 = vrot.lane.b32.xlu0 %v2449, 96
    %v2464 = vpop.permute.xlu0 %2463
    %v2465 = vsel %vm426, %v2449, 0
    %v2467 = vsel %vm426, %v2464, 0
    %2469 = vmatprep.subr.mxu0 0.0
    %2470 = vmatpush1.xpose.msra.mxu0 %v2467
    %2471 = vmatprep.subr.mxu0 0.0
    %2472 = vmatpush1.xpose.msra.mxu0 0.0
    %2473 = vmatprep.subr.mxu0 0.0
    %2474 = vmatpush1.xpose.msra.mxu0 0.0
    %2475 = vmatprep.subr.mxu0 0.0
    %2476 = vmatpush1.xpose.msra.mxu0 0.0
    %2477 = vmatprep.subr.mxu0 0.0
    %2478 = vmatpush1.xpose.msra.mxu0 0.0
    %2479 = vmatprep.subr.mxu0 0.0
    %2480 = vmatpush1.xpose.msra.mxu0 0.0
    %2481 = vmatprep.subr.mxu0 0.0
    %2482 = vmatpush1.xpose.msra.mxu0 0.0
    %2483 = vmatprep.subr.mxu0 0.0
    %2484 = vmatpush1.xpose.msra.mxu0 0.0
    %2485 = vmatprep.subr.mxu0 0.0
    %2486 = vmatpush1.xpose.msra.mxu0 0.0
    %2487 = vmatprep.subr.mxu0 0.0
    %2488 = vmatpush1.xpose.msra.mxu0 0.0
    %2489 = vmatprep.subr.mxu0 0.0
    %2490 = vmatpush1.xpose.msra.mxu0 0.0
    %2491 = vmatprep.subr.mxu0 0.0
    %2492 = vmatpush1.xpose.msra.mxu0 0.0
    %2493 = vmatprep.subr.mxu0 0.0
    %2494 = vmatpush1.xpose.msra.mxu0 0.0
    %2495 = vmatprep.subr.mxu0 0.0
    %2496 = vmatpush1.xpose.msra.mxu0 0.0
    %2497 = vmatprep.subr.mxu0 0.0
    %2498 = vmatpush1.xpose.msra.mxu0 0.0
    %2499 = vmatprep.subr.mxu0 0.0
    %2500 = vmatpush1.xpose.msra.mxu0 0.0
    %2501 = vmatprep.subr.mxu0 0.0
    %2502 = vmatpush1.xpose.msra.mxu0 0.0
    %2503 = vmatprep.subr.mxu0 0.0
    %2504 = vmatpush1.xpose.msra.mxu0 0.0
    %2505 = vmatprep.subr.mxu0 0.0
    %2506 = vmatpush1.xpose.msra.mxu0 0.0
    %2507 = vmatprep.subr.mxu0 0.0
    %2508 = vmatpush1.xpose.msra.mxu0 0.0
    %2509 = vmatprep.subr.mxu0 0.0
    %2510 = vmatpush1.xpose.msra.mxu0 0.0
    %2511 = vmatprep.subr.mxu0 0.0
    %2512 = vmatpush1.xpose.msra.mxu0 0.0
    %2513 = vmatprep.subr.mxu0 0.0
    %2514 = vmatpush1.xpose.msra.mxu0 0.0
    %2515 = vmatprep.subr.mxu0 0.0
    %2516 = vmatpush1.xpose.msra.mxu0 0.0
    %2517 = vmatprep.subr.mxu0 0.0
    %2518 = vmatpush1.xpose.msra.mxu0 0.0
    %2519 = vmatprep.subr.mxu0 0.0
    %2520 = vmatpush1.xpose.msra.mxu0 0.0
    %2521 = vmatprep.subr.mxu0 0.0
    %2522 = vmatpush1.xpose.msra.mxu0 0.0
    %2523 = vmatprep.subr.mxu0 0.0
    %2524 = vmatpush1.xpose.msra.mxu0 0.0
    %2525 = vmatprep.subr.mxu0 0.0
    %2526 = vmatpush1.xpose.msra.mxu0 0.0
    %2527 = vmatprep.subr.mxu0 0.0
    %2528 = vmatpush1.xpose.msra.mxu0 0.0
    %2529 = vmatprep.subr.mxu0 0.0
    %2530 = vmatpush1.xpose.msra.mxu0 0.0
    %2531 = vmatprep.subr.mxu0 0.0
    %2532 = vmatpush1.xpose.msra.mxu0 0.0
    %2533 = vmatprep.mubr.f32.mxu0 0.0
    %2534 = vmatmul.mubr.f32.gmra.mrb[0].mxu0 %v2465
    %v2535 = vpop.f32.mrb[0].mxu0
    %v2536 = vadd.f32 0.0, %v2535
    %v2537 = vpop.f32.mrb[0].mxu0
    %2538 = vdwg.mxu0
    %2540 = vrot.lane.b32.xlu0 %v2454, 96
    %v2541 = vpop.permute.xlu0 %2540
    %v2542 = vsel %vm426, %v2454, 0
    %v2544 = vsel %vm426, %v2541, 0
    %2546 = vmatprep.subr.mxu0 0.0
    %2547 = vmatpush1.xpose.msra.mxu0 %v2544
    %2548 = vmatprep.subr.mxu0 0.0
    %2549 = vmatpush1.xpose.msra.mxu0 0.0
    %2550 = vmatprep.subr.mxu0 0.0
    %2551 = vmatpush1.xpose.msra.mxu0 0.0
    %2552 = vmatprep.subr.mxu0 0.0
    %2553 = vmatpush1.xpose.msra.mxu0 0.0
    %2554 = vmatprep.subr.mxu0 0.0
    %2555 = vmatpush1.xpose.msra.mxu0 0.0
    %2556 = vmatprep.subr.mxu0 0.0
    %2557 = vmatpush1.xpose.msra.mxu0 0.0
    %2558 = vmatprep.subr.mxu0 0.0
    %2559 = vmatpush1.xpose.msra.mxu0 0.0
    %2560 = vmatprep.subr.mxu0 0.0
    %2561 = vmatpush1.xpose.msra.mxu0 0.0
    %2562 = vmatprep.subr.mxu0 0.0
    %2563 = vmatpush1.xpose.msra.mxu0 0.0
    %2564 = vmatprep.subr.mxu0 0.0
    %2565 = vmatpush1.xpose.msra.mxu0 0.0
    %2566 = vmatprep.subr.mxu0 0.0
    %2567 = vmatpush1.xpose.msra.mxu0 0.0
    %2568 = vmatprep.subr.mxu0 0.0
    %2569 = vmatpush1.xpose.msra.mxu0 0.0
    %2570 = vmatprep.subr.mxu0 0.0
    %2571 = vmatpush1.xpose.msra.mxu0 0.0
    %2572 = vmatprep.subr.mxu0 0.0
    %2573 = vmatpush1.xpose.msra.mxu0 0.0
    %2574 = vmatprep.subr.mxu0 0.0
    %2575 = vmatpush1.xpose.msra.mxu0 0.0
    %2576 = vmatprep.subr.mxu0 0.0
    %2577 = vmatpush1.xpose.msra.mxu0 0.0
    %2578 = vmatprep.subr.mxu0 0.0
    %2579 = vmatpush1.xpose.msra.mxu0 0.0
    %2580 = vmatprep.subr.mxu0 0.0
    %2581 = vmatpush1.xpose.msra.mxu0 0.0
    %2582 = vmatprep.subr.mxu0 0.0
    %2583 = vmatpush1.xpose.msra.mxu0 0.0
    %2584 = vmatprep.subr.mxu0 0.0
    %2585 = vmatpush1.xpose.msra.mxu0 0.0
    %2586 = vmatprep.subr.mxu0 0.0
    %2587 = vmatpush1.xpose.msra.mxu0 0.0
    %2588 = vmatprep.subr.mxu0 0.0
    %2589 = vmatpush1.xpose.msra.mxu0 0.0
    %2590 = vmatprep.subr.mxu0 0.0
    %2591 = vmatpush1.xpose.msra.mxu0 0.0
    %2592 = vmatprep.subr.mxu0 0.0
    %2593 = vmatpush1.xpose.msra.mxu0 0.0
    %2594 = vmatprep.subr.mxu0 0.0
    %2595 = vmatpush1.xpose.msra.mxu0 0.0
    %2596 = vmatprep.subr.mxu0 0.0
    %2597 = vmatpush1.xpose.msra.mxu0 0.0
    %2598 = vmatprep.subr.mxu0 0.0
    %2599 = vmatpush1.xpose.msra.mxu0 0.0
    %2600 = vmatprep.subr.mxu0 0.0
    %2601 = vmatpush1.xpose.msra.mxu0 0.0
    %2602 = vmatprep.subr.mxu0 0.0
    %2603 = vmatpush1.xpose.msra.mxu0 0.0
    %2604 = vmatprep.subr.mxu0 0.0
    %2605 = vmatpush1.xpose.msra.mxu0 0.0
    %2606 = vmatprep.subr.mxu0 0.0
    %2607 = vmatpush1.xpose.msra.mxu0 0.0
    %2608 = vmatprep.subr.mxu0 0.0
    %2609 = vmatpush1.xpose.msra.mxu0 0.0
    %2610 = vmatprep.mubr.f32.mxu0 0.0
    %2611 = vmatmul.mubr.f32.gmra.mrb[0].mxu0 %v2542
    %v2612 = vpop.f32.mrb[0].mxu0
    %v2613 = vadd.f32 0.0, %v2612
    %v2614 = vpop.f32.mrb[0].mxu0
    %2615 = vdwg.mxu0
    %v2616 = vsel %vm426, %v2536, -inf
    %2617 = vmax.xlane.f32.xlu0 %v2616
    %v2618 = vpop.xlane.xlu0 %2617
    %v2619 = vsel %vm426, %v2613, -inf
    %2620 = vmax.xlane.f32.xlu0 %v2619
    %v2621 = vpop.xlane.xlu0 %2620
    %v2622 = vsub.f32 %v2536, %v2618
    %v2623 = vsub.f32 %v2613, %v2621
    %v2624 = vmul.f32 %v2622, 1.442695
    %v2625 = vpow.pop %v2624
    %v2626 = vmul.f32 %v2623, 1.442695
    %v2627 = vpow.pop %v2626
    %v2628 = vsel %vm426, %v2625, 0.0
    %2629 = vadd.xlane.f32.xlu0 %v2628
    %v2630 = vpop.xlane.xlu0 %2629
    %v2631 = vsel %vm426, %v2627, 0.0
    %2632 = vadd.xlane.f32.xlu0 %v2631
    %v2633 = vpop.xlane.xlu0 %2632
    %v2634 = vrcp.pop %v2630
    %v2635 = vrcp.pop %v2633
    %v2636 = vmul.f32 %v2625, %v2634
    %v2637 = vmul.f32 %v2627, %v2635
    %2638 = vrot.lane.b32.xlu0 %v2449, 64
    %v2639 = vpop.permute.xlu0 %2638
    %v2642 = vsel %vm426, %v2636, 0
    %2644 = vmatprep.subr.mxu0 0.0
    %2645 = vmatpush1.msra.mxu0 %v2639
    %2646 = vmatprep.subr.mxu0 0.0
    %2647 = vmatpush1.msra.mxu0 0.0
    %2648 = vmatprep.subr.mxu0 0.0
    %2649 = vmatpush1.msra.mxu0 0.0
    %2650 = vmatprep.subr.mxu0 0.0
    %2651 = vmatpush1.msra.mxu0 0.0
    %2652 = vmatprep.subr.mxu0 0.0
    %2653 = vmatpush1.msra.mxu0 0.0
    %2654 = vmatprep.subr.mxu0 0.0
    %2655 = vmatpush1.msra.mxu0 0.0
    %2656 = vmatprep.subr.mxu0 0.0
    %2657 = vmatpush1.msra.mxu0 0.0
    %2658 = vmatprep.subr.mxu0 0.0
    %2659 = vmatpush1.msra.mxu0 0.0
    %2660 = vmatprep.subr.mxu0 0.0
    %2661 = vmatpush1.msra.mxu0 0.0
    %2662 = vmatprep.subr.mxu0 0.0
    %2663 = vmatpush1.msra.mxu0 0.0
    %2664 = vmatprep.subr.mxu0 0.0
    %2665 = vmatpush1.msra.mxu0 0.0
    %2666 = vmatprep.subr.mxu0 0.0
    %2667 = vmatpush1.msra.mxu0 0.0
    %2668 = vmatprep.subr.mxu0 0.0
    %2669 = vmatpush1.msra.mxu0 0.0
    %2670 = vmatprep.subr.mxu0 0.0
    %2671 = vmatpush1.msra.mxu0 0.0
    %2672 = vmatprep.subr.mxu0 0.0
    %2673 = vmatpush1.msra.mxu0 0.0
    %2674 = vmatprep.subr.mxu0 0.0
    %2675 = vmatpush1.msra.mxu0 0.0
    %2676 = vmatprep.subr.mxu0 0.0
    %2677 = vmatpush1.msra.mxu0 0.0
    %2678 = vmatprep.subr.mxu0 0.0
    %2679 = vmatpush1.msra.mxu0 0.0
    %2680 = vmatprep.subr.mxu0 0.0
    %2681 = vmatpush1.msra.mxu0 0.0
    %2682 = vmatprep.subr.mxu0 0.0
    %2683 = vmatpush1.msra.mxu0 0.0
    %2684 = vmatprep.subr.mxu0 0.0
    %2685 = vmatpush1.msra.mxu0 0.0
    %2686 = vmatprep.subr.mxu0 0.0
    %2687 = vmatpush1.msra.mxu0 0.0
    %2688 = vmatprep.subr.mxu0 0.0
    %2689 = vmatpush1.msra.mxu0 0.0
    %2690 = vmatprep.subr.mxu0 0.0
    %2691 = vmatpush1.msra.mxu0 0.0
    %2692 = vmatprep.subr.mxu0 0.0
    %2693 = vmatpush1.msra.mxu0 0.0
    %2694 = vmatprep.subr.mxu0 0.0
    %2695 = vmatpush1.msra.mxu0 0.0
    %2696 = vmatprep.subr.mxu0 0.0
    %2697 = vmatpush1.msra.mxu0 0.0
    %2698 = vmatprep.subr.mxu0 0.0
    %2699 = vmatpush1.msra.mxu0 0.0
    %2700 = vmatprep.subr.mxu0 0.0
    %2701 = vmatpush1.msra.mxu0 0.0
    %2702 = vmatprep.subr.mxu0 0.0
    %2703 = vmatpush1.msra.mxu0 0.0
    %2704 = vmatprep.subr.mxu0 0.0
    %2705 = vmatpush1.msra.mxu0 0.0
    %2706 = vmatprep.subr.mxu0 0.0
    %2707 = vmatpush1.msra.mxu0 0.0
    %2708 = vmatprep.mubr.f32.mxu0 0.0
    %2709 = vmatmul.mubr.f32.gmra.mrb[0].mxu0 %v2642
    %v2710 = vpop.f32.mrb[0].mxu0
    %v2711 = vadd.f32 0.0, %v2710
    %v2712 = vpop.f32.mrb[0].mxu0
    %2713 = vdwg.mxu0
    %2714 = vrot.lane.b32.xlu0 %v2454, 64
    %v2715 = vpop.permute.xlu0 %2714
    %v2718 = vsel %vm426, %v2637, 0
    %2720 = vmatprep.subr.mxu0 0.0
    %2721 = vmatpush1.msra.mxu0 %v2715
    %2722 = vmatprep.subr.mxu0 0.0
    %2723 = vmatpush1.msra.mxu0 0.0
    %2724 = vmatprep.subr.mxu0 0.0
    %2725 = vmatpush1.msra.mxu0 0.0
    %2726 = vmatprep.subr.mxu0 0.0
    %2727 = vmatpush1.msra.mxu0 0.0
    %2728 = vmatprep.subr.mxu0 0.0
    %2729 = vmatpush1.msra.mxu0 0.0
    %2730 = vmatprep.subr.mxu0 0.0
    %2731 = vmatpush1.msra.mxu0 0.0
    %2732 = vmatprep.subr.mxu0 0.0
    %2733 = vmatpush1.msra.mxu0 0.0
    %2734 = vmatprep.subr.mxu0 0.0
    %2735 = vmatpush1.msra.mxu0 0.0
    %2736 = vmatprep.subr.mxu0 0.0
    %2737 = vmatpush1.msra.mxu0 0.0
    %2738 = vmatprep.subr.mxu0 0.0
    %2739 = vmatpush1.msra.mxu0 0.0
    %2740 = vmatprep.subr.mxu0 0.0
    %2741 = vmatpush1.msra.mxu0 0.0
    %2742 = vmatprep.subr.mxu0 0.0
    %2743 = vmatpush1.msra.mxu0 0.0
    %2744 = vmatprep.subr.mxu0 0.0
    %2745 = vmatpush1.msra.mxu0 0.0
    %2746 = vmatprep.subr.mxu0 0.0
    %2747 = vmatpush1.msra.mxu0 0.0
    %2748 = vmatprep.subr.mxu0 0.0
    %2749 = vmatpush1.msra.mxu0 0.0
    %2750 = vmatprep.subr.mxu0 0.0
    %2751 = vmatpush1.msra.mxu0 0.0
    %2752 = vmatprep.subr.mxu0 0.0
    %2753 = vmatpush1.msra.mxu0 0.0
    %2754 = vmatprep.subr.mxu0 0.0
    %2755 = vmatpush1.msra.mxu0 0.0
    %2756 = vmatprep.subr.mxu0 0.0
    %2757 = vmatpush1.msra.mxu0 0.0
    %2758 = vmatprep.subr.mxu0 0.0
    %2759 = vmatpush1.msra.mxu0 0.0
    %2760 = vmatprep.subr.mxu0 0.0
    %2761 = vmatpush1.msra.mxu0 0.0
    %2762 = vmatprep.subr.mxu0 0.0
    %2763 = vmatpush1.msra.mxu0 0.0
    %2764 = vmatprep.subr.mxu0 0.0
    %2765 = vmatpush1.msra.mxu0 0.0
    %2766 = vmatprep.subr.mxu0 0.0
    %2767 = vmatpush1.msra.mxu0 0.0
    %2768 = vmatprep.subr.mxu0 0.0
    %2769 = vmatpush1.msra.mxu0 0.0
    %2770 = vmatprep.subr.mxu0 0.0
    %2771 = vmatpush1.msra.mxu0 0.0
    %2772 = vmatprep.subr.mxu0 0.0
    %2773 = vmatpush1.msra.mxu0 0.0
    %2774 = vmatprep.subr.mxu0 0.0
    %2775 = vmatpush1.msra.mxu0 0.0
    %2776 = vmatprep.subr.mxu0 0.0
    %2777 = vmatpush1.msra.mxu0 0.0
    %2778 = vmatprep.subr.mxu0 0.0
    %2779 = vmatpush1.msra.mxu0 0.0
    %2780 = vmatprep.subr.mxu0 0.0
    %2781 = vmatpush1.msra.mxu0 0.0
    %2782 = vmatprep.subr.mxu0 0.0
    %2783 = vmatpush1.msra.mxu0 0.0
    %2784 = vmatprep.mubr.f32.mxu0 0.0
    %2785 = vmatmul.mubr.f32.gmra.mrb[0].mxu0 %v2718
    %v2786 = vpop.f32.mrb[0].mxu0
    %v2787 = vadd.f32 0.0, %v2786
    %v2788 = vpop.f32.mrb[0].mxu0
    %2789 = vdwg.mxu0
    %2790 = vrot.lane.b32.xlu0 %v2449, 120
    %v2791 = vpop.permute.xlu0 %2790
    %2792 = vrot.lane.b32.xlu0 %v2449, 88
    %v2793 = vpop.permute.xlu0 %2792
    %v2794 = vsel %vm426, %v2791, 0
    %v2796 = vsel %vm426, %v2793, 0
    %2798 = vmatprep.subr.mxu0 0.0
    %2799 = vmatpush1.xpose.msra.mxu0 %v2796
    %2800 = vmatprep.subr.mxu0 0.0
    %2801 = vmatpush1.xpose.msra.mxu0 0.0
    %2802 = vmatprep.subr.mxu0 0.0
    %2803 = vmatpush1.xpose.msra.mxu0 0.0
    %2804 = vmatprep.subr.mxu0 0.0
    %2805 = vmatpush1.xpose.msra.mxu0 0.0
    %2806 = vmatprep.subr.mxu0 0.0
    %2807 = vmatpush1.xpose.msra.mxu0 0.0
    %2808 = vmatprep.subr.mxu0 0.0
    %2809 = vmatpush1.xpose.msra.mxu0 0.0
    %2810 = vmatprep.subr.mxu0 0.0
    %2811 = vmatpush1.xpose.msra.mxu0 0.0
    %2812 = vmatprep.subr.mxu0 0.0
    %2813 = vmatpush1.xpose.msra.mxu0 0.0
    %2814 = vmatprep.subr.mxu0 0.0
    %2815 = vmatpush1.xpose.msra.mxu0 0.0
    %2816 = vmatprep.subr.mxu0 0.0
    %2817 = vmatpush1.xpose.msra.mxu0 0.0
    %2818 = vmatprep.subr.mxu0 0.0
    %2819 = vmatpush1.xpose.msra.mxu0 0.0
    %2820 = vmatprep.subr.mxu0 0.0
    %2821 = vmatpush1.xpose.msra.mxu0 0.0
    %2822 = vmatprep.subr.mxu0 0.0
    %2823 = vmatpush1.xpose.msra.mxu0 0.0
    %2824 = vmatprep.subr.mxu0 0.0
    %2825 = vmatpush1.xpose.msra.mxu0 0.0
    %2826 = vmatprep.subr.mxu0 0.0
    %2827 = vmatpush1.xpose.msra.mxu0 0.0
    %2828 = vmatprep.subr.mxu0 0.0
    %2829 = vmatpush1.xpose.msra.mxu0 0.0
    %2830 = vmatprep.subr.mxu0 0.0
    %2831 = vmatpush1.xpose.msra.mxu0 0.0
    %2832 = vmatprep.subr.mxu0 0.0
    %2833 = vmatpush1.xpose.msra.mxu0 0.0
    %2834 = vmatprep.subr.mxu0 0.0
    %2835 = vmatpush1.xpose.msra.mxu0 0.0
    %2836 = vmatprep.subr.mxu0 0.0
    %2837 = vmatpush1.xpose.msra.mxu0 0.0
    %2838 = vmatprep.subr.mxu0 0.0
    %2839 = vmatpush1.xpose.msra.mxu0 0.0
    %2840 = vmatprep.subr.mxu0 0.0
    %2841 = vmatpush1.xpose.msra.mxu0 0.0
    %2842 = vmatprep.subr.mxu0 0.0
    %2843 = vmatpush1.xpose.msra.mxu0 0.0
    %2844 = vmatprep.subr.mxu0 0.0
    %2845 = vmatpush1.xpose.msra.mxu0 0.0
    %2846 = vmatprep.subr.mxu0 0.0
    %2847 = vmatpush1.xpose.msra.mxu0 0.0
    %2848 = vmatprep.subr.mxu0 0.0
    %2849 = vmatpush1.xpose.msra.mxu0 0.0
    %2850 = vmatprep.subr.mxu0 0.0
    %2851 = vmatpush1.xpose.msra.mxu0 0.0
    %2852 = vmatprep.subr.mxu0 0.0
    %2853 = vmatpush1.xpose.msra.mxu0 0.0
    %2854 = vmatprep.subr.mxu0 0.0
    %2855 = vmatpush1.xpose.msra.mxu0 0.0
    %2856 = vmatprep.subr.mxu0 0.0
    %2857 = vmatpush1.xpose.msra.mxu0 0.0
    %2858 = vmatprep.subr.mxu0 0.0
    %2859 = vmatpush1.xpose.msra.mxu0 0.0
    %2860 = vmatprep.subr.mxu0 0.0
    %2861 = vmatpush1.xpose.msra.mxu0 0.0
    %2862 = vmatprep.mubr.f32.mxu0 0.0
    %2863 = vmatmul.mubr.f32.gmra.mrb[0].mxu0 %v2794
    %v2864 = vpop.f32.mrb[0].mxu0
    %v2865 = vadd.f32 0.0, %v2864
    %v2866 = vpop.f32.mrb[0].mxu0
    %2867 = vdwg.mxu0
    %2868 = vrot.lane.b32.xlu0 %v2454, 120
    %v2869 = vpop.permute.xlu0 %2868
    %2870 = vrot.lane.b32.xlu0 %v2454, 88
    %v2871 = vpop.permute.xlu0 %2870
    %v2872 = vsel %vm426, %v2869, 0
    %v2874 = vsel %vm426, %v2871, 0
    %2876 = vmatprep.subr.mxu0 0.0
    %2877 = vmatpush1.xpose.msra.mxu0 %v2874
    %2878 = vmatprep.subr.mxu0 0.0
    %2879 = vmatpush1.xpose.msra.mxu0 0.0
    %2880 = vmatprep.subr.mxu0 0.0
    %2881 = vmatpush1.xpose.msra.mxu0 0.0
    %2882 = vmatprep.subr.mxu0 0.0
    %2883 = vmatpush1.xpose.msra.mxu0 0.0
    %2884 = vmatprep.subr.mxu0 0.0
    %2885 = vmatpush1.xpose.msra.mxu0 0.0
    %2886 = vmatprep.subr.mxu0 0.0
    %2887 = vmatpush1.xpose.msra.mxu0 0.0
    %2888 = vmatprep.subr.mxu0 0.0
    %2889 = vmatpush1.xpose.msra.mxu0 0.0
    %2890 = vmatprep.subr.mxu0 0.0
    %2891 = vmatpush1.xpose.msra.mxu0 0.0
    %2892 = vmatprep.subr.mxu0 0.0
    %2893 = vmatpush1.xpose.msra.mxu0 0.0
    %2894 = vmatprep.subr.mxu0 0.0
    %2895 = vmatpush1.xpose.msra.mxu0 0.0
    %2896 = vmatprep.subr.mxu0 0.0
    %2897 = vmatpush1.xpose.msra.mxu0 0.0
    %2898 = vmatprep.subr.mxu0 0.0
    %2899 = vmatpush1.xpose.msra.mxu0 0.0
    %2900 = vmatprep.subr.mxu0 0.0
    %2901 = vmatpush1.xpose.msra.mxu0 0.0
    %2902 = vmatprep.subr.mxu0 0.0
    %2903 = vmatpush1.xpose.msra.mxu0 0.0
    %2904 = vmatprep.subr.mxu0 0.0
    %2905 = vmatpush1.xpose.msra.mxu0 0.0
    %2906 = vmatprep.subr.mxu0 0.0
    %2907 = vmatpush1.xpose.msra.mxu0 0.0
    %2908 = vmatprep.subr.mxu0 0.0
    %2909 = vmatpush1.xpose.msra.mxu0 0.0
    %2910 = vmatprep.subr.mxu0 0.0
    %2911 = vmatpush1.xpose.msra.mxu0 0.0
    %2912 = vmatprep.subr.mxu0 0.0
    %2913 = vmatpush1.xpose.msra.mxu0 0.0
    %2914 = vmatprep.subr.mxu0 0.0
    %2915 = vmatpush1.xpose.msra.mxu0 0.0
    %2916 = vmatprep.subr.mxu0 0.0
    %2917 = vmatpush1.xpose.msra.mxu0 0.0
    %2918 = vmatprep.subr.mxu0 0.0
    %2919 = vmatpush1.xpose.msra.mxu0 0.0
    %2920 = vmatprep.subr.mxu0 0.0
    %2921 = vmatpush1.xpose.msra.mxu0 0.0
    %2922 = vmatprep.subr.mxu0 0.0
    %2923 = vmatpush1.xpose.msra.mxu0 0.0
    %2924 = vmatprep.subr.mxu0 0.0
    %2925 = vmatpush1.xpose.msra.mxu0 0.0
    %2926 = vmatprep.subr.mxu0 0.0
    %2927 = vmatpush1.xpose.msra.mxu0 0.0
    %2928 = vmatprep.subr.mxu0 0.0
    %2929 = vmatpush1.xpose.msra.mxu0 0.0
    %2930 = vmatprep.subr.mxu0 0.0
    %2931 = vmatpush1.xpose.msra.mxu0 0.0
    %2932 = vmatprep.subr.mxu0 0.0
    %2933 = vmatpush1.xpose.msra.mxu0 0.0
    %2934 = vmatprep.subr.mxu0 0.0
    %2935 = vmatpush1.xpose.msra.mxu0 0.0
    %2936 = vmatprep.subr.mxu0 0.0
    %2937 = vmatpush1.xpose.msra.mxu0 0.0
    %2938 = vmatprep.subr.mxu0 0.0
    %2939 = vmatpush1.xpose.msra.mxu0 0.0
    %2940 = vmatprep.mubr.f32.mxu0 0.0
    %2941 = vmatmul.mubr.f32.gmra.mrb[0].mxu0 %v2872
    %v2942 = vpop.f32.mrb[0].mxu0
    %v2943 = vadd.f32 0.0, %v2942
    %v2944 = vpop.f32.mrb[0].mxu0
    %2945 = vdwg.mxu0
    %v2946 = vsel %vm426, %v2865, -inf
    %2947 = vmax.xlane.f32.xlu0 %v2946
    %v2948 = vpop.xlane.xlu0 %2947
    %v2949 = vsel %vm426, %v2943, -inf
    %2950 = vmax.xlane.f32.xlu0 %v2949
    %v2951 = vpop.xlane.xlu0 %2950
    %v2952 = vsub.f32 %v2865, %v2948
    %v2953 = vsub.f32 %v2943, %v2951
    %v2954 = vmul.f32 %v2952, 1.442695
    %v2955 = vpow.pop %v2954
    %v2956 = vmul.f32 %v2953, 1.442695
    %v2957 = vpow.pop %v2956
    %v2958 = vsel %vm426, %v2955, 0.0
    %2959 = vadd.xlane.f32.xlu0 %v2958
    %v2960 = vpop.xlane.xlu0 %2959
    %v2961 = vsel %vm426, %v2957, 0.0
    %2962 = vadd.xlane.f32.xlu0 %v2961
    %v2963 = vpop.xlane.xlu0 %2962
    %v2964 = vrcp.pop %v2960
    %v2965 = vrcp.pop %v2963
    %v2966 = vmul.f32 %v2955, %v2964
    %v2967 = vmul.f32 %v2957, %v2965
    %2968 = vrot.lane.b32.xlu0 %v2449, 56
    %v2969 = vpop.permute.xlu0 %2968
    %v2972 = vsel %vm426, %v2966, 0
    %2974 = vmatprep.subr.mxu0 0.0
    %2975 = vmatpush1.msra.mxu0 %v2969
    %2976 = vmatprep.subr.mxu0 0.0
    %2977 = vmatpush1.msra.mxu0 0.0
    %2978 = vmatprep.subr.mxu0 0.0
    %2979 = vmatpush1.msra.mxu0 0.0
    %2980 = vmatprep.subr.mxu0 0.0
    %2981 = vmatpush1.msra.mxu0 0.0
    %2982 = vmatprep.subr.mxu0 0.0
    %2983 = vmatpush1.msra.mxu0 0.0
    %2984 = vmatprep.subr.mxu0 0.0
    %2985 = vmatpush1.msra.mxu0 0.0
    %2986 = vmatprep.subr.mxu0 0.0
    %2987 = vmatpush1.msra.mxu0 0.0
    %2988 = vmatprep.subr.mxu0 0.0
    %2989 = vmatpush1.msra.mxu0 0.0
    %2990 = vmatprep.subr.mxu0 0.0
    %2991 = vmatpush1.msra.mxu0 0.0
    %2992 = vmatprep.subr.mxu0 0.0
    %2993 = vmatpush1.msra.mxu0 0.0
    %2994 = vmatprep.subr.mxu0 0.0
    %2995 = vmatpush1.msra.mxu0 0.0
    %2996 = vmatprep.subr.mxu0 0.0
    %2997 = vmatpush1.msra.mxu0 0.0
    %2998 = vmatprep.subr.mxu0 0.0
    %2999 = vmatpush1.msra.mxu0 0.0
    %3000 = vmatprep.subr.mxu0 0.0
    %3001 = vmatpush1.msra.mxu0 0.0
    %3002 = vmatprep.subr.mxu0 0.0
    %3003 = vmatpush1.msra.mxu0 0.0
    %3004 = vmatprep.subr.mxu0 0.0
    %3005 = vmatpush1.msra.mxu0 0.0
    %3006 = vmatprep.subr.mxu0 0.0
    %3007 = vmatpush1.msra.mxu0 0.0
    %3008 = vmatprep.subr.mxu0 0.0
    %3009 = vmatpush1.msra.mxu0 0.0
    %3010 = vmatprep.subr.mxu0 0.0
    %3011 = vmatpush1.msra.mxu0 0.0
    %3012 = vmatprep.subr.mxu0 0.0
    %3013 = vmatpush1.msra.mxu0 0.0
    %3014 = vmatprep.subr.mxu0 0.0
    %3015 = vmatpush1.msra.mxu0 0.0
    %3016 = vmatprep.subr.mxu0 0.0
    %3017 = vmatpush1.msra.mxu0 0.0
    %3018 = vmatprep.subr.mxu0 0.0
    %3019 = vmatpush1.msra.mxu0 0.0
    %3020 = vmatprep.subr.mxu0 0.0
    %3021 = vmatpush1.msra.mxu0 0.0
    %3022 = vmatprep.subr.mxu0 0.0
    %3023 = vmatpush1.msra.mxu0 0.0
    %3024 = vmatprep.subr.mxu0 0.0
    %3025 = vmatpush1.msra.mxu0 0.0
    %3026 = vmatprep.subr.mxu0 0.0
    %3027 = vmatpush1.msra.mxu0 0.0
    %3028 = vmatprep.subr.mxu0 0.0
    %3029 = vmatpush1.msra.mxu0 0.0
    %3030 = vmatprep.subr.mxu0 0.0
    %3031 = vmatpush1.msra.mxu0 0.0
    %3032 = vmatprep.subr.mxu0 0.0
    %3033 = vmatpush1.msra.mxu0 0.0
    %3034 = vmatprep.subr.mxu0 0.0
    %3035 = vmatpush1.msra.mxu0 0.0
    %3036 = vmatprep.subr.mxu0 0.0
    %3037 = vmatpush1.msra.mxu0 0.0
    %3038 = vmatprep.mubr.f32.mxu0 0.0
    %3039 = vmatmul.mubr.f32.gmra.mrb[0].mxu0 %v2972
    %v3040 = vpop.f32.mrb[0].mxu0
    %v3041 = vadd.f32 0.0, %v3040
    %v3042 = vpop.f32.mrb[0].mxu0
    %3043 = vdwg.mxu0
    %3044 = vrot.lane.b32.xlu0 %v2454, 56
    %v3045 = vpop.permute.xlu0 %3044
    %v3048 = vsel %vm426, %v2967, 0
    %3050 = vmatprep.subr.mxu0 0.0
    %3051 = vmatpush1.msra.mxu0 %v3045
    %3052 = vmatprep.subr.mxu0 0.0
    %3053 = vmatpush1.msra.mxu0 0.0
    %3054 = vmatprep.subr.mxu0 0.0
    %3055 = vmatpush1.msra.mxu0 0.0
    %3056 = vmatprep.subr.mxu0 0.0
    %3057 = vmatpush1.msra.mxu0 0.0
    %3058 = vmatprep.subr.mxu0 0.0
    %3059 = vmatpush1.msra.mxu0 0.0
    %3060 = vmatprep.subr.mxu0 0.0
    %3061 = vmatpush1.msra.mxu0 0.0
    %3062 = vmatprep.subr.mxu0 0.0
    %3063 = vmatpush1.msra.mxu0 0.0
    %3064 = vmatprep.subr.mxu0 0.0
    %3065 = vmatpush1.msra.mxu0 0.0
    %3066 = vmatprep.subr.mxu0 0.0
    %3067 = vmatpush1.msra.mxu0 0.0
    %3068 = vmatprep.subr.mxu0 0.0
    %3069 = vmatpush1.msra.mxu0 0.0
    %3070 = vmatprep.subr.mxu0 0.0
    %3071 = vmatpush1.msra.mxu0 0.0
    %3072 = vmatprep.subr.mxu0 0.0
    %3073 = vmatpush1.msra.mxu0 0.0
    %3074 = vmatprep.subr.mxu0 0.0
    %3075 = vmatpush1.msra.mxu0 0.0
    %3076 = vmatprep.subr.mxu0 0.0
    %3077 = vmatpush1.msra.mxu0 0.0
    %3078 = vmatprep.subr.mxu0 0.0
    %3079 = vmatpush1.msra.mxu0 0.0
    %3080 = vmatprep.subr.mxu0 0.0
    %3081 = vmatpush1.msra.mxu0 0.0
    %3082 = vmatprep.subr.mxu0 0.0
    %3083 = vmatpush1.msra.mxu0 0.0
    %3084 = vmatprep.subr.mxu0 0.0
    %3085 = vmatpush1.msra.mxu0 0.0
    %3086 = vmatprep.subr.mxu0 0.0
    %3087 = vmatpush1.msra.mxu0 0.0
    %3088 = vmatprep.subr.mxu0 0.0
    %3089 = vmatpush1.msra.mxu0 0.0
    %3090 = vmatprep.subr.mxu0 0.0
    %3091 = vmatpush1.msra.mxu0 0.0
    %3092 = vmatprep.subr.mxu0 0.0
    %3093 = vmatpush1.msra.mxu0 0.0
    %3094 = vmatprep.subr.mxu0 0.0
    %3095 = vmatpush1.msra.mxu0 0.0
    %3096 = vmatprep.subr.mxu0 0.0
    %3097 = vmatpush1.msra.mxu0 0.0
    %3098 = vmatprep.subr.mxu0 0.0
    %3099 = vmatpush1.msra.mxu0 0.0
    %3100 = vmatprep.subr.mxu0 0.0
    %3101 = vmatpush1.msra.mxu0 0.0
    %3102 = vmatprep.subr.mxu0 0.0
    %3103 = vmatpush1.msra.mxu0 0.0
    %3104 = vmatprep.subr.mxu0 0.0
    %3105 = vmatpush1.msra.mxu0 0.0
    %3106 = vmatprep.subr.mxu0 0.0
    %3107 = vmatpush1.msra.mxu0 0.0
    %3108 = vmatprep.subr.mxu0 0.0
    %3109 = vmatpush1.msra.mxu0 0.0
    %3110 = vmatprep.subr.mxu0 0.0
    %3111 = vmatpush1.msra.mxu0 0.0
    %3112 = vmatprep.subr.mxu0 0.0
    %3113 = vmatpush1.msra.mxu0 0.0
    %3114 = vmatprep.mubr.f32.mxu0 0.0
    %3115 = vmatmul.mubr.f32.gmra.mrb[0].mxu0 %v3048
    %v3116 = vpop.f32.mrb[0].mxu0
    %v3117 = vadd.f32 0.0, %v3116
    %v3118 = vpop.f32.mrb[0].mxu0
    %3119 = vdwg.mxu0
    %v3121 = vsel %vm426, %v3041, 0
    %v3124 = vsel %vm426, %v3117, 0
    %3126 = vmatprep.subr.mxu0 0.0
    %3127 = vmatpush1.msra.mxu0 %v2459
    %3128 = vmatprep.subr.mxu0 0.0
    %3129 = vmatpush1.msra.mxu0 0.0
    %3130 = vmatprep.subr.mxu0 0.0
    %3131 = vmatpush1.msra.mxu0 0.0
    %3132 = vmatprep.subr.mxu0 0.0
    %3133 = vmatpush1.msra.mxu0 0.0
    %3134 = vmatprep.subr.mxu0 0.0
    %3135 = vmatpush1.msra.mxu0 0.0
    %3136 = vmatprep.subr.mxu0 0.0
    %3137 = vmatpush1.msra.mxu0 0.0
    %3138 = vmatprep.subr.mxu0 0.0
    %3139 = vmatpush1.msra.mxu0 0.0
    %3140 = vmatprep.subr.mxu0 0.0
    %3141 = vmatpush1.msra.mxu0 0.0
    %3142 = vmatprep.subr.mxu0 0.0
    %3143 = vmatpush1.msra.mxu0 0.0
    %3144 = vmatprep.subr.mxu0 0.0
    %3145 = vmatpush1.msra.mxu0 0.0
    %3146 = vmatprep.subr.mxu0 0.0
    %3147 = vmatpush1.msra.mxu0 0.0
    %3148 = vmatprep.subr.mxu0 0.0
    %3149 = vmatpush1.msra.mxu0 0.0
    %3150 = vmatprep.subr.mxu0 0.0
    %3151 = vmatpush1.msra.mxu0 0.0
    %3152 = vmatprep.subr.mxu0 0.0
    %3153 = vmatpush1.msra.mxu0 0.0
    %3154 = vmatprep.subr.mxu0 0.0
    %3155 = vmatpush1.msra.mxu0 0.0
    %3156 = vmatprep.subr.mxu0 0.0
    %3157 = vmatpush1.msra.mxu0 0.0
    %3158 = vmatprep.subr.mxu0 0.0
    %3159 = vmatpush1.msra.mxu0 0.0
    %3160 = vmatprep.subr.mxu0 0.0
    %3161 = vmatpush1.msra.mxu0 0.0
    %3162 = vmatprep.subr.mxu0 0.0
    %3163 = vmatpush1.msra.mxu0 0.0
    %3164 = vmatprep.subr.mxu0 0.0
    %3165 = vmatpush1.msra.mxu0 0.0
    %3166 = vmatprep.subr.mxu0 0.0
    %3167 = vmatpush1.msra.mxu0 0.0
    %3168 = vmatprep.subr.mxu0 0.0
    %3169 = vmatpush1.msra.mxu0 0.0
    %3170 = vmatprep.subr.mxu0 0.0
    %3171 = vmatpush1.msra.mxu0 0.0
    %3172 = vmatprep.subr.mxu0 0.0
    %3173 = vmatpush1.msra.mxu0 0.0
    %3174 = vmatprep.subr.mxu0 0.0
    %3175 = vmatpush1.msra.mxu0 0.0
    %3176 = vmatprep.subr.mxu0 0.0
    %3177 = vmatpush1.msra.mxu0 0.0
    %3178 = vmatprep.subr.mxu0 0.0
    %3179 = vmatpush1.msra.mxu0 0.0
    %3180 = vmatprep.subr.mxu0 0.0
    %3181 = vmatpush1.msra.mxu0 0.0
    %3182 = vmatprep.subr.mxu0 0.0
    %3183 = vmatpush1.msra.mxu0 0.0
    %3184 = vmatprep.subr.mxu0 0.0
    %3185 = vmatpush1.msra.mxu0 0.0
    %3186 = vmatprep.subr.mxu0 0.0
    %3187 = vmatpush1.msra.mxu0 0.0
    %3188 = vmatprep.subr.mxu0 0.0
    %3189 = vmatpush1.msra.mxu0 0.0
    %3190 = vmatprep.mubr.f32.mxu0 0.0
    %3191 = vmatmul.mubr.f32.gmra.mrb[0].mxu0 %v3121
    %v3192 = vpop.f32.mrb[0].mxu0
    %v3193 = vadd.f32 0.0, %v3192
    %v3194 = vpop.f32.mrb[0].mxu0
    %3195 = vmatprep.mubr.f32.mxu0 0.0
    %3196 = vmatmul.mubr.f32.gmra.mrb[0].mxu0 %v3124
    %v3197 = vpop.f32.mrb[0].mxu0
    %v3198 = vadd.f32 0.0, %v3197
    %v3199 = vpop.f32.mrb[0].mxu0
    %3200 = vdwg.mxu0
    %v3202 = vsel %vm426, %v2711, 0
    %v3205 = vsel %vm426, %v2787, 0
    %3207 = vmatprep.subr.mxu0 0.0
    %3208 = vmatpush1.msra.mxu0 %v2458
    %3209 = vmatprep.subr.mxu0 0.0
    %3210 = vmatpush1.msra.mxu0 0.0
    %3211 = vmatprep.subr.mxu0 0.0
    %3212 = vmatpush1.msra.mxu0 0.0
    %3213 = vmatprep.subr.mxu0 0.0
    %3214 = vmatpush1.msra.mxu0 0.0
    %3215 = vmatprep.subr.mxu0 0.0
    %3216 = vmatpush1.msra.mxu0 0.0
    %3217 = vmatprep.subr.mxu0 0.0
    %3218 = vmatpush1.msra.mxu0 0.0
    %3219 = vmatprep.subr.mxu0 0.0
    %3220 = vmatpush1.msra.mxu0 0.0
    %3221 = vmatprep.subr.mxu0 0.0
    %3222 = vmatpush1.msra.mxu0 0.0
    %3223 = vmatprep.subr.mxu0 0.0
    %3224 = vmatpush1.msra.mxu0 0.0
    %3225 = vmatprep.subr.mxu0 0.0
    %3226 = vmatpush1.msra.mxu0 0.0
    %3227 = vmatprep.subr.mxu0 0.0
    %3228 = vmatpush1.msra.mxu0 0.0
    %3229 = vmatprep.subr.mxu0 0.0
    %3230 = vmatpush1.msra.mxu0 0.0
    %3231 = vmatprep.subr.mxu0 0.0
    %3232 = vmatpush1.msra.mxu0 0.0
    %3233 = vmatprep.subr.mxu0 0.0
    %3234 = vmatpush1.msra.mxu0 0.0
    %3235 = vmatprep.subr.mxu0 0.0
    %3236 = vmatpush1.msra.mxu0 0.0
    %3237 = vmatprep.subr.mxu0 0.0
    %3238 = vmatpush1.msra.mxu0 0.0
    %3239 = vmatprep.subr.mxu0 0.0
    %3240 = vmatpush1.msra.mxu0 0.0
    %3241 = vmatprep.subr.mxu0 0.0
    %3242 = vmatpush1.msra.mxu0 0.0
    %3243 = vmatprep.subr.mxu0 0.0
    %3244 = vmatpush1.msra.mxu0 0.0
    %3245 = vmatprep.subr.mxu0 0.0
    %3246 = vmatpush1.msra.mxu0 0.0
    %3247 = vmatprep.subr.mxu0 0.0
    %3248 = vmatpush1.msra.mxu0 0.0
    %3249 = vmatprep.subr.mxu0 0.0
    %3250 = vmatpush1.msra.mxu0 0.0
    %3251 = vmatprep.subr.mxu0 0.0
    %3252 = vmatpush1.msra.mxu0 0.0
    %3253 = vmatprep.subr.mxu0 0.0
    %3254 = vmatpush1.msra.mxu0 0.0
    %3255 = vmatprep.subr.mxu0 0.0
    %3256 = vmatpush1.msra.mxu0 0.0
    %3257 = vmatprep.subr.mxu0 0.0
    %3258 = vmatpush1.msra.mxu0 0.0
    %3259 = vmatprep.subr.mxu0 0.0
    %3260 = vmatpush1.msra.mxu0 0.0
    %3261 = vmatprep.subr.mxu0 0.0
    %3262 = vmatpush1.msra.mxu0 0.0
    %3263 = vmatprep.subr.mxu0 0.0
    %3264 = vmatpush1.msra.mxu0 0.0
    %3265 = vmatprep.subr.mxu0 0.0
    %3266 = vmatpush1.msra.mxu0 0.0
    %3267 = vmatprep.subr.mxu0 0.0
    %3268 = vmatpush1.msra.mxu0 0.0
    %3269 = vmatprep.subr.mxu0 0.0
    %3270 = vmatpush1.msra.mxu0 0.0
    %3271 = vmatprep.mubr.f32.mxu0 0.0
    %3272 = vmatmul.mubr.f32.gmra.mrb[0].mxu0 %v3202
    %v3273 = vpop.f32.mrb[0].mxu0
    %v3274 = vadd.f32 %v3193, %v3273
    %v3275 = vpop.f32.mrb[0].mxu0
    %3276 = vmatprep.mubr.f32.mxu0 0.0
    %3277 = vmatmul.mubr.f32.gmra.mrb[0].mxu0 %v3205
    %v3278 = vpop.f32.mrb[0].mxu0
    %v3279 = vadd.f32 %v3198, %v3278
    %v3280 = vpop.f32.mrb[0].mxu0
    %3281 = vdwg.mxu0
    %3282 = vrot.lane.b32.xlu0 %v2449, 112
    %v3283 = vpop.permute.xlu0 %3282
    %3284 = vrot.lane.b32.xlu0 %v2449, 80
    %v3285 = vpop.permute.xlu0 %3284
    %v3286 = vsel %vm426, %v3283, 0
    %v3288 = vsel %vm426, %v3285, 0
    %3290 = vmatprep.subr.mxu0 0.0
    %3291 = vmatpush1.xpose.msra.mxu0 %v3288
    %3292 = vmatprep.subr.mxu0 0.0
    %3293 = vmatpush1.xpose.msra.mxu0 0.0
    %3294 = vmatprep.subr.mxu0 0.0
    %3295 = vmatpush1.xpose.msra.mxu0 0.0
    %3296 = vmatprep.subr.mxu0 0.0
    %3297 = vmatpush1.xpose.msra.mxu0 0.0
    %3298 = vmatprep.subr.mxu0 0.0
    %3299 = vmatpush1.xpose.msra.mxu0 0.0
    %3300 = vmatprep.subr.mxu0 0.0
    %3301 = vmatpush1.xpose.msra.mxu0 0.0
    %3302 = vmatprep.subr.mxu0 0.0
    %3303 = vmatpush1.xpose.msra.mxu0 0.0
    %3304 = vmatprep.subr.mxu0 0.0
    %3305 = vmatpush1.xpose.msra.mxu0 0.0
    %3306 = vmatprep.subr.mxu0 0.0
    %3307 = vmatpush1.xpose.msra.mxu0 0.0
    %3308 = vmatprep.subr.mxu0 0.0
    %3309 = vmatpush1.xpose.msra.mxu0 0.0
    %3310 = vmatprep.subr.mxu0 0.0
    %3311 = vmatpush1.xpose.msra.mxu0 0.0
    %3312 = vmatprep.subr.mxu0 0.0
    %3313 = vmatpush1.xpose.msra.mxu0 0.0
    %3314 = vmatprep.subr.mxu0 0.0
    %3315 = vmatpush1.xpose.msra.mxu0 0.0
    %3316 = vmatprep.subr.mxu0 0.0
    %3317 = vmatpush1.xpose.msra.mxu0 0.0
    %3318 = vmatprep.subr.mxu0 0.0
    %3319 = vmatpush1.xpose.msra.mxu0 0.0
    %3320 = vmatprep.subr.mxu0 0.0
    %3321 = vmatpush1.xpose.msra.mxu0 0.0
    %3322 = vmatprep.subr.mxu0 0.0
    %3323 = vmatpush1.xpose.msra.mxu0 0.0
    %3324 = vmatprep.subr.mxu0 0.0
    %3325 = vmatpush1.xpose.msra.mxu0 0.0
    %3326 = vmatprep.subr.mxu0 0.0
    %3327 = vmatpush1.xpose.msra.mxu0 0.0
    %3328 = vmatprep.subr.mxu0 0.0
    %3329 = vmatpush1.xpose.msra.mxu0 0.0
    %3330 = vmatprep.subr.mxu0 0.0
    %3331 = vmatpush1.xpose.msra.mxu0 0.0
    %3332 = vmatprep.subr.mxu0 0.0
    %3333 = vmatpush1.xpose.msra.mxu0 0.0
    %3334 = vmatprep.subr.mxu0 0.0
    %3335 = vmatpush1.xpose.msra.mxu0 0.0
    %3336 = vmatprep.subr.mxu0 0.0
    %3337 = vmatpush1.xpose.msra.mxu0 0.0
    %3338 = vmatprep.subr.mxu0 0.0
    %3339 = vmatpush1.xpose.msra.mxu0 0.0
    %3340 = vmatprep.subr.mxu0 0.0
    %3341 = vmatpush1.xpose.msra.mxu0 0.0
    %3342 = vmatprep.subr.mxu0 0.0
    %3343 = vmatpush1.xpose.msra.mxu0 0.0
    %3344 = vmatprep.subr.mxu0 0.0
    %3345 = vmatpush1.xpose.msra.mxu0 0.0
    %3346 = vmatprep.subr.mxu0 0.0
    %3347 = vmatpush1.xpose.msra.mxu0 0.0
    %3348 = vmatprep.subr.mxu0 0.0
    %3349 = vmatpush1.xpose.msra.mxu0 0.0
    %3350 = vmatprep.subr.mxu0 0.0
    %3351 = vmatpush1.xpose.msra.mxu0 0.0
    %3352 = vmatprep.subr.mxu0 0.0
    %3353 = vmatpush1.xpose.msra.mxu0 0.0
    %3354 = vmatprep.mubr.f32.mxu0 0.0
    %3355 = vmatmul.mubr.f32.gmra.mrb[0].mxu0 %v3286
    %v3356 = vpop.f32.mrb[0].mxu0
    %v3357 = vadd.f32 0.0, %v3356
    %v3358 = vpop.f32.mrb[0].mxu0
    %3359 = vdwg.mxu0
    %3360 = vrot.lane.b32.xlu0 %v2454, 112
    %v3361 = vpop.permute.xlu0 %3360
    %3362 = vrot.lane.b32.xlu0 %v2454, 80
    %v3363 = vpop.permute.xlu0 %3362
    %v3364 = vsel %vm426, %v3361, 0
    %v3366 = vsel %vm426, %v3363, 0
    %3368 = vmatprep.subr.mxu0 0.0
    %3369 = vmatpush1.xpose.msra.mxu0 %v3366
    %3370 = vmatprep.subr.mxu0 0.0
    %3371 = vmatpush1.xpose.msra.mxu0 0.0
    %3372 = vmatprep.subr.mxu0 0.0
    %3373 = vmatpush1.xpose.msra.mxu0 0.0
    %3374 = vmatprep.subr.mxu0 0.0
    %3375 = vmatpush1.xpose.msra.mxu0 0.0
    %3376 = vmatprep.subr.mxu0 0.0
    %3377 = vmatpush1.xpose.msra.mxu0 0.0
    %3378 = vmatprep.subr.mxu0 0.0
    %3379 = vmatpush1.xpose.msra.mxu0 0.0
    %3380 = vmatprep.subr.mxu0 0.0
    %3381 = vmatpush1.xpose.msra.mxu0 0.0
    %3382 = vmatprep.subr.mxu0 0.0
    %3383 = vmatpush1.xpose.msra.mxu0 0.0
    %3384 = vmatprep.subr.mxu0 0.0
    %3385 = vmatpush1.xpose.msra.mxu0 0.0
    %3386 = vmatprep.subr.mxu0 0.0
    %3387 = vmatpush1.xpose.msra.mxu0 0.0
    %3388 = vmatprep.subr.mxu0 0.0
    %3389 = vmatpush1.xpose.msra.mxu0 0.0
    %3390 = vmatprep.subr.mxu0 0.0
    %3391 = vmatpush1.xpose.msra.mxu0 0.0
    %3392 = vmatprep.subr.mxu0 0.0
    %3393 = vmatpush1.xpose.msra.mxu0 0.0
    %3394 = vmatprep.subr.mxu0 0.0
    %3395 = vmatpush1.xpose.msra.mxu0 0.0
    %3396 = vmatprep.subr.mxu0 0.0
    %3397 = vmatpush1.xpose.msra.mxu0 0.0
    %3398 = vmatprep.subr.mxu0 0.0
    %3399 = vmatpush1.xpose.msra.mxu0 0.0
    %3400 = vmatprep.subr.mxu0 0.0
    %3401 = vmatpush1.xpose.msra.mxu0 0.0
    %3402 = vmatprep.subr.mxu0 0.0
    %3403 = vmatpush1.xpose.msra.mxu0 0.0
    %3404 = vmatprep.subr.mxu0 0.0
    %3405 = vmatpush1.xpose.msra.mxu0 0.0
    %3406 = vmatprep.subr.mxu0 0.0
    %3407 = vmatpush1.xpose.msra.mxu0 0.0
    %3408 = vmatprep.subr.mxu0 0.0
    %3409 = vmatpush1.xpose.msra.mxu0 0.0
    %3410 = vmatprep.subr.mxu0 0.0
    %3411 = vmatpush1.xpose.msra.mxu0 0.0
    %3412 = vmatprep.subr.mxu0 0.0
    %3413 = vmatpush1.xpose.msra.mxu0 0.0
    %3414 = vmatprep.subr.mxu0 0.0
    %3415 = vmatpush1.xpose.msra.mxu0 0.0
    %3416 = vmatprep.subr.mxu0 0.0
    %3417 = vmatpush1.xpose.msra.mxu0 0.0
    %3418 = vmatprep.subr.mxu0 0.0
    %3419 = vmatpush1.xpose.msra.mxu0 0.0
    %3420 = vmatprep.subr.mxu0 0.0
    %3421 = vmatpush1.xpose.msra.mxu0 0.0
    %3422 = vmatprep.subr.mxu0 0.0
    %3423 = vmatpush1.xpose.msra.mxu0 0.0
    %3424 = vmatprep.subr.mxu0 0.0
    %3425 = vmatpush1.xpose.msra.mxu0 0.0
    %3426 = vmatprep.subr.mxu0 0.0
    %3427 = vmatpush1.xpose.msra.mxu0 0.0
    %3428 = vmatprep.subr.mxu0 0.0
    %3429 = vmatpush1.xpose.msra.mxu0 0.0
    %3430 = vmatprep.subr.mxu0 0.0
    %3431 = vmatpush1.xpose.msra.mxu0 0.0
    %3432 = vmatprep.mubr.f32.mxu0 0.0
    %3433 = vmatmul.mubr.f32.gmra.mrb[0].mxu0 %v3364
    %v3434 = vpop.f32.mrb[0].mxu0
    %v3435 = vadd.f32 0.0, %v3434
    %v3436 = vpop.f32.mrb[0].mxu0
    %3437 = vdwg.mxu0
    %v3438 = vsel %vm426, %v3357, -inf
    %3439 = vmax.xlane.f32.xlu0 %v3438
    %v3440 = vpop.xlane.xlu0 %3439
    %v3441 = vsel %vm426, %v3435, -inf
    %3442 = vmax.xlane.f32.xlu0 %v3441
    %v3443 = vpop.xlane.xlu0 %3442
    %v3444 = vsub.f32 %v3357, %v3440
    %v3445 = vsub.f32 %v3435, %v3443
    %v3446 = vmul.f32 %v3444, 1.442695
    %v3447 = vpow.pop %v3446
    %v3448 = vmul.f32 %v3445, 1.442695
    %v3449 = vpow.pop %v3448
    %v3450 = vsel %vm426, %v3447, 0.0
    %3451 = vadd.xlane.f32.xlu0 %v3450
    %v3452 = vpop.xlane.xlu0 %3451
    %v3453 = vsel %vm426, %v3449, 0.0
    %3454 = vadd.xlane.f32.xlu0 %v3453
    %v3455 = vpop.xlane.xlu0 %3454
    %v3456 = vrcp.pop %v3452
    %v3457 = vrcp.pop %v3455
    %v3458 = vmul.f32 %v3447, %v3456
    %v3459 = vmul.f32 %v3449, %v3457
    %3460 = vrot.lane.b32.xlu0 %v2449, 48
    %v3461 = vpop.permute.xlu0 %3460
    %v3464 = vsel %vm426, %v3458, 0
    %3466 = vmatprep.subr.mxu0 0.0
    %3467 = vmatpush1.msra.mxu0 %v3461
    %3468 = vmatprep.subr.mxu0 0.0
    %3469 = vmatpush1.msra.mxu0 0.0
    %3470 = vmatprep.subr.mxu0 0.0
    %3471 = vmatpush1.msra.mxu0 0.0
    %3472 = vmatprep.subr.mxu0 0.0
    %3473 = vmatpush1.msra.mxu0 0.0
    %3474 = vmatprep.subr.mxu0 0.0
    %3475 = vmatpush1.msra.mxu0 0.0
    %3476 = vmatprep.subr.mxu0 0.0
    %3477 = vmatpush1.msra.mxu0 0.0
    %3478 = vmatprep.subr.mxu0 0.0
    %3479 = vmatpush1.msra.mxu0 0.0
    %3480 = vmatprep.subr.mxu0 0.0
    %3481 = vmatpush1.msra.mxu0 0.0
    %3482 = vmatprep.subr.mxu0 0.0
    %3483 = vmatpush1.msra.mxu0 0.0
    %3484 = vmatprep.subr.mxu0 0.0
    %3485 = vmatpush1.msra.mxu0 0.0
    %3486 = vmatprep.subr.mxu0 0.0
    %3487 = vmatpush1.msra.mxu0 0.0
    %3488 = vmatprep.subr.mxu0 0.0
    %3489 = vmatpush1.msra.mxu0 0.0
    %3490 = vmatprep.subr.mxu0 0.0
    %3491 = vmatpush1.msra.mxu0 0.0
    %3492 = vmatprep.subr.mxu0 0.0
    %3493 = vmatpush1.msra.mxu0 0.0
    %3494 = vmatprep.subr.mxu0 0.0
    %3495 = vmatpush1.msra.mxu0 0.0
    %3496 = vmatprep.subr.mxu0 0.0
    %3497 = vmatpush1.msra.mxu0 0.0
    %3498 = vmatprep.subr.mxu0 0.0
    %3499 = vmatpush1.msra.mxu0 0.0
    %3500 = vmatprep.subr.mxu0 0.0
    %3501 = vmatpush1.msra.mxu0 0.0
    %3502 = vmatprep.subr.mxu0 0.0
    %3503 = vmatpush1.msra.mxu0 0.0
    %3504 = vmatprep.subr.mxu0 0.0
    %3505 = vmatpush1.msra.mxu0 0.0
    %3506 = vmatprep.subr.mxu0 0.0
    %3507 = vmatpush1.msra.mxu0 0.0
    %3508 = vmatprep.subr.mxu0 0.0
    %3509 = vmatpush1.msra.mxu0 0.0
    %3510 = vmatprep.subr.mxu0 0.0
    %3511 = vmatpush1.msra.mxu0 0.0
    %3512 = vmatprep.subr.mxu0 0.0
    %3513 = vmatpush1.msra.mxu0 0.0
    %3514 = vmatprep.subr.mxu0 0.0
    %3515 = vmatpush1.msra.mxu0 0.0
    %3516 = vmatprep.subr.mxu0 0.0
    %3517 = vmatpush1.msra.mxu0 0.0
    %3518 = vmatprep.subr.mxu0 0.0
    %3519 = vmatpush1.msra.mxu0 0.0
    %3520 = vmatprep.subr.mxu0 0.0
    %3521 = vmatpush1.msra.mxu0 0.0
    %3522 = vmatprep.subr.mxu0 0.0
    %3523 = vmatpush1.msra.mxu0 0.0
    %3524 = vmatprep.subr.mxu0 0.0
    %3525 = vmatpush1.msra.mxu0 0.0
    %3526 = vmatprep.subr.mxu0 0.0
    %3527 = vmatpush1.msra.mxu0 0.0
    %3528 = vmatprep.subr.mxu0 0.0
    %3529 = vmatpush1.msra.mxu0 0.0
    %3530 = vmatprep.mubr.f32.mxu0 0.0
    %3531 = vmatmul.mubr.f32.gmra.mrb[0].mxu0 %v3464
    %v3532 = vpop.f32.mrb[0].mxu0
    %v3533 = vadd.f32 0.0, %v3532
    %v3534 = vpop.f32.mrb[0].mxu0
    %3535 = vdwg.mxu0
    %3536 = vrot.lane.b32.xlu0 %v2454, 48
    %v3537 = vpop.permute.xlu0 %3536
    %v3540 = vsel %vm426, %v3459, 0
    %3542 = vmatprep.subr.mxu0 0.0
    %3543 = vmatpush1.msra.mxu0 %v3537
    %3544 = vmatprep.subr.mxu0 0.0
    %3545 = vmatpush1.msra.mxu0 0.0
    %3546 = vmatprep.subr.mxu0 0.0
    %3547 = vmatpush1.msra.mxu0 0.0
    %3548 = vmatprep.subr.mxu0 0.0
    %3549 = vmatpush1.msra.mxu0 0.0
    %3550 = vmatprep.subr.mxu0 0.0
    %3551 = vmatpush1.msra.mxu0 0.0
    %3552 = vmatprep.subr.mxu0 0.0
    %3553 = vmatpush1.msra.mxu0 0.0
    %3554 = vmatprep.subr.mxu0 0.0
    %3555 = vmatpush1.msra.mxu0 0.0
    %3556 = vmatprep.subr.mxu0 0.0
    %3557 = vmatpush1.msra.mxu0 0.0
    %3558 = vmatprep.subr.mxu0 0.0
    %3559 = vmatpush1.msra.mxu0 0.0
    %3560 = vmatprep.subr.mxu0 0.0
    %3561 = vmatpush1.msra.mxu0 0.0
    %3562 = vmatprep.subr.mxu0 0.0
    %3563 = vmatpush1.msra.mxu0 0.0
    %3564 = vmatprep.subr.mxu0 0.0
    %3565 = vmatpush1.msra.mxu0 0.0
    %3566 = vmatprep.subr.mxu0 0.0
    %3567 = vmatpush1.msra.mxu0 0.0
    %3568 = vmatprep.subr.mxu0 0.0
    %3569 = vmatpush1.msra.mxu0 0.0
    %3570 = vmatprep.subr.mxu0 0.0
    %3571 = vmatpush1.msra.mxu0 0.0
    %3572 = vmatprep.subr.mxu0 0.0
    %3573 = vmatpush1.msra.mxu0 0.0
    %3574 = vmatprep.subr.mxu0 0.0
    %3575 = vmatpush1.msra.mxu0 0.0
    %3576 = vmatprep.subr.mxu0 0.0
    %3577 = vmatpush1.msra.mxu0 0.0
    %3578 = vmatprep.subr.mxu0 0.0
    %3579 = vmatpush1.msra.mxu0 0.0
    %3580 = vmatprep.subr.mxu0 0.0
    %3581 = vmatpush1.msra.mxu0 0.0
    %3582 = vmatprep.subr.mxu0 0.0
    %3583 = vmatpush1.msra.mxu0 0.0
    %3584 = vmatprep.subr.mxu0 0.0
    %3585 = vmatpush1.msra.mxu0 0.0
    %3586 = vmatprep.subr.mxu0 0.0
    %3587 = vmatpush1.msra.mxu0 0.0
    %3588 = vmatprep.subr.mxu0 0.0
    %3589 = vmatpush1.msra.mxu0 0.0
    %3590 = vmatprep.subr.mxu0 0.0
    %3591 = vmatpush1.msra.mxu0 0.0
    %3592 = vmatprep.subr.mxu0 0.0
    %3593 = vmatpush1.msra.mxu0 0.0
    %3594 = vmatprep.subr.mxu0 0.0
    %3595 = vmatpush1.msra.mxu0 0.0
    %3596 = vmatprep.subr.mxu0 0.0
    %3597 = vmatpush1.msra.mxu0 0.0
    %3598 = vmatprep.subr.mxu0 0.0
    %3599 = vmatpush1.msra.mxu0 0.0
    %3600 = vmatprep.subr.mxu0 0.0
    %3601 = vmatpush1.msra.mxu0 0.0
    %3602 = vmatprep.subr.mxu0 0.0
    %3603 = vmatpush1.msra.mxu0 0.0
    %3604 = vmatprep.subr.mxu0 0.0
    %3605 = vmatpush1.msra.mxu0 0.0
    %3606 = vmatprep.mubr.f32.mxu0 0.0
    %3607 = vmatmul.mubr.f32.gmra.mrb[0].mxu0 %v3540
    %v3608 = vpop.f32.mrb[0].mxu0
    %v3609 = vadd.f32 0.0, %v3608
    %v3610 = vpop.f32.mrb[0].mxu0
    %3611 = vdwg.mxu0
    %v3613 = vsel %vm426, %v3533, 0
    %v3616 = vsel %vm426, %v3609, 0
    %3618 = vmatprep.subr.mxu0 0.0
    %3619 = vmatpush1.msra.mxu0 %v2460
    %3620 = vmatprep.subr.mxu0 0.0
    %3621 = vmatpush1.msra.mxu0 0.0
    %3622 = vmatprep.subr.mxu0 0.0
    %3623 = vmatpush1.msra.mxu0 0.0
    %3624 = vmatprep.subr.mxu0 0.0
    %3625 = vmatpush1.msra.mxu0 0.0
    %3626 = vmatprep.subr.mxu0 0.0
    %3627 = vmatpush1.msra.mxu0 0.0
    %3628 = vmatprep.subr.mxu0 0.0
    %3629 = vmatpush1.msra.mxu0 0.0
    %3630 = vmatprep.subr.mxu0 0.0
    %3631 = vmatpush1.msra.mxu0 0.0
    %3632 = vmatprep.subr.mxu0 0.0
    %3633 = vmatpush1.msra.mxu0 0.0
    %3634 = vmatprep.subr.mxu0 0.0
    %3635 = vmatpush1.msra.mxu0 0.0
    %3636 = vmatprep.subr.mxu0 0.0
    %3637 = vmatpush1.msra.mxu0 0.0
    %3638 = vmatprep.subr.mxu0 0.0
    %3639 = vmatpush1.msra.mxu0 0.0
    %3640 = vmatprep.subr.mxu0 0.0
    %3641 = vmatpush1.msra.mxu0 0.0
    %3642 = vmatprep.subr.mxu0 0.0
    %3643 = vmatpush1.msra.mxu0 0.0
    %3644 = vmatprep.subr.mxu0 0.0
    %3645 = vmatpush1.msra.mxu0 0.0
    %3646 = vmatprep.subr.mxu0 0.0
    %3647 = vmatpush1.msra.mxu0 0.0
    %3648 = vmatprep.subr.mxu0 0.0
    %3649 = vmatpush1.msra.mxu0 0.0
    %3650 = vmatprep.subr.mxu0 0.0
    %3651 = vmatpush1.msra.mxu0 0.0
    %3652 = vmatprep.subr.mxu0 0.0
    %3653 = vmatpush1.msra.mxu0 0.0
    %3654 = vmatprep.subr.mxu0 0.0
    %3655 = vmatpush1.msra.mxu0 0.0
    %3656 = vmatprep.subr.mxu0 0.0
    %3657 = vmatpush1.msra.mxu0 0.0
    %3658 = vmatprep.subr.mxu0 0.0
    %3659 = vmatpush1.msra.mxu0 0.0
    %3660 = vmatprep.subr.mxu0 0.0
    %3661 = vmatpush1.msra.mxu0 0.0
    %3662 = vmatprep.subr.mxu0 0.0
    %3663 = vmatpush1.msra.mxu0 0.0
    %3664 = vmatprep.subr.mxu0 0.0
    %3665 = vmatpush1.msra.mxu0 0.0
    %3666 = vmatprep.subr.mxu0 0.0
    %3667 = vmatpush1.msra.mxu0 0.0
    %3668 = vmatprep.subr.mxu0 0.0
    %3669 = vmatpush1.msra.mxu0 0.0
    %3670 = vmatprep.subr.mxu0 0.0
    %3671 = vmatpush1.msra.mxu0 0.0
    %3672 = vmatprep.subr.mxu0 0.0
    %3673 = vmatpush1.msra.mxu0 0.0
    %3674 = vmatprep.subr.mxu0 0.0
    %3675 = vmatpush1.msra.mxu0 0.0
    %3676 = vmatprep.subr.mxu0 0.0
    %3677 = vmatpush1.msra.mxu0 0.0
    %3678 = vmatprep.subr.mxu0 0.0
    %3679 = vmatpush1.msra.mxu0 0.0
    %3680 = vmatprep.subr.mxu0 0.0
    %3681 = vmatpush1.msra.mxu0 0.0
    %3682 = vmatprep.mubr.f32.mxu0 0.0
    %3683 = vmatmul.mubr.f32.gmra.mrb[0].mxu0 %v3613
    %v3684 = vpop.f32.mrb[0].mxu0
    %v3685 = vadd.f32 0.0, %v3684
    %v3686 = vpop.f32.mrb[0].mxu0
    %3687 = vmatprep.mubr.f32.mxu0 0.0
    %3688 = vmatmul.mubr.f32.gmra.mrb[0].mxu0 %v3616
    %v3689 = vpop.f32.mrb[0].mxu0
    %v3690 = vadd.f32 0.0, %v3689
    %v3691 = vpop.f32.mrb[0].mxu0
    %3692 = vdwg.mxu0
    %v3693 = vadd.f32 %v3274, %v3685
    %v3694 = vadd.f32 %v3279, %v3690
    %3695 = vrot.lane.b32.xlu0 %v2449, 104
    %v3696 = vpop.permute.xlu0 %3695
    %3697 = vrot.lane.b32.xlu0 %v2449, 72
    %v3698 = vpop.permute.xlu0 %3697
    %v3699 = vsel %vm426, %v3696, 0
    %v3701 = vsel %vm426, %v3698, 0
    %3703 = vmatprep.subr.mxu0 0.0
    %3704 = vmatpush1.xpose.msra.mxu0 %v3701
    %3705 = vmatprep.subr.mxu0 0.0
    %3706 = vmatpush1.xpose.msra.mxu0 0.0
    %3707 = vmatprep.subr.mxu0 0.0
    %3708 = vmatpush1.xpose.msra.mxu0 0.0
    %3709 = vmatprep.subr.mxu0 0.0
    %3710 = vmatpush1.xpose.msra.mxu0 0.0
    %3711 = vmatprep.subr.mxu0 0.0
    %3712 = vmatpush1.xpose.msra.mxu0 0.0
    %3713 = vmatprep.subr.mxu0 0.0
    %3714 = vmatpush1.xpose.msra.mxu0 0.0
    %3715 = vmatprep.subr.mxu0 0.0
    %3716 = vmatpush1.xpose.msra.mxu0 0.0
    %3717 = vmatprep.subr.mxu0 0.0
    %3718 = vmatpush1.xpose.msra.mxu0 0.0
    %3719 = vmatprep.subr.mxu0 0.0
    %3720 = vmatpush1.xpose.msra.mxu0 0.0
    %3721 = vmatprep.subr.mxu0 0.0
    %3722 = vmatpush1.xpose.msra.mxu0 0.0
    %3723 = vmatprep.subr.mxu0 0.0
    %3724 = vmatpush1.xpose.msra.mxu0 0.0
    %3725 = vmatprep.subr.mxu0 0.0
    %3726 = vmatpush1.xpose.msra.mxu0 0.0
    %3727 = vmatprep.subr.mxu0 0.0
    %3728 = vmatpush1.xpose.msra.mxu0 0.0
    %3729 = vmatprep.subr.mxu0 0.0
    %3730 = vmatpush1.xpose.msra.mxu0 0.0
    %3731 = vmatprep.subr.mxu0 0.0
    %3732 = vmatpush1.xpose.msra.mxu0 0.0
    %3733 = vmatprep.subr.mxu0 0.0
    %3734 = vmatpush1.xpose.msra.mxu0 0.0
    %3735 = vmatprep.subr.mxu0 0.0
    %3736 = vmatpush1.xpose.msra.mxu0 0.0
    %3737 = vmatprep.subr.mxu0 0.0
    %3738 = vmatpush1.xpose.msra.mxu0 0.0
    %3739 = vmatprep.subr.mxu0 0.0
    %3740 = vmatpush1.xpose.msra.mxu0 0.0
    %3741 = vmatprep.subr.mxu0 0.0
    %3742 = vmatpush1.xpose.msra.mxu0 0.0
    %3743 = vmatprep.subr.mxu0 0.0
    %3744 = vmatpush1.xpose.msra.mxu0 0.0
    %3745 = vmatprep.subr.mxu0 0.0
    %3746 = vmatpush1.xpose.msra.mxu0 0.0
    %3747 = vmatprep.subr.mxu0 0.0
    %3748 = vmatpush1.xpose.msra.mxu0 0.0
    %3749 = vmatprep.subr.mxu0 0.0
    %3750 = vmatpush1.xpose.msra.mxu0 0.0
    %3751 = vmatprep.subr.mxu0 0.0
    %3752 = vmatpush1.xpose.msra.mxu0 0.0
    %3753 = vmatprep.subr.mxu0 0.0
    %3754 = vmatpush1.xpose.msra.mxu0 0.0
    %3755 = vmatprep.subr.mxu0 0.0
    %3756 = vmatpush1.xpose.msra.mxu0 0.0
    %3757 = vmatprep.subr.mxu0 0.0
    %3758 = vmatpush1.xpose.msra.mxu0 0.0
    %3759 = vmatprep.subr.mxu0 0.0
    %3760 = vmatpush1.xpose.msra.mxu0 0.0
    %3761 = vmatprep.subr.mxu0 0.0
    %3762 = vmatpush1.xpose.msra.mxu0 0.0
    %3763 = vmatprep.subr.mxu0 0.0
    %3764 = vmatpush1.xpose.msra.mxu0 0.0
    %3765 = vmatprep.subr.mxu0 0.0
    %3766 = vmatpush1.xpose.msra.mxu0 0.0
    %3767 = vmatprep.mubr.f32.mxu0 0.0
    %3768 = vmatmul.mubr.f32.gmra.mrb[0].mxu0 %v3699
    %v3769 = vpop.f32.mrb[0].mxu0
    %v3770 = vadd.f32 0.0, %v3769
    %v3771 = vpop.f32.mrb[0].mxu0
    %3772 = vdwg.mxu0
    %3773 = vrot.lane.b32.xlu0 %v2454, 104
    %v3774 = vpop.permute.xlu0 %3773
    %3775 = vrot.lane.b32.xlu0 %v2454, 72
    %v3776 = vpop.permute.xlu0 %3775
    %v3777 = vsel %vm426, %v3774, 0
    %v3779 = vsel %vm426, %v3776, 0
    %3781 = vmatprep.subr.mxu0 0.0
    %3782 = vmatpush1.xpose.msra.mxu0 %v3779
    %3783 = vmatprep.subr.mxu0 0.0
    %3784 = vmatpush1.xpose.msra.mxu0 0.0
    %3785 = vmatprep.subr.mxu0 0.0
    %3786 = vmatpush1.xpose.msra.mxu0 0.0
    %3787 = vmatprep.subr.mxu0 0.0
    %3788 = vmatpush1.xpose.msra.mxu0 0.0
    %3789 = vmatprep.subr.mxu0 0.0
    %3790 = vmatpush1.xpose.msra.mxu0 0.0
    %3791 = vmatprep.subr.mxu0 0.0
    %3792 = vmatpush1.xpose.msra.mxu0 0.0
    %3793 = vmatprep.subr.mxu0 0.0
    %3794 = vmatpush1.xpose.msra.mxu0 0.0
    %3795 = vmatprep.subr.mxu0 0.0
    %3796 = vmatpush1.xpose.msra.mxu0 0.0
    %3797 = vmatprep.subr.mxu0 0.0
    %3798 = vmatpush1.xpose.msra.mxu0 0.0
    %3799 = vmatprep.subr.mxu0 0.0
    %3800 = vmatpush1.xpose.msra.mxu0 0.0
    %3801 = vmatprep.subr.mxu0 0.0
    %3802 = vmatpush1.xpose.msra.mxu0 0.0
    %3803 = vmatprep.subr.mxu0 0.0
    %3804 = vmatpush1.xpose.msra.mxu0 0.0
    %3805 = vmatprep.subr.mxu0 0.0
    %3806 = vmatpush1.xpose.msra.mxu0 0.0
    %3807 = vmatprep.subr.mxu0 0.0
    %3808 = vmatpush1.xpose.msra.mxu0 0.0
    %3809 = vmatprep.subr.mxu0 0.0
    %3810 = vmatpush1.xpose.msra.mxu0 0.0
    %3811 = vmatprep.subr.mxu0 0.0
    %3812 = vmatpush1.xpose.msra.mxu0 0.0
    %3813 = vmatprep.subr.mxu0 0.0
    %3814 = vmatpush1.xpose.msra.mxu0 0.0
    %3815 = vmatprep.subr.mxu0 0.0
    %3816 = vmatpush1.xpose.msra.mxu0 0.0
    %3817 = vmatprep.subr.mxu0 0.0
    %3818 = vmatpush1.xpose.msra.mxu0 0.0
    %3819 = vmatprep.subr.mxu0 0.0
    %3820 = vmatpush1.xpose.msra.mxu0 0.0
    %3821 = vmatprep.subr.mxu0 0.0
    %3822 = vmatpush1.xpose.msra.mxu0 0.0
    %3823 = vmatprep.subr.mxu0 0.0
    %3824 = vmatpush1.xpose.msra.mxu0 0.0
    %3825 = vmatprep.subr.mxu0 0.0
    %3826 = vmatpush1.xpose.msra.mxu0 0.0
    %3827 = vmatprep.subr.mxu0 0.0
    %3828 = vmatpush1.xpose.msra.mxu0 0.0
    %3829 = vmatprep.subr.mxu0 0.0
    %3830 = vmatpush1.xpose.msra.mxu0 0.0
    %3831 = vmatprep.subr.mxu0 0.0
    %3832 = vmatpush1.xpose.msra.mxu0 0.0
    %3833 = vmatprep.subr.mxu0 0.0
    %3834 = vmatpush1.xpose.msra.mxu0 0.0
    %3835 = vmatprep.subr.mxu0 0.0
    %3836 = vmatpush1.xpose.msra.mxu0 0.0
    %3837 = vmatprep.subr.mxu0 0.0
    %3838 = vmatpush1.xpose.msra.mxu0 0.0
    %3839 = vmatprep.subr.mxu0 0.0
    %3840 = vmatpush1.xpose.msra.mxu0 0.0
    %3841 = vmatprep.subr.mxu0 0.0
    %3842 = vmatpush1.xpose.msra.mxu0 0.0
    %3843 = vmatprep.subr.mxu0 0.0
    %3844 = vmatpush1.xpose.msra.mxu0 0.0
    %3845 = vmatprep.mubr.f32.mxu0 0.0
    %3846 = vmatmul.mubr.f32.gmra.mrb[0].mxu0 %v3777
    %v3847 = vpop.f32.mrb[0].mxu0
    %v3848 = vadd.f32 0.0, %v3847
    %v3849 = vpop.f32.mrb[0].mxu0
    %3850 = vdwg.mxu0
    %v3851 = vsel %vm426, %v3770, -inf
    %3852 = vmax.xlane.f32.xlu0 %v3851
    %v3853 = vpop.xlane.xlu0 %3852
    %v3854 = vsel %vm426, %v3848, -inf
    %3855 = vmax.xlane.f32.xlu0 %v3854
    %v3856 = vpop.xlane.xlu0 %3855
    %v3857 = vsub.f32 %v3770, %v3853
    %v3858 = vsub.f32 %v3848, %v3856
    %v3859 = vmul.f32 %v3857, 1.442695
    %v3860 = vpow.pop %v3859
    %v3861 = vmul.f32 %v3858, 1.442695
    %v3862 = vpow.pop %v3861
    %v3863 = vsel %vm426, %v3860, 0.0
    %3864 = vadd.xlane.f32.xlu0 %v3863
    %v3865 = vpop.xlane.xlu0 %3864
    %v3866 = vsel %vm426, %v3862, 0.0
    %3867 = vadd.xlane.f32.xlu0 %v3866
    %v3868 = vpop.xlane.xlu0 %3867
    %v3869 = vrcp.pop %v3865
    %v3870 = vrcp.pop %v3868
    %v3871 = vmul.f32 %v3860, %v3869
    %v3872 = vmul.f32 %v3862, %v3870
    %3873 = vrot.lane.b32.xlu0 %v2449, 40
    %v3874 = vpop.permute.xlu0 %3873
    %v3877 = vsel %vm426, %v3871, 0
    %3879 = vmatprep.subr.mxu0 0.0
    %3880 = vmatpush1.msra.mxu0 %v3874
    %3881 = vmatprep.subr.mxu0 0.0
    %3882 = vmatpush1.msra.mxu0 0.0
    %3883 = vmatprep.subr.mxu0 0.0
    %3884 = vmatpush1.msra.mxu0 0.0
    %3885 = vmatprep.subr.mxu0 0.0
    %3886 = vmatpush1.msra.mxu0 0.0
    %3887 = vmatprep.subr.mxu0 0.0
    %3888 = vmatpush1.msra.mxu0 0.0
    %3889 = vmatprep.subr.mxu0 0.0
    %3890 = vmatpush1.msra.mxu0 0.0
    %3891 = vmatprep.subr.mxu0 0.0
    %3892 = vmatpush1.msra.mxu0 0.0
    %3893 = vmatprep.subr.mxu0 0.0
    %3894 = vmatpush1.msra.mxu0 0.0
    %3895 = vmatprep.subr.mxu0 0.0
    %3896 = vmatpush1.msra.mxu0 0.0
    %3897 = vmatprep.subr.mxu0 0.0
    %3898 = vmatpush1.msra.mxu0 0.0
    %3899 = vmatprep.subr.mxu0 0.0
    %3900 = vmatpush1.msra.mxu0 0.0
    %3901 = vmatprep.subr.mxu0 0.0
    %3902 = vmatpush1.msra.mxu0 0.0
    %3903 = vmatprep.subr.mxu0 0.0
    %3904 = vmatpush1.msra.mxu0 0.0
    %3905 = vmatprep.subr.mxu0 0.0
    %3906 = vmatpush1.msra.mxu0 0.0
    %3907 = vmatprep.subr.mxu0 0.0
    %3908 = vmatpush1.msra.mxu0 0.0
    %3909 = vmatprep.subr.mxu0 0.0
    %3910 = vmatpush1.msra.mxu0 0.0
    %3911 = vmatprep.subr.mxu0 0.0
    %3912 = vmatpush1.msra.mxu0 0.0
    %3913 = vmatprep.subr.mxu0 0.0
    %3914 = vmatpush1.msra.mxu0 0.0
    %3915 = vmatprep.subr.mxu0 0.0
    %3916 = vmatpush1.msra.mxu0 0.0
    %3917 = vmatprep.subr.mxu0 0.0
    %3918 = vmatpush1.msra.mxu0 0.0
    %3919 = vmatprep.subr.mxu0 0.0
    %3920 = vmatpush1.msra.mxu0 0.0
    %3921 = vmatprep.subr.mxu0 0.0
    %3922 = vmatpush1.msra.mxu0 0.0
    %3923 = vmatprep.subr.mxu0 0.0
    %3924 = vmatpush1.msra.mxu0 0.0
    %3925 = vmatprep.subr.mxu0 0.0
    %3926 = vmatpush1.msra.mxu0 0.0
    %3927 = vmatprep.subr.mxu0 0.0
    %3928 = vmatpush1.msra.mxu0 0.0
    %3929 = vmatprep.subr.mxu0 0.0
    %3930 = vmatpush1.msra.mxu0 0.0
    %3931 = vmatprep.subr.mxu0 0.0
    %3932 = vmatpush1.msra.mxu0 0.0
    %3933 = vmatprep.subr.mxu0 0.0
    %3934 = vmatpush1.msra.mxu0 0.0
    %3935 = vmatprep.subr.mxu0 0.0
    %3936 = vmatpush1.msra.mxu0 0.0
    %3937 = vmatprep.subr.mxu0 0.0
    %3938 = vmatpush1.msra.mxu0 0.0
    %3939 = vmatprep.subr.mxu0 0.0
    %3940 = vmatpush1.msra.mxu0 0.0
    %3941 = vmatprep.subr.mxu0 0.0
    %3942 = vmatpush1.msra.mxu0 0.0
    %3943 = vmatprep.mubr.f32.mxu0 0.0
    %3944 = vmatmul.mubr.f32.gmra.mrb[0].mxu0 %v3877
    %v3945 = vpop.f32.mrb[0].mxu0
    %v3946 = vadd.f32 0.0, %v3945
    %v3947 = vpop.f32.mrb[0].mxu0
    %3948 = vdwg.mxu0
    %3949 = vrot.lane.b32.xlu0 %v2454, 40
    %v3950 = vpop.permute.xlu0 %3949
    %v3953 = vsel %vm426, %v3872, 0
    %3955 = vmatprep.subr.mxu0 0.0
    %3956 = vmatpush1.msra.mxu0 %v3950
    %3957 = vmatprep.subr.mxu0 0.0
    %3958 = vmatpush1.msra.mxu0 0.0
    %3959 = vmatprep.subr.mxu0 0.0
    %3960 = vmatpush1.msra.mxu0 0.0
    %3961 = vmatprep.subr.mxu0 0.0
    %3962 = vmatpush1.msra.mxu0 0.0
    %3963 = vmatprep.subr.mxu0 0.0
    %3964 = vmatpush1.msra.mxu0 0.0
    %3965 = vmatprep.subr.mxu0 0.0
    %3966 = vmatpush1.msra.mxu0 0.0
    %3967 = vmatprep.subr.mxu0 0.0
    %3968 = vmatpush1.msra.mxu0 0.0
    %3969 = vmatprep.subr.mxu0 0.0
    %3970 = vmatpush1.msra.mxu0 0.0
    %3971 = vmatprep.subr.mxu0 0.0
    %3972 = vmatpush1.msra.mxu0 0.0
    %3973 = vmatprep.subr.mxu0 0.0
    %3974 = vmatpush1.msra.mxu0 0.0
    %3975 = vmatprep.subr.mxu0 0.0
    %3976 = vmatpush1.msra.mxu0 0.0
    %3977 = vmatprep.subr.mxu0 0.0
    %3978 = vmatpush1.msra.mxu0 0.0
    %3979 = vmatprep.subr.mxu0 0.0
    %3980 = vmatpush1.msra.mxu0 0.0
    %3981 = vmatprep.subr.mxu0 0.0
    %3982 = vmatpush1.msra.mxu0 0.0
    %3983 = vmatprep.subr.mxu0 0.0
    %3984 = vmatpush1.msra.mxu0 0.0
    %3985 = vmatprep.subr.mxu0 0.0
    %3986 = vmatpush1.msra.mxu0 0.0
    %3987 = vmatprep.subr.mxu0 0.0
    %3988 = vmatpush1.msra.mxu0 0.0
    %3989 = vmatprep.subr.mxu0 0.0
    %3990 = vmatpush1.msra.mxu0 0.0
    %3991 = vmatprep.subr.mxu0 0.0
    %3992 = vmatpush1.msra.mxu0 0.0
    %3993 = vmatprep.subr.mxu0 0.0
    %3994 = vmatpush1.msra.mxu0 0.0
    %3995 = vmatprep.subr.mxu0 0.0
    %3996 = vmatpush1.msra.mxu0 0.0
    %3997 = vmatprep.subr.mxu0 0.0
    %3998 = vmatpush1.msra.mxu0 0.0
    %3999 = vmatprep.subr.mxu0 0.0
    %4000 = vmatpush1.msra.mxu0 0.0
    %4001 = vmatprep.subr.mxu0 0.0
    %4002 = vmatpush1.msra.mxu0 0.0
    %4003 = vmatprep.subr.mxu0 0.0
    %4004 = vmatpush1.msra.mxu0 0.0
    %4005 = vmatprep.subr.mxu0 0.0
    %4006 = vmatpush1.msra.mxu0 0.0
    %4007 = vmatprep.subr.mxu0 0.0
    %4008 = vmatpush1.msra.mxu0 0.0
    %4009 = vmatprep.subr.mxu0 0.0
    %4010 = vmatpush1.msra.mxu0 0.0
    %4011 = vmatprep.subr.mxu0 0.0
    %4012 = vmatpush1.msra.mxu0 0.0
    %4013 = vmatprep.subr.mxu0 0.0
    %4014 = vmatpush1.msra.mxu0 0.0
    %4015 = vmatprep.subr.mxu0 0.0
    %4016 = vmatpush1.msra.mxu0 0.0
    %4017 = vmatprep.subr.mxu0 0.0
    %4018 = vmatpush1.msra.mxu0 0.0
    %4019 = vmatprep.mubr.f32.mxu0 0.0
    %4020 = vmatmul.mubr.f32.gmra.mrb[0].mxu0 %v3953
    %v4021 = vpop.f32.mrb[0].mxu0
    %v4022 = vadd.f32 0.0, %v4021
    %v4023 = vpop.f32.mrb[0].mxu0
    %4024 = vdwg.mxu0
    %v4026 = vsel %vm426, %v3946, 0
    %v4029 = vsel %vm426, %v4022, 0
    %4031 = vmatprep.subr.mxu0 0.0
    %4032 = vmatpush1.msra.mxu0 %v2461
    %4033 = vmatprep.subr.mxu0 0.0
    %4034 = vmatpush1.msra.mxu0 0.0
    %4035 = vmatprep.subr.mxu0 0.0
    %4036 = vmatpush1.msra.mxu0 0.0
    %4037 = vmatprep.subr.mxu0 0.0
    %4038 = vmatpush1.msra.mxu0 0.0
    %4039 = vmatprep.subr.mxu0 0.0
    %4040 = vmatpush1.msra.mxu0 0.0
    %4041 = vmatprep.subr.mxu0 0.0
    %4042 = vmatpush1.msra.mxu0 0.0
    %4043 = vmatprep.subr.mxu0 0.0
    %4044 = vmatpush1.msra.mxu0 0.0
    %4045 = vmatprep.subr.mxu0 0.0
    %4046 = vmatpush1.msra.mxu0 0.0
    %4047 = vmatprep.subr.mxu0 0.0
    %4048 = vmatpush1.msra.mxu0 0.0
    %4049 = vmatprep.subr.mxu0 0.0
    %4050 = vmatpush1.msra.mxu0 0.0
    %4051 = vmatprep.subr.mxu0 0.0
    %4052 = vmatpush1.msra.mxu0 0.0
    %4053 = vmatprep.subr.mxu0 0.0
    %4054 = vmatpush1.msra.mxu0 0.0
    %4055 = vmatprep.subr.mxu0 0.0
    %4056 = vmatpush1.msra.mxu0 0.0
    %4057 = vmatprep.subr.mxu0 0.0
    %4058 = vmatpush1.msra.mxu0 0.0
    %4059 = vmatprep.subr.mxu0 0.0
    %4060 = vmatpush1.msra.mxu0 0.0
    %4061 = vmatprep.subr.mxu0 0.0
    %4062 = vmatpush1.msra.mxu0 0.0
    %4063 = vmatprep.subr.mxu0 0.0
    %4064 = vmatpush1.msra.mxu0 0.0
    %4065 = vmatprep.subr.mxu0 0.0
    %4066 = vmatpush1.msra.mxu0 0.0
    %4067 = vmatprep.subr.mxu0 0.0
    %4068 = vmatpush1.msra.mxu0 0.0
    %4069 = vmatprep.subr.mxu0 0.0
    %4070 = vmatpush1.msra.mxu0 0.0
    %4071 = vmatprep.subr.mxu0 0.0
    %4072 = vmatpush1.msra.mxu0 0.0
    %4073 = vmatprep.subr.mxu0 0.0
    %4074 = vmatpush1.msra.mxu0 0.0
    %4075 = vmatprep.subr.mxu0 0.0
    %4076 = vmatpush1.msra.mxu0 0.0
    %4077 = vmatprep.subr.mxu0 0.0
    %4078 = vmatpush1.msra.mxu0 0.0
    %4079 = vmatprep.subr.mxu0 0.0
    %4080 = vmatpush1.msra.mxu0 0.0
    %4081 = vmatprep.subr.mxu0 0.0
    %4082 = vmatpush1.msra.mxu0 0.0
    %4083 = vmatprep.subr.mxu0 0.0
    %4084 = vmatpush1.msra.mxu0 0.0
    %4085 = vmatprep.subr.mxu0 0.0
    %4086 = vmatpush1.msra.mxu0 0.0
    %4087 = vmatprep.subr.mxu0 0.0
    %4088 = vmatpush1.msra.mxu0 0.0
    %4089 = vmatprep.subr.mxu0 0.0
    %4090 = vmatpush1.msra.mxu0 0.0
    %4091 = vmatprep.subr.mxu0 0.0
    %4092 = vmatpush1.msra.mxu0 0.0
    %4093 = vmatprep.subr.mxu0 0.0
    %4094 = vmatpush1.msra.mxu0 0.0
    %4095 = vmatprep.mubr.f32.mxu0 0.0
    %4096 = vmatmul.mubr.f32.gmra.mrb[0].mxu0 %v4026
    %v4097 = vpop.f32.mrb[0].mxu0
    %v4098 = vadd.f32 0.0, %v4097
    %v4099 = vpop.f32.mrb[0].mxu0
    %4100 = vmatprep.mubr.f32.mxu0 0.0
    %4101 = vmatmul.mubr.f32.gmra.mrb[0].mxu0 %v4029
    %v4102 = vpop.f32.mrb[0].mxu0
    %v4103 = vadd.f32 0.0, %v4102
    %v4104 = vpop.f32.mrb[0].mxu0
    %4105 = vdwg.mxu0
    %v4106 = vadd.f32 %v3693, %v4098
    %v4107 = vadd.f32 %v3694, %v4103
    %s4108 = scalar_lea.vmem %s8, 1
    %v4109 = vld [vmem:[%s4108] sm:$0x1]
    %v4111 = vlaneseq
    %v4112 = vshrl.u32 %v4111, 7
    %v4113 = vsub.s32 0, %v4112
    %v4114 = vrot.slane %v4109, %v4113
    %v4116 = vadd.f32 %v4106, %v4114
    %v4117 = vadd.f32 %v4107, %v4114
    %v4118 = vadd.f32 %v2361, %v4116
    %v4119 = vadd.f32 %v2362, %v4117
    %s4120 = scalar_lea.vmem [#allocation10], 1
    %v4121 = vld [vmem:[%s4120] sm:$0x1]
    %s4122 = scalar_lea.vmem [#allocation11], 1
    %v4123 = vld [vmem:[%s4122] sm:$0x1]
    %v4124 = vsel %vm337, %v4118, 0.0
    %4125 = vadd.xlane.f32.xlu0 %v4124
    %v4126 = vpop.xlane.xlu0 %4125
    %v4127 = vsel %vm337, %v4119, 0.0
    %4128 = vadd.xlane.f32.xlu0 %v4127
    %v4129 = vpop.xlane.xlu0 %4128
    %v4130 = vmul.f32 %v4126, %v2089
    %v4131 = vmul.f32 %v4129, %v2089
    %v4132 = vsub.f32 %v4118, %v4130
    %v4133 = vsub.f32 %v4119, %v4131
    %v4134 = vmul.f32 %v4132, %v4132
    %v4135 = vmul.f32 %v4133, %v4133
    %v4136 = vsel %vm337, %v4134, 0.0
    %4137 = vadd.xlane.f32.xlu0 %v4136
    %v4138 = vpop.xlane.xlu0 %4137
    %v4139 = vsel %vm337, %v4135, 0.0
    %4140 = vadd.xlane.f32.xlu0 %v4139
    %v4141 = vpop.xlane.xlu0 %4140
    %v4142 = vmul.f32 %v4138, %v2089
    %v4143 = vmul.f32 %v4141, %v2089
    %v4144 = vadd.f32 %v4142, 1e-05
    %v4145 = vadd.f32 %v4143, 1e-05
    %v4146 = vrsqrt.pop %v4144
    %v4147 = vrsqrt.pop %v4145
    %v4148 = vmul.f32 %v4132, %v4146
    %v4149 = vmul.f32 %v4133, %v4147
    %v4151 = vlaneseq
    %v4152 = vshrl.u32 %v4151, 7
    %v4153 = vsub.s32 0, %v4152
    %v4154 = vrot.slane %v4121, %v4153
    %v4156 = vmul.f32 %v4148, %v4154
    %v4157 = vmul.f32 %v4149, %v4154
    %v4159 = vlaneseq
    %v4160 = vshrl.u32 %v4159, 7
    %v4161 = vsub.s32 0, %v4160
    %v4162 = vrot.slane %v4123, %v4161
    %v4164 = vadd.f32 %v4156, %v4162
    %v4165 = vadd.f32 %v4157, %v4162
    %s4166 = scalar_lea.vmem [#allocation13], 32
    %v4167 = vld [vmem:[%s4166] sm:$0xff]
    %v4168 = vld [vmem:[%s4166 + $0x8] sm:$0xff]
    %v4169 = vld [vmem:[%s4166 + $0x10] sm:$0xff]
    %v4170 = vld [vmem:[%s4166 + $0x18] sm:$0xff]
    %s4171 = scalar_lea.vmem [#allocation14], 1
    %v4172 = vld [vmem:[%s4171] sm:$0x1]
    %v4174 = vlaneseq
    %v4175 = vshrl.u32 %v4174, 7
    %v4176 = vsub.s32 0, %v4175
    %v4177 = vrot.slane %v4172, %v4176
    %v4180 = vsel %vm337, %v4164, 0
    %v4183 = vsel %vm337, %v4165, 0
    %4185 = vmatprep.subr.mxu0 0.0
    %4186 = vmatpush1.msra.mxu0 %v4167
    %4187 = vmatprep.subr.mxu0 0.0
    %4188 = vmatpush1.msra.mxu0 %v4168
    %4189 = vmatprep.subr.mxu0 0.0
    %4190 = vmatpush1.msra.mxu0 %v4169
    %4191 = vmatprep.subr.mxu0 0.0
    %4192 = vmatpush1.msra.mxu0 %v4170
    %4193 = vmatprep.subr.mxu0 0.0
    %4194 = vmatpush1.msra.mxu0 0.0
    %4195 = vmatprep.subr.mxu0 0.0
    %4196 = vmatpush1.msra.mxu0 0.0
    %4197 = vmatprep.subr.mxu0 0.0
    %4198 = vmatpush1.msra.mxu0 0.0
    %4199 = vmatprep.subr.mxu0 0.0
    %4200 = vmatpush1.msra.mxu0 0.0
    %4201 = vmatprep.subr.mxu0 0.0
    %4202 = vmatpush1.msra.mxu0 0.0
    %4203 = vmatprep.subr.mxu0 0.0
    %4204 = vmatpush1.msra.mxu0 0.0
    %4205 = vmatprep.subr.mxu0 0.0
    %4206 = vmatpush1.msra.mxu0 0.0
    %4207 = vmatprep.subr.mxu0 0.0
    %4208 = vmatpush1.msra.mxu0 0.0
    %4209 = vmatprep.subr.mxu0 0.0
    %4210 = vmatpush1.msra.mxu0 0.0
    %4211 = vmatprep.subr.mxu0 0.0
    %4212 = vmatpush1.msra.mxu0 0.0
    %4213 = vmatprep.subr.mxu0 0.0
    %4214 = vmatpush1.msra.mxu0 0.0
    %4215 = vmatprep.subr.mxu0 0.0
    %4216 = vmatpush1.msra.mxu0 0.0
    %4217 = vmatprep.subr.mxu0 0.0
    %4218 = vmatpush1.msra.mxu0 0.0
    %4219 = vmatprep.subr.mxu0 0.0
    %4220 = vmatpush1.msra.mxu0 0.0
    %4221 = vmatprep.subr.mxu0 0.0
    %4222 = vmatpush1.msra.mxu0 0.0
    %4223 = vmatprep.subr.mxu0 0.0
    %4224 = vmatpush1.msra.mxu0 0.0
    %4225 = vmatprep.subr.mxu0 0.0
    %4226 = vmatpush1.msra.mxu0 0.0
    %4227 = vmatprep.subr.mxu0 0.0
    %4228 = vmatpush1.msra.mxu0 0.0
    %4229 = vmatprep.subr.mxu0 0.0
    %4230 = vmatpush1.msra.mxu0 0.0
    %4231 = vmatprep.subr.mxu0 0.0
    %4232 = vmatpush1.msra.mxu0 0.0
    %4233 = vmatprep.subr.mxu0 0.0
    %4234 = vmatpush1.msra.mxu0 0.0
    %4235 = vmatprep.subr.mxu0 0.0
    %4236 = vmatpush1.msra.mxu0 0.0
    %4237 = vmatprep.subr.mxu0 0.0
    %4238 = vmatpush1.msra.mxu0 0.0
    %4239 = vmatprep.subr.mxu0 0.0
    %4240 = vmatpush1.msra.mxu0 0.0
    %4241 = vmatprep.subr.mxu0 0.0
    %4242 = vmatpush1.msra.mxu0 0.0
    %4243 = vmatprep.subr.mxu0 0.0
    %4244 = vmatpush1.msra.mxu0 0.0
    %4245 = vmatprep.subr.mxu0 0.0
    %4246 = vmatpush1.msra.mxu0 0.0
    %4247 = vmatprep.subr.mxu0 0.0
    %4248 = vmatpush1.msra.mxu0 0.0
    %4249 = vmatprep.mubr.f32.mxu0 0.0
    %4250 = vmatmul.mubr.f32.gmra.mrb[0].mxu0 %v4180
    %v4251 = vpop.f32.mrb[0].mxu0
    %v4252 = vadd.f32 %v4177, %v4251
    %v4253 = vpop.f32.mrb[0].mxu0
    %4254 = vmatprep.mubr.f32.mxu0 0.0
    %4255 = vmatmul.mubr.f32.gmra.mrb[0].mxu0 %v4183
    %v4256 = vpop.f32.mrb[0].mxu0
    %v4257 = vadd.f32 %v4177, %v4256
    %v4258 = vpop.f32.mrb[0].mxu0
    %4259 = vdwg.mxu0
    %v4260 = vmax.f32 %v4252, 0.0
    %v4261 = vmax.f32 %v4257, 0.0
    %s4262 = scalar_lea.vmem %s13, 64
    %v4263 = vld [vmem:[%s4262] sm:$0xff]
    %v4264 = vld [vmem:[%s4262 + $0x8] sm:$0xff]
    %v4265 = vld [vmem:[%s4262 + $0x10] sm:$0xff]
    %v4266 = vld [vmem:[%s4262 + $0x18] sm:$0xff]
    %v4267 = vld [vmem:[%s4262 + $0x20] sm:$0xff]
    %v4268 = vld [vmem:[%s4262 + $0x28] sm:$0xff]
    %v4269 = vld [vmem:[%s4262 + $0x30] sm:$0xff]
    %v4270 = vld [vmem:[%s4262 + $0x38] sm:$0xff]
    %s4271 = scalar_lea.vmem [#allocation16], 1
    %v4272 = vld [vmem:[%s4271] sm:$0x1]
    %v4274 = vlaneseq
    %v4275 = vshrl.u32 %v4274, 7
    %v4276 = vsub.s32 0, %v4275
    %v4277 = vrot.slane %v4272, %v4276
    %v4280 = vsel %vm2235, %v4260, 0
    %v4283 = vsel %vm2235, %v4261, 0
    %4285 = vmatprep.subr.mxu0 0.0
    %4286 = vmatpush1.msra.mxu0 %v4263
    %4287 = vmatprep.subr.mxu0 0.0
    %4288 = vmatpush1.msra.mxu0 %v4264
    %4289 = vmatprep.subr.mxu0 0.0
    %4290 = vmatpush1.msra.mxu0 %v4265
    %4291 = vmatprep.subr.mxu0 0.0
    %4292 = vmatpush1.msra.mxu0 %v4266
    %4293 = vmatprep.subr.mxu0 0.0
    %4294 = vmatpush1.msra.mxu0 %v4267
    %4295 = vmatprep.subr.mxu0 0.0
    %4296 = vmatpush1.msra.mxu0 %v4268
    %4297 = vmatprep.subr.mxu0 0.0
    %4298 = vmatpush1.msra.mxu0 %v4269
    %4299 = vmatprep.subr.mxu0 0.0
    %4300 = vmatpush1.msra.mxu0 %v4270
    %4301 = vmatprep.subr.mxu0 0.0
    %4302 = vmatpush1.msra.mxu0 0.0
    %4303 = vmatprep.subr.mxu0 0.0
    %4304 = vmatpush1.msra.mxu0 0.0
    %4305 = vmatprep.subr.mxu0 0.0
    %4306 = vmatpush1.msra.mxu0 0.0
    %4307 = vmatprep.subr.mxu0 0.0
    %4308 = vmatpush1.msra.mxu0 0.0
    %4309 = vmatprep.subr.mxu0 0.0
    %4310 = vmatpush1.msra.mxu0 0.0
    %4311 = vmatprep.subr.mxu0 0.0
    %4312 = vmatpush1.msra.mxu0 0.0
    %4313 = vmatprep.subr.mxu0 0.0
    %4314 = vmatpush1.msra.mxu0 0.0
    %4315 = vmatprep.subr.mxu0 0.0
    %4316 = vmatpush1.msra.mxu0 0.0
    %4317 = vmatprep.subr.mxu0 0.0
    %4318 = vmatpush1.msra.mxu0 0.0
    %4319 = vmatprep.subr.mxu0 0.0
    %4320 = vmatpush1.msra.mxu0 0.0
    %4321 = vmatprep.subr.mxu0 0.0
    %4322 = vmatpush1.msra.mxu0 0.0
    %4323 = vmatprep.subr.mxu0 0.0
    %4324 = vmatpush1.msra.mxu0 0.0
    %4325 = vmatprep.subr.mxu0 0.0
    %4326 = vmatpush1.msra.mxu0 0.0
    %4327 = vmatprep.subr.mxu0 0.0
    %4328 = vmatpush1.msra.mxu0 0.0
    %4329 = vmatprep.subr.mxu0 0.0
    %4330 = vmatpush1.msra.mxu0 0.0
    %4331 = vmatprep.subr.mxu0 0.0
    %4332 = vmatpush1.msra.mxu0 0.0
    %4333 = vmatprep.subr.mxu0 0.0
    %4334 = vmatpush1.msra.mxu0 0.0
    %4335 = vmatprep.subr.mxu0 0.0
    %4336 = vmatpush1.msra.mxu0 0.0
    %4337 = vmatprep.subr.mxu0 0.0
    %4338 = vmatpush1.msra.mxu0 0.0
    %4339 = vmatprep.subr.mxu0 0.0
    %4340 = vmatpush1.msra.mxu0 0.0
    %4341 = vmatprep.subr.mxu0 0.0
    %4342 = vmatpush1.msra.mxu0 0.0
    %4343 = vmatprep.subr.mxu0 0.0
    %4344 = vmatpush1.msra.mxu0 0.0
    %4345 = vmatprep.subr.mxu0 0.0
    %4346 = vmatpush1.msra.mxu0 0.0
    %4347 = vmatprep.subr.mxu0 0.0
    %4348 = vmatpush1.msra.mxu0 0.0
    %4349 = vmatprep.mubr.f32.mxu0 0.0
    %4350 = vmatmul.mubr.f32.gmra.mrb[0].mxu0 %v4280
    %v4351 = vpop.f32.mrb[0].mxu0
    %v4352 = vadd.f32 %v4277, %v4351
    %v4353 = vpop.f32.mrb[0].mxu0
    %4354 = vmatprep.mubr.f32.mxu0 0.0
    %4355 = vmatmul.mubr.f32.gmra.mrb[0].mxu0 %v4283
    %v4356 = vpop.f32.mrb[0].mxu0
    %v4357 = vadd.f32 %v4277, %v4356
    %v4358 = vpop.f32.mrb[0].mxu0
    %4359 = vdwg.mxu0
    %v4360 = vadd.f32 %v4164, %v4352
    %v4361 = vadd.f32 %v4165, %v4357
    %s4362 = scalar_lea.vmem [#allocation17], 1
    %v4363 = vld [vmem:[%s4362] sm:$0x1]
    %s4364 = scalar_lea.vmem [#allocation19], 1
    %v4365 = vld [vmem:[%s4364] sm:$0x1]
    %v4366 = vsel %vm337, %v4360, 0.0
    %4367 = vadd.xlane.f32.xlu0 %v4366
    %v4368 = vpop.xlane.xlu0 %4367
    %v4369 = vsel %vm337, %v4361, 0.0
    %4370 = vadd.xlane.f32.xlu0 %v4369
    %v4371 = vpop.xlane.xlu0 %4370
    %v4372 = vmul.f32 %v4368, %v2089
    %v4373 = vmul.f32 %v4371, %v2089
    %v4374 = vsub.f32 %v4360, %v4372
    %v4375 = vsub.f32 %v4361, %v4373
    %v4376 = vmul.f32 %v4374, %v4374
    %v4377 = vmul.f32 %v4375, %v4375
    %v4378 = vsel %vm337, %v4376, 0.0
    %4379 = vadd.xlane.f32.xlu0 %v4378
    %v4380 = vpop.xlane.xlu0 %4379
    %v4381 = vsel %vm337, %v4377, 0.0
    %4382 = vadd.xlane.f32.xlu0 %v4381
    %v4383 = vpop.xlane.xlu0 %4382
    %v4384 = vmul.f32 %v4380, %v2089
    %v4385 = vmul.f32 %v4383, %v2089
    %v4386 = vadd.f32 %v4384, 1e-05
    %v4387 = vadd.f32 %v4385, 1e-05
    %v4388 = vrsqrt.pop %v4386
    %v4389 = vrsqrt.pop %v4387
    %v4390 = vmul.f32 %v4374, %v4388
    %v4391 = vmul.f32 %v4375, %v4389
    %v4393 = vlaneseq
    %v4394 = vshrl.u32 %v4393, 7
    %v4395 = vsub.s32 0, %v4394
    %v4396 = vrot.slane %v4363, %v4395
    %v4398 = vmul.f32 %v4390, %v4396
    %v4399 = vmul.f32 %v4391, %v4396
    %v4401 = vlaneseq
    %v4402 = vshrl.u32 %v4401, 7
    %v4403 = vsub.s32 0, %v4402
    %v4404 = vrot.slane %v4365, %v4403
    %v4406 = vadd.f32 %v4398, %v4404
    %v4407 = vadd.f32 %v4399, %v4404
    %v4408 = vld [vmem:[%s17] sm:$0xff]
    %v4409 = vld [vmem:[%s17 + $0x8] sm:$0xff]
    %v4410 = vld [vmem:[%s17 + $0x10] sm:$0xff]
    %v4411 = vld [vmem:[%s17 + $0x18] sm:$0xff]
    %s4412 = scalar_lea.vmem %s17, 32
    %v4413 = vld [vmem:[%s4412] sm:$0xff]
    %v4414 = vld [vmem:[%s4412 + $0x8] sm:$0xff]
    %v4415 = vld [vmem:[%s4412 + $0x10] sm:$0xff]
    %v4416 = vld [vmem:[%s4412 + $0x18] sm:$0xff]
    %v4419 = vrot.slane %v4406, 1
    %vm4420 = vcmask 1041409
    %v4421 = vsel %vm4420, %v4407, %v4419
    %v4422 = vsel %vm337, %v4421, 0
    %4424 = vmatprep.subr.mxu0 0.0
    %4425 = vmatpush1.msra.mxu0 %v4413
    %4426 = vmatprep.subr.mxu0 0.0
    %4427 = vmatpush1.msra.mxu0 %v4414
    %4428 = vmatprep.subr.mxu0 0.0
    %4429 = vmatpush1.msra.mxu0 %v4415
    %4430 = vmatprep.subr.mxu0 0.0
    %4431 = vmatpush1.msra.mxu0 %v4416
    %4432 = vmatprep.subr.mxu0 0.0
    %4433 = vmatpush1.msra.mxu0 0.0
    %4434 = vmatprep.subr.mxu0 0.0
    %4435 = vmatpush1.msra.mxu0 0.0
    %4436 = vmatprep.subr.mxu0 0.0
    %4437 = vmatpush1.msra.mxu0 0.0
    %4438 = vmatprep.subr.mxu0 0.0
    %4439 = vmatpush1.msra.mxu0 0.0
    %4440 = vmatprep.subr.mxu0 0.0
    %4441 = vmatpush1.msra.mxu0 0.0
    %4442 = vmatprep.subr.mxu0 0.0
    %4443 = vmatpush1.msra.mxu0 0.0
    %4444 = vmatprep.subr.mxu0 0.0
    %4445 = vmatpush1.msra.mxu0 0.0
    %4446 = vmatprep.subr.mxu0 0.0
    %4447 = vmatpush1.msra.mxu0 0.0
    %4448 = vmatprep.subr.mxu0 0.0
    %4449 = vmatpush1.msra.mxu0 0.0
    %4450 = vmatprep.subr.mxu0 0.0
    %4451 = vmatpush1.msra.mxu0 0.0
    %4452 = vmatprep.subr.mxu0 0.0
    %4453 = vmatpush1.msra.mxu0 0.0
    %4454 = vmatprep.subr.mxu0 0.0
    %4455 = vmatpush1.msra.mxu0 0.0
    %4456 = vmatprep.subr.mxu0 0.0
    %4457 = vmatpush1.msra.mxu0 0.0
    %4458 = vmatprep.subr.mxu0 0.0
    %4459 = vmatpush1.msra.mxu0 0.0
    %4460 = vmatprep.subr.mxu0 0.0
    %4461 = vmatpush1.msra.mxu0 0.0
    %4462 = vmatprep.subr.mxu0 0.0
    %4463 = vmatpush1.msra.mxu0 0.0
    %4464 = vmatprep.subr.mxu0 0.0
    %4465 = vmatpush1.msra.mxu0 0.0
    %4466 = vmatprep.subr.mxu0 0.0
    %4467 = vmatpush1.msra.mxu0 0.0
    %4468 = vmatprep.subr.mxu0 0.0
    %4469 = vmatpush1.msra.mxu0 0.0
    %4470 = vmatprep.subr.mxu0 0.0
    %4471 = vmatpush1.msra.mxu0 0.0
    %4472 = vmatprep.subr.mxu0 0.0
    %4473 = vmatpush1.msra.mxu0 0.0
    %4474 = vmatprep.subr.mxu0 0.0
    %4475 = vmatpush1.msra.mxu0 0.0
    %4476 = vmatprep.subr.mxu0 0.0
    %4477 = vmatpush1.msra.mxu0 0.0
    %4478 = vmatprep.subr.mxu0 0.0
    %4479 = vmatpush1.msra.mxu0 0.0
    %4480 = vmatprep.subr.mxu0 0.0
    %4481 = vmatpush1.msra.mxu0 0.0
    %4482 = vmatprep.subr.mxu0 0.0
    %4483 = vmatpush1.msra.mxu0 0.0
    %4484 = vmatprep.subr.mxu0 0.0
    %4485 = vmatpush1.msra.mxu0 0.0
    %4486 = vmatprep.subr.mxu0 0.0
    %4487 = vmatpush1.msra.mxu0 0.0
    %4488 = vmatprep.mubr.f32.mxu0 0.0
    %4489 = vmatmul.mubr.f32.gmra.mrb[0].mxu0 %v4422
    %v4490 = vpop.f32.mrb[0].mxu0
    %v4491 = vadd.f32 0.0, %v4490
    %v4492 = vpop.f32.mrb[0].mxu0
    %4493 = vdwg.mxu0
    %v4494 = vrot.slane %v4407, 7
    %v4495 = vsel %vm4420, %v4494, %v4406
    %v4496 = vsel %vm337, %v4495, 0
    %4498 = vmatprep.subr.mxu0 0.0
    %4499 = vmatpush1.msra.mxu0 %v4408
    %4500 = vmatprep.subr.mxu0 0.0
    %4501 = vmatpush1.msra.mxu0 %v4409
    %4502 = vmatprep.subr.mxu0 0.0
    %4503 = vmatpush1.msra.mxu0 %v4410
    %4504 = vmatprep.subr.mxu0 0.0
    %4505 = vmatpush1.msra.mxu0 %v4411
    %4506 = vmatprep.subr.mxu0 0.0
    %4507 = vmatpush1.msra.mxu0 0.0
    %4508 = vmatprep.subr.mxu0 0.0
    %4509 = vmatpush1.msra.mxu0 0.0
    %4510 = vmatprep.subr.mxu0 0.0
    %4511 = vmatpush1.msra.mxu0 0.0
    %4512 = vmatprep.subr.mxu0 0.0
    %4513 = vmatpush1.msra.mxu0 0.0
    %4514 = vmatprep.subr.mxu0 0.0
    %4515 = vmatpush1.msra.mxu0 0.0
    %4516 = vmatprep.subr.mxu0 0.0
    %4517 = vmatpush1.msra.mxu0 0.0
    %4518 = vmatprep.subr.mxu0 0.0
    %4519 = vmatpush1.msra.mxu0 0.0
    %4520 = vmatprep.subr.mxu0 0.0
    %4521 = vmatpush1.msra.mxu0 0.0
    %4522 = vmatprep.subr.mxu0 0.0
    %4523 = vmatpush1.msra.mxu0 0.0
    %4524 = vmatprep.subr.mxu0 0.0
    %4525 = vmatpush1.msra.mxu0 0.0
    %4526 = vmatprep.subr.mxu0 0.0
    %4527 = vmatpush1.msra.mxu0 0.0
    %4528 = vmatprep.subr.mxu0 0.0
    %4529 = vmatpush1.msra.mxu0 0.0
    %4530 = vmatprep.subr.mxu0 0.0
    %4531 = vmatpush1.msra.mxu0 0.0
    %4532 = vmatprep.subr.mxu0 0.0
    %4533 = vmatpush1.msra.mxu0 0.0
    %4534 = vmatprep.subr.mxu0 0.0
    %4535 = vmatpush1.msra.mxu0 0.0
    %4536 = vmatprep.subr.mxu0 0.0
    %4537 = vmatpush1.msra.mxu0 0.0
    %4538 = vmatprep.subr.mxu0 0.0
    %4539 = vmatpush1.msra.mxu0 0.0
    %4540 = vmatprep.subr.mxu0 0.0
    %4541 = vmatpush1.msra.mxu0 0.0
    %4542 = vmatprep.subr.mxu0 0.0
    %4543 = vmatpush1.msra.mxu0 0.0
    %4544 = vmatprep.subr.mxu0 0.0
    %4545 = vmatpush1.msra.mxu0 0.0
    %4546 = vmatprep.subr.mxu0 0.0
    %4547 = vmatpush1.msra.mxu0 0.0
    %4548 = vmatprep.subr.mxu0 0.0
    %4549 = vmatpush1.msra.mxu0 0.0
    %4550 = vmatprep.subr.mxu0 0.0
    %4551 = vmatpush1.msra.mxu0 0.0
    %4552 = vmatprep.subr.mxu0 0.0
    %4553 = vmatpush1.msra.mxu0 0.0
    %4554 = vmatprep.subr.mxu0 0.0
    %4555 = vmatpush1.msra.mxu0 0.0
    %4556 = vmatprep.subr.mxu0 0.0
    %4557 = vmatpush1.msra.mxu0 0.0
    %4558 = vmatprep.subr.mxu0 0.0
    %4559 = vmatpush1.msra.mxu0 0.0
    %4560 = vmatprep.subr.mxu0 0.0
    %4561 = vmatpush1.msra.mxu0 0.0
    %4562 = vmatprep.mubr.f32.mxu0 0.0
    %4563 = vmatmul.mubr.f32.gmra.mrb[0].mxu0 %v4496
    %v4564 = vpop.f32.mrb[0].mxu0
    %v4565 = vadd.f32 %v4491, %v4564
    %v4566 = vpop.f32.mrb[0].mxu0
    %4567 = vdwg.mxu0
    %s4568 = scalar_lea.vmem %s17, 64
    %v4569 = vld [vmem:[%s4568] sm:$0xff]
    %v4570 = vld [vmem:[%s4568 + $0x8] sm:$0xff]
    %v4571 = vld [vmem:[%s4568 + $0x10] sm:$0xff]
    %v4572 = vld [vmem:[%s4568 + $0x18] sm:$0xff]
    %v4573 = vrot.slane %v4406, 2
    %v4574 = vrot.slane %v4407, 1
    %v4575 = vsel %vm4420, %v4574, %v4573
    %v4576 = vsel %vm337, %v4575, 0
    %4578 = vmatprep.subr.mxu0 0.0
    %4579 = vmatpush1.msra.mxu0 %v4569
    %4580 = vmatprep.subr.mxu0 0.0
    %4581 = vmatpush1.msra.mxu0 %v4570
    %4582 = vmatprep.subr.mxu0 0.0
    %4583 = vmatpush1.msra.mxu0 %v4571
    %4584 = vmatprep.subr.mxu0 0.0
    %4585 = vmatpush1.msra.mxu0 %v4572
    %4586 = vmatprep.subr.mxu0 0.0
    %4587 = vmatpush1.msra.mxu0 0.0
    %4588 = vmatprep.subr.mxu0 0.0
    %4589 = vmatpush1.msra.mxu0 0.0
    %4590 = vmatprep.subr.mxu0 0.0
    %4591 = vmatpush1.msra.mxu0 0.0
    %4592 = vmatprep.subr.mxu0 0.0
    %4593 = vmatpush1.msra.mxu0 0.0
    %4594 = vmatprep.subr.mxu0 0.0
    %4595 = vmatpush1.msra.mxu0 0.0
    %4596 = vmatprep.subr.mxu0 0.0
    %4597 = vmatpush1.msra.mxu0 0.0
    %4598 = vmatprep.subr.mxu0 0.0
    %4599 = vmatpush1.msra.mxu0 0.0
    %4600 = vmatprep.subr.mxu0 0.0
    %4601 = vmatpush1.msra.mxu0 0.0
    %4602 = vmatprep.subr.mxu0 0.0
    %4603 = vmatpush1.msra.mxu0 0.0
    %4604 = vmatprep.subr.mxu0 0.0
    %4605 = vmatpush1.msra.mxu0 0.0
    %4606 = vmatprep.subr.mxu0 0.0
    %4607 = vmatpush1.msra.mxu0 0.0
    %4608 = vmatprep.subr.mxu0 0.0
    %4609 = vmatpush1.msra.mxu0 0.0
    %4610 = vmatprep.subr.mxu0 0.0
    %4611 = vmatpush1.msra.mxu0 0.0
    %4612 = vmatprep.subr.mxu0 0.0
    %4613 = vmatpush1.msra.mxu0 0.0
    %4614 = vmatprep.subr.mxu0 0.0
    %4615 = vmatpush1.msra.mxu0 0.0
    %4616 = vmatprep.subr.mxu0 0.0
    %4617 = vmatpush1.msra.mxu0 0.0
    %4618 = vmatprep.subr.mxu0 0.0
    %4619 = vmatpush1.msra.mxu0 0.0
    %4620 = vmatprep.subr.mxu0 0.0
    %4621 = vmatpush1.msra.mxu0 0.0
    %4622 = vmatprep.subr.mxu0 0.0
    %4623 = vmatpush1.msra.mxu0 0.0
    %4624 = vmatprep.subr.mxu0 0.0
    %4625 = vmatpush1.msra.mxu0 0.0
    %4626 = vmatprep.subr.mxu0 0.0
    %4627 = vmatpush1.msra.mxu0 0.0
    %4628 = vmatprep.subr.mxu0 0.0
    %4629 = vmatpush1.msra.mxu0 0.0
    %4630 = vmatprep.subr.mxu0 0.0
    %4631 = vmatpush1.msra.mxu0 0.0
    %4632 = vmatprep.subr.mxu0 0.0
    %4633 = vmatpush1.msra.mxu0 0.0
    %4634 = vmatprep.subr.mxu0 0.0
    %4635 = vmatpush1.msra.mxu0 0.0
    %4636 = vmatprep.subr.mxu0 0.0
    %4637 = vmatpush1.msra.mxu0 0.0
    %4638 = vmatprep.subr.mxu0 0.0
    %4639 = vmatpush1.msra.mxu0 0.0
    %4640 = vmatprep.subr.mxu0 0.0
    %4641 = vmatpush1.msra.mxu0 0.0
    %4642 = vmatprep.mubr.f32.mxu0 0.0
    %4643 = vmatmul.mubr.f32.gmra.mrb[0].mxu0 %v4576
    %v4644 = vpop.f32.mrb[0].mxu0
    %v4645 = vadd.f32 0.0, %v4644
    %v4646 = vpop.f32.mrb[0].mxu0
    %4647 = vdwg.mxu0
    %v4648 = vadd.f32 %v4565, %v4645
    %s4649 = scalar_lea.vmem %s17, 96
    %v4650 = vld [vmem:[%s4649] sm:$0xff]
    %v4651 = vld [vmem:[%s4649 + $0x8] sm:$0xff]
    %v4652 = vld [vmem:[%s4649 + $0x10] sm:$0xff]
    %v4653 = vld [vmem:[%s4649 + $0x18] sm:$0xff]
    %v4654 = vrot.slane %v4406, 3
    %v4655 = vrot.slane %v4407, 2
    %v4656 = vsel %vm4420, %v4655, %v4654
    %v4657 = vsel %vm337, %v4656, 0
    %4659 = vmatprep.subr.mxu0 0.0
    %4660 = vmatpush1.msra.mxu0 %v4650
    %4661 = vmatprep.subr.mxu0 0.0
    %4662 = vmatpush1.msra.mxu0 %v4651
    %4663 = vmatprep.subr.mxu0 0.0
    %4664 = vmatpush1.msra.mxu0 %v4652
    %4665 = vmatprep.subr.mxu0 0.0
    %4666 = vmatpush1.msra.mxu0 %v4653
    %4667 = vmatprep.subr.mxu0 0.0
    %4668 = vmatpush1.msra.mxu0 0.0
    %4669 = vmatprep.subr.mxu0 0.0
    %4670 = vmatpush1.msra.mxu0 0.0
    %4671 = vmatprep.subr.mxu0 0.0
    %4672 = vmatpush1.msra.mxu0 0.0
    %4673 = vmatprep.subr.mxu0 0.0
    %4674 = vmatpush1.msra.mxu0 0.0
    %4675 = vmatprep.subr.mxu0 0.0
    %4676 = vmatpush1.msra.mxu0 0.0
    %4677 = vmatprep.subr.mxu0 0.0
    %4678 = vmatpush1.msra.mxu0 0.0
    %4679 = vmatprep.subr.mxu0 0.0
    %4680 = vmatpush1.msra.mxu0 0.0
    %4681 = vmatprep.subr.mxu0 0.0
    %4682 = vmatpush1.msra.mxu0 0.0
    %4683 = vmatprep.subr.mxu0 0.0
    %4684 = vmatpush1.msra.mxu0 0.0
    %4685 = vmatprep.subr.mxu0 0.0
    %4686 = vmatpush1.msra.mxu0 0.0
    %4687 = vmatprep.subr.mxu0 0.0
    %4688 = vmatpush1.msra.mxu0 0.0
    %4689 = vmatprep.subr.mxu0 0.0
    %4690 = vmatpush1.msra.mxu0 0.0
    %4691 = vmatprep.subr.mxu0 0.0
    %4692 = vmatpush1.msra.mxu0 0.0
    %4693 = vmatprep.subr.mxu0 0.0
    %4694 = vmatpush1.msra.mxu0 0.0
    %4695 = vmatprep.subr.mxu0 0.0
    %4696 = vmatpush1.msra.mxu0 0.0
    %4697 = vmatprep.subr.mxu0 0.0
    %4698 = vmatpush1.msra.mxu0 0.0
    %4699 = vmatprep.subr.mxu0 0.0
    %4700 = vmatpush1.msra.mxu0 0.0
    %4701 = vmatprep.subr.mxu0 0.0
    %4702 = vmatpush1.msra.mxu0 0.0
    %4703 = vmatprep.subr.mxu0 0.0
    %4704 = vmatpush1.msra.mxu0 0.0
    %4705 = vmatprep.subr.mxu0 0.0
    %4706 = vmatpush1.msra.mxu0 0.0
    %4707 = vmatprep.subr.mxu0 0.0
    %4708 = vmatpush1.msra.mxu0 0.0
    %4709 = vmatprep.subr.mxu0 0.0
    %4710 = vmatpush1.msra.mxu0 0.0
    %4711 = vmatprep.subr.mxu0 0.0
    %4712 = vmatpush1.msra.mxu0 0.0
    %4713 = vmatprep.subr.mxu0 0.0
    %4714 = vmatpush1.msra.mxu0 0.0
    %4715 = vmatprep.subr.mxu0 0.0
    %4716 = vmatpush1.msra.mxu0 0.0
    %4717 = vmatprep.subr.mxu0 0.0
    %4718 = vmatpush1.msra.mxu0 0.0
    %4719 = vmatprep.subr.mxu0 0.0
    %4720 = vmatpush1.msra.mxu0 0.0
    %4721 = vmatprep.subr.mxu0 0.0
    %4722 = vmatpush1.msra.mxu0 0.0
    %4723 = vmatprep.mubr.f32.mxu0 0.0
    %4724 = vmatmul.mubr.f32.gmra.mrb[0].mxu0 %v4657
    %v4725 = vpop.f32.mrb[0].mxu0
    %v4726 = vadd.f32 0.0, %v4725
    %v4727 = vpop.f32.mrb[0].mxu0
    %4728 = vdwg.mxu0
    %v4729 = vadd.f32 %v4648, %v4726
    %s4730 = scalar_lea.vmem %s17, 128
    %v4731 = vld [vmem:[%s4730] sm:$0xff]
    %v4732 = vld [vmem:[%s4730 + $0x8] sm:$0xff]
    %v4733 = vld [vmem:[%s4730 + $0x10] sm:$0xff]
    %v4734 = vld [vmem:[%s4730 + $0x18] sm:$0xff]
    %v4735 = vrot.slane %v4406, 4
    %v4736 = vrot.slane %v4407, 3
    %v4737 = vsel %vm4420, %v4736, %v4735
    %v4738 = vsel %vm337, %v4737, 0
    %4740 = vmatprep.subr.mxu0 0.0
    %4741 = vmatpush1.msra.mxu0 %v4731
    %4742 = vmatprep.subr.mxu0 0.0
    %4743 = vmatpush1.msra.mxu0 %v4732
    %4744 = vmatprep.subr.mxu0 0.0
    %4745 = vmatpush1.msra.mxu0 %v4733
    %4746 = vmatprep.subr.mxu0 0.0
    %4747 = vmatpush1.msra.mxu0 %v4734
    %4748 = vmatprep.subr.mxu0 0.0
    %4749 = vmatpush1.msra.mxu0 0.0
    %4750 = vmatprep.subr.mxu0 0.0
    %4751 = vmatpush1.msra.mxu0 0.0
    %4752 = vmatprep.subr.mxu0 0.0
    %4753 = vmatpush1.msra.mxu0 0.0
    %4754 = vmatprep.subr.mxu0 0.0
    %4755 = vmatpush1.msra.mxu0 0.0
    %4756 = vmatprep.subr.mxu0 0.0
    %4757 = vmatpush1.msra.mxu0 0.0
    %4758 = vmatprep.subr.mxu0 0.0
    %4759 = vmatpush1.msra.mxu0 0.0
    %4760 = vmatprep.subr.mxu0 0.0
    %4761 = vmatpush1.msra.mxu0 0.0
    %4762 = vmatprep.subr.mxu0 0.0
    %4763 = vmatpush1.msra.mxu0 0.0
    %4764 = vmatprep.subr.mxu0 0.0
    %4765 = vmatpush1.msra.mxu0 0.0
    %4766 = vmatprep.subr.mxu0 0.0
    %4767 = vmatpush1.msra.mxu0 0.0
    %4768 = vmatprep.subr.mxu0 0.0
    %4769 = vmatpush1.msra.mxu0 0.0
    %4770 = vmatprep.subr.mxu0 0.0
    %4771 = vmatpush1.msra.mxu0 0.0
    %4772 = vmatprep.subr.mxu0 0.0
    %4773 = vmatpush1.msra.mxu0 0.0
    %4774 = vmatprep.subr.mxu0 0.0
    %4775 = vmatpush1.msra.mxu0 0.0
    %4776 = vmatprep.subr.mxu0 0.0
    %4777 = vmatpush1.msra.mxu0 0.0
    %4778 = vmatprep.subr.mxu0 0.0
    %4779 = vmatpush1.msra.mxu0 0.0
    %4780 = vmatprep.subr.mxu0 0.0
    %4781 = vmatpush1.msra.mxu0 0.0
    %4782 = vmatprep.subr.mxu0 0.0
    %4783 = vmatpush1.msra.mxu0 0.0
    %4784 = vmatprep.subr.mxu0 0.0
    %4785 = vmatpush1.msra.mxu0 0.0
    %4786 = vmatprep.subr.mxu0 0.0
    %4787 = vmatpush1.msra.mxu0 0.0
    %4788 = vmatprep.subr.mxu0 0.0
    %4789 = vmatpush1.msra.mxu0 0.0
    %4790 = vmatprep.subr.mxu0 0.0
    %4791 = vmatpush1.msra.mxu0 0.0
    %4792 = vmatprep.subr.mxu0 0.0
    %4793 = vmatpush1.msra.mxu0 0.0
    %4794 = vmatprep.subr.mxu0 0.0
    %4795 = vmatpush1.msra.mxu0 0.0
    %4796 = vmatprep.subr.mxu0 0.0
    %4797 = vmatpush1.msra.mxu0 0.0
    %4798 = vmatprep.subr.mxu0 0.0
    %4799 = vmatpush1.msra.mxu0 0.0
    %4800 = vmatprep.subr.mxu0 0.0
    %4801 = vmatpush1.msra.mxu0 0.0
    %4802 = vmatprep.subr.mxu0 0.0
    %4803 = vmatpush1.msra.mxu0 0.0
    %4804 = vmatprep.mubr.f32.mxu0 0.0
    %4805 = vmatmul.mubr.f32.gmra.mrb[0].mxu0 %v4738
    %v4806 = vpop.f32.mrb[0].mxu0
    %v4807 = vadd.f32 0.0, %v4806
    %v4808 = vpop.f32.mrb[0].mxu0
    %4809 = vdwg.mxu0
    %v4810 = vadd.f32 %v4729, %v4807
    %s4811 = scalar_lea.vmem %s17, 160
    %v4812 = vld [vmem:[%s4811] sm:$0xff]
    %v4813 = vld [vmem:[%s4811 + $0x8] sm:$0xff]
    %v4814 = vld [vmem:[%s4811 + $0x10] sm:$0xff]
    %v4815 = vld [vmem:[%s4811 + $0x18] sm:$0xff]
    %v4816 = vrot.slane %v4406, 5
    %v4817 = vrot.slane %v4407, 4
    %v4818 = vsel %vm4420, %v4817, %v4816
    %v4819 = vsel %vm337, %v4818, 0
    %4821 = vmatprep.subr.mxu0 0.0
    %4822 = vmatpush1.msra.mxu0 %v4812
    %4823 = vmatprep.subr.mxu0 0.0
    %4824 = vmatpush1.msra.mxu0 %v4813
    %4825 = vmatprep.subr.mxu0 0.0
    %4826 = vmatpush1.msra.mxu0 %v4814
    %4827 = vmatprep.subr.mxu0 0.0
    %4828 = vmatpush1.msra.mxu0 %v4815
    %4829 = vmatprep.subr.mxu0 0.0
    %4830 = vmatpush1.msra.mxu0 0.0
    %4831 = vmatprep.subr.mxu0 0.0
    %4832 = vmatpush1.msra.mxu0 0.0
    %4833 = vmatprep.subr.mxu0 0.0
    %4834 = vmatpush1.msra.mxu0 0.0
    %4835 = vmatprep.subr.mxu0 0.0
    %4836 = vmatpush1.msra.mxu0 0.0
    %4837 = vmatprep.subr.mxu0 0.0
    %4838 = vmatpush1.msra.mxu0 0.0
    %4839 = vmatprep.subr.mxu0 0.0
    %4840 = vmatpush1.msra.mxu0 0.0
    %4841 = vmatprep.subr.mxu0 0.0
    %4842 = vmatpush1.msra.mxu0 0.0
    %4843 = vmatprep.subr.mxu0 0.0
    %4844 = vmatpush1.msra.mxu0 0.0
    %4845 = vmatprep.subr.mxu0 0.0
    %4846 = vmatpush1.msra.mxu0 0.0
    %4847 = vmatprep.subr.mxu0 0.0
    %4848 = vmatpush1.msra.mxu0 0.0
    %4849 = vmatprep.subr.mxu0 0.0
    %4850 = vmatpush1.msra.mxu0 0.0
    %4851 = vmatprep.subr.mxu0 0.0
    %4852 = vmatpush1.msra.mxu0 0.0
    %4853 = vmatprep.subr.mxu0 0.0
    %4854 = vmatpush1.msra.mxu0 0.0
    %4855 = vmatprep.subr.mxu0 0.0
    %4856 = vmatpush1.msra.mxu0 0.0
    %4857 = vmatprep.subr.mxu0 0.0
    %4858 = vmatpush1.msra.mxu0 0.0
    %4859 = vmatprep.subr.mxu0 0.0
    %4860 = vmatpush1.msra.mxu0 0.0
    %4861 = vmatprep.subr.mxu0 0.0
    %4862 = vmatpush1.msra.mxu0 0.0
    %4863 = vmatprep.subr.mxu0 0.0
    %4864 = vmatpush1.msra.mxu0 0.0
    %4865 = vmatprep.subr.mxu0 0.0
    %4866 = vmatpush1.msra.mxu0 0.0
    %4867 = vmatprep.subr.mxu0 0.0
    %4868 = vmatpush1.msra.mxu0 0.0
    %4869 = vmatprep.subr.mxu0 0.0
    %4870 = vmatpush1.msra.mxu0 0.0
    %4871 = vmatprep.subr.mxu0 0.0
    %4872 = vmatpush1.msra.mxu0 0.0
    %4873 = vmatprep.subr.mxu0 0.0
    %4874 = vmatpush1.msra.mxu0 0.0
    %4875 = vmatprep.subr.mxu0 0.0
    %4876 = vmatpush1.msra.mxu0 0.0
    %4877 = vmatprep.subr.mxu0 0.0
    %4878 = vmatpush1.msra.mxu0 0.0
    %4879 = vmatprep.subr.mxu0 0.0
    %4880 = vmatpush1.msra.mxu0 0.0
    %4881 = vmatprep.subr.mxu0 0.0
    %4882 = vmatpush1.msra.mxu0 0.0
    %4883 = vmatprep.subr.mxu0 0.0
    %4884 = vmatpush1.msra.mxu0 0.0
    %4885 = vmatprep.mubr.f32.mxu0 0.0
    %4886 = vmatmul.mubr.f32.gmra.mrb[0].mxu0 %v4819
    %v4887 = vpop.f32.mrb[0].mxu0
    %v4888 = vadd.f32 0.0, %v4887
    %v4889 = vpop.f32.mrb[0].mxu0
    %4890 = vdwg.mxu0
    %v4891 = vadd.f32 %v4810, %v4888
    %s4892 = scalar_lea.vmem %s17, 192
    %v4893 = vld [vmem:[%s4892] sm:$0xff]
    %v4894 = vld [vmem:[%s4892 + $0x8] sm:$0xff]
    %v4895 = vld [vmem:[%s4892 + $0x10] sm:$0xff]
    %v4896 = vld [vmem:[%s4892 + $0x18] sm:$0xff]
    %v4897 = vrot.slane %v4406, 6
    %v4898 = vrot.slane %v4407, 5
    %v4899 = vsel %vm4420, %v4898, %v4897
    %v4900 = vsel %vm337, %v4899, 0
    %4902 = vmatprep.subr.mxu0 0.0
    %4903 = vmatpush1.msra.mxu0 %v4893
    %4904 = vmatprep.subr.mxu0 0.0
    %4905 = vmatpush1.msra.mxu0 %v4894
    %4906 = vmatprep.subr.mxu0 0.0
    %4907 = vmatpush1.msra.mxu0 %v4895
    %4908 = vmatprep.subr.mxu0 0.0
    %4909 = vmatpush1.msra.mxu0 %v4896
    %4910 = vmatprep.subr.mxu0 0.0
    %4911 = vmatpush1.msra.mxu0 0.0
    %4912 = vmatprep.subr.mxu0 0.0
    %4913 = vmatpush1.msra.mxu0 0.0
    %4914 = vmatprep.subr.mxu0 0.0
    %4915 = vmatpush1.msra.mxu0 0.0
    %4916 = vmatprep.subr.mxu0 0.0
    %4917 = vmatpush1.msra.mxu0 0.0
    %4918 = vmatprep.subr.mxu0 0.0
    %4919 = vmatpush1.msra.mxu0 0.0
    %4920 = vmatprep.subr.mxu0 0.0
    %4921 = vmatpush1.msra.mxu0 0.0
    %4922 = vmatprep.subr.mxu0 0.0
    %4923 = vmatpush1.msra.mxu0 0.0
    %4924 = vmatprep.subr.mxu0 0.0
    %4925 = vmatpush1.msra.mxu0 0.0
    %4926 = vmatprep.subr.mxu0 0.0
    %4927 = vmatpush1.msra.mxu0 0.0
    %4928 = vmatprep.subr.mxu0 0.0
    %4929 = vmatpush1.msra.mxu0 0.0
    %4930 = vmatprep.subr.mxu0 0.0
    %4931 = vmatpush1.msra.mxu0 0.0
    %4932 = vmatprep.subr.mxu0 0.0
    %4933 = vmatpush1.msra.mxu0 0.0
    %4934 = vmatprep.subr.mxu0 0.0
    %4935 = vmatpush1.msra.mxu0 0.0
    %4936 = vmatprep.subr.mxu0 0.0
    %4937 = vmatpush1.msra.mxu0 0.0
    %4938 = vmatprep.subr.mxu0 0.0
    %4939 = vmatpush1.msra.mxu0 0.0
    %4940 = vmatprep.subr.mxu0 0.0
    %4941 = vmatpush1.msra.mxu0 0.0
    %4942 = vmatprep.subr.mxu0 0.0
    %4943 = vmatpush1.msra.mxu0 0.0
    %4944 = vmatprep.subr.mxu0 0.0
    %4945 = vmatpush1.msra.mxu0 0.0
    %4946 = vmatprep.subr.mxu0 0.0
    %4947 = vmatpush1.msra.mxu0 0.0
    %4948 = vmatprep.subr.mxu0 0.0
    %4949 = vmatpush1.msra.mxu0 0.0
    %4950 = vmatprep.subr.mxu0 0.0
    %4951 = vmatpush1.msra.mxu0 0.0
    %4952 = vmatprep.subr.mxu0 0.0
    %4953 = vmatpush1.msra.mxu0 0.0
    %4954 = vmatprep.subr.mxu0 0.0
    %4955 = vmatpush1.msra.mxu0 0.0
    %4956 = vmatprep.subr.mxu0 0.0
    %4957 = vmatpush1.msra.mxu0 0.0
    %4958 = vmatprep.subr.mxu0 0.0
    %4959 = vmatpush1.msra.mxu0 0.0
    %4960 = vmatprep.subr.mxu0 0.0
    %4961 = vmatpush1.msra.mxu0 0.0
    %4962 = vmatprep.subr.mxu0 0.0
    %4963 = vmatpush1.msra.mxu0 0.0
    %4964 = vmatprep.subr.mxu0 0.0
    %4965 = vmatpush1.msra.mxu0 0.0
    %4966 = vmatprep.mubr.f32.mxu0 0.0
    %4967 = vmatmul.mubr.f32.gmra.mrb[0].mxu0 %v4900
    %v4968 = vpop.f32.mrb[0].mxu0
    %v4969 = vadd.f32 0.0, %v4968
    %v4970 = vpop.f32.mrb[0].mxu0
    %4971 = vdwg.mxu0
    %v4972 = vadd.f32 %v4891, %v4969
    %s4973 = scalar_lea.vmem %s17, 224
    %v4974 = vld [vmem:[%s4973] sm:$0xff]
    %v4975 = vld [vmem:[%s4973 + $0x8] sm:$0xff]
    %v4976 = vld [vmem:[%s4973 + $0x10] sm:$0xff]
    %v4977 = vld [vmem:[%s4973 + $0x18] sm:$0xff]
    %v4978 = vrot.slane %v4406, 7
    %v4979 = vrot.slane %v4407, 6
    %v4980 = vsel %vm4420, %v4979, %v4978
    %v4981 = vsel %vm337, %v4980, 0
    %4983 = vmatprep.subr.mxu0 0.0
    %4984 = vmatpush1.msra.mxu0 %v4974
    %4985 = vmatprep.subr.mxu0 0.0
    %4986 = vmatpush1.msra.mxu0 %v4975
    %4987 = vmatprep.subr.mxu0 0.0
    %4988 = vmatpush1.msra.mxu0 %v4976
    %4989 = vmatprep.subr.mxu0 0.0
    %4990 = vmatpush1.msra.mxu0 %v4977
    %4991 = vmatprep.subr.mxu0 0.0
    %4992 = vmatpush1.msra.mxu0 0.0
    %4993 = vmatprep.subr.mxu0 0.0
    %4994 = vmatpush1.msra.mxu0 0.0
    %4995 = vmatprep.subr.mxu0 0.0
    %4996 = vmatpush1.msra.mxu0 0.0
    %4997 = vmatprep.subr.mxu0 0.0
    %4998 = vmatpush1.msra.mxu0 0.0
    %4999 = vmatprep.subr.mxu0 0.0
    %5000 = vmatpush1.msra.mxu0 0.0
    %5001 = vmatprep.subr.mxu0 0.0
    %5002 = vmatpush1.msra.mxu0 0.0
    %5003 = vmatprep.subr.mxu0 0.0
    %5004 = vmatpush1.msra.mxu0 0.0
    %5005 = vmatprep.subr.mxu0 0.0
    %5006 = vmatpush1.msra.mxu0 0.0
    %5007 = vmatprep.subr.mxu0 0.0
    %5008 = vmatpush1.msra.mxu0 0.0
    %5009 = vmatprep.subr.mxu0 0.0
    %5010 = vmatpush1.msra.mxu0 0.0
    %5011 = vmatprep.subr.mxu0 0.0
    %5012 = vmatpush1.msra.mxu0 0.0
    %5013 = vmatprep.subr.mxu0 0.0
    %5014 = vmatpush1.msra.mxu0 0.0
    %5015 = vmatprep.subr.mxu0 0.0
    %5016 = vmatpush1.msra.mxu0 0.0
    %5017 = vmatprep.subr.mxu0 0.0
    %5018 = vmatpush1.msra.mxu0 0.0
    %5019 = vmatprep.subr.mxu0 0.0
    %5020 = vmatpush1.msra.mxu0 0.0
    %5021 = vmatprep.subr.mxu0 0.0
    %5022 = vmatpush1.msra.mxu0 0.0
    %5023 = vmatprep.subr.mxu0 0.0
    %5024 = vmatpush1.msra.mxu0 0.0
    %5025 = vmatprep.subr.mxu0 0.0
    %5026 = vmatpush1.msra.mxu0 0.0
    %5027 = vmatprep.subr.mxu0 0.0
    %5028 = vmatpush1.msra.mxu0 0.0
    %5029 = vmatprep.subr.mxu0 0.0
    %5030 = vmatpush1.msra.mxu0 0.0
    %5031 = vmatprep.subr.mxu0 0.0
    %5032 = vmatpush1.msra.mxu0 0.0
    %5033 = vmatprep.subr.mxu0 0.0
    %5034 = vmatpush1.msra.mxu0 0.0
    %5035 = vmatprep.subr.mxu0 0.0
    %5036 = vmatpush1.msra.mxu0 0.0
    %5037 = vmatprep.subr.mxu0 0.0
    %5038 = vmatpush1.msra.mxu0 0.0
    %5039 = vmatprep.subr.mxu0 0.0
    %5040 = vmatpush1.msra.mxu0 0.0
    %5041 = vmatprep.subr.mxu0 0.0
    %5042 = vmatpush1.msra.mxu0 0.0
    %5043 = vmatprep.subr.mxu0 0.0
    %5044 = vmatpush1.msra.mxu0 0.0
    %5045 = vmatprep.subr.mxu0 0.0
    %5046 = vmatpush1.msra.mxu0 0.0
    %5047 = vmatprep.mubr.f32.mxu0 0.0
    %5048 = vmatmul.mubr.f32.gmra.mrb[0].mxu0 %v4981
    %v5049 = vpop.f32.mrb[0].mxu0
    %v5050 = vadd.f32 0.0, %v5049
    %v5051 = vpop.f32.mrb[0].mxu0
    %5052 = vdwg.mxu0
    %v5053 = vadd.f32 %v4972, %v5050
    %v5054 = vld [vmem:[%s18] sm:$0x1]
    %v5056 = vlaneseq
    %v5057 = vshrl.u32 %v5056, 7
    %v5058 = vsub.s32 0, %v5057
    %v5059 = vrot.slane %v5054, %v5058
    %v5061 = vadd.f32 %v5053, %v5059
    %v5062 = vmax.f32 %v5061, 0.0
    %v5063 = vld [vmem:[%s19] sm:$0xff]
    %v5064 = vld [vmem:[%s19 + $0x8] sm:$0xff]
    %v5065 = vld [vmem:[%s19 + $0x10] sm:$0xff]
    %v5066 = vld [vmem:[%s19 + $0x18] sm:$0xff]
    %v5067 = vld [vmem:[%s20] sm:$0x1]
    %v5069 = vlaneseq
    %v5070 = vshrl.u32 %v5069, 7
    %v5071 = vsub.s32 0, %v5070
    %v5072 = vrot.slane %v5067, %v5071
    %v5075 = vsel %vm337, %v5062, 0
    %5077 = vmatprep.subr.mxu0 0.0
    %5078 = vmatpush1.msra.mxu0 %v5063
    %5079 = vmatprep.subr.mxu0 0.0
    %5080 = vmatpush1.msra.mxu0 %v5064
    %5081 = vmatprep.subr.mxu0 0.0
    %5082 = vmatpush1.msra.mxu0 %v5065
    %5083 = vmatprep.subr.mxu0 0.0
    %5084 = vmatpush1.msra.mxu0 %v5066
    %5085 = vmatprep.subr.mxu0 0.0
    %5086 = vmatpush1.msra.mxu0 0.0
    %5087 = vmatprep.subr.mxu0 0.0
    %5088 = vmatpush1.msra.mxu0 0.0
    %5089 = vmatprep.subr.mxu0 0.0
    %5090 = vmatpush1.msra.mxu0 0.0
    %5091 = vmatprep.subr.mxu0 0.0
    %5092 = vmatpush1.msra.mxu0 0.0
    %5093 = vmatprep.subr.mxu0 0.0
    %5094 = vmatpush1.msra.mxu0 0.0
    %5095 = vmatprep.subr.mxu0 0.0
    %5096 = vmatpush1.msra.mxu0 0.0
    %5097 = vmatprep.subr.mxu0 0.0
    %5098 = vmatpush1.msra.mxu0 0.0
    %5099 = vmatprep.subr.mxu0 0.0
    %5100 = vmatpush1.msra.mxu0 0.0
    %5101 = vmatprep.subr.mxu0 0.0
    %5102 = vmatpush1.msra.mxu0 0.0
    %5103 = vmatprep.subr.mxu0 0.0
    %5104 = vmatpush1.msra.mxu0 0.0
    %5105 = vmatprep.subr.mxu0 0.0
    %5106 = vmatpush1.msra.mxu0 0.0
    %5107 = vmatprep.subr.mxu0 0.0
    %5108 = vmatpush1.msra.mxu0 0.0
    %5109 = vmatprep.subr.mxu0 0.0
    %5110 = vmatpush1.msra.mxu0 0.0
    %5111 = vmatprep.subr.mxu0 0.0
    %5112 = vmatpush1.msra.mxu0 0.0
    %5113 = vmatprep.subr.mxu0 0.0
    %5114 = vmatpush1.msra.mxu0 0.0
    %5115 = vmatprep.subr.mxu0 0.0
    %5116 = vmatpush1.msra.mxu0 0.0
    %5117 = vmatprep.subr.mxu0 0.0
    %5118 = vmatpush1.msra.mxu0 0.0
    %5119 = vmatprep.subr.mxu0 0.0
    %5120 = vmatpush1.msra.mxu0 0.0
    %5121 = vmatprep.subr.mxu0 0.0
    %5122 = vmatpush1.msra.mxu0 0.0
    %5123 = vmatprep.subr.mxu0 0.0
    %5124 = vmatpush1.msra.mxu0 0.0
    %5125 = vmatprep.subr.mxu0 0.0
    %5126 = vmatpush1.msra.mxu0 0.0
    %5127 = vmatprep.subr.mxu0 0.0
    %5128 = vmatpush1.msra.mxu0 0.0
    %5129 = vmatprep.subr.mxu0 0.0
    %5130 = vmatpush1.msra.mxu0 0.0
    %5131 = vmatprep.subr.mxu0 0.0
    %5132 = vmatpush1.msra.mxu0 0.0
    %5133 = vmatprep.subr.mxu0 0.0
    %5134 = vmatpush1.msra.mxu0 0.0
    %5135 = vmatprep.subr.mxu0 0.0
    %5136 = vmatpush1.msra.mxu0 0.0
    %5137 = vmatprep.subr.mxu0 0.0
    %5138 = vmatpush1.msra.mxu0 0.0
    %5139 = vmatprep.subr.mxu0 0.0
    %5140 = vmatpush1.msra.mxu0 0.0
    %5141 = vmatprep.mubr.f32.mxu0 0.0
    %5142 = vmatmul.mubr.f32.gmra.mrb[0].mxu0 %v5075
    %v5143 = vpop.f32.mrb[0].mxu0
    %v5144 = vadd.f32 %v5072, %v5143
    %v5145 = vpop.f32.mrb[0].mxu0
    %5146 = vdwg.mxu0
    %vm5147 = vcmask 74752
    %5148 = vst.msk [vmem:[#allocation20] sm:$0x3] %vm5147, %v5144
    // Predicated region
    $region130: #{tpu_custom_call.1} parent=1 // pred_check
      _
    $region131: #{tpu_custom_call.1} parent=1 // pred_check_branch
      %5150 = sbr.rel (0) target = $region133
    $region132: #{tpu_custom_call.1} parent=1 // pred_region
      %s5152 = ssub.s32 32, 32
      %5153 = vsyncadd [#allocation4], %s5152
      %s5155 = sshll.u32 [#allocation20], 4
      %s5156 = int_to_ptr.vmem [resolvable:$true] %s5155
      %5158 = dma.vmem_to_hbm [thread:$0]  %s5156, 32, %s21, [#allocation4]
    $region133: #{tpu_custom_call.1} parent=1 // pred_fallthru
      _
    // Predicated region
    $region134: #{tpu_custom_call.1} parent=1 // pred_check
      _
    $region135: #{tpu_custom_call.1} parent=1 // pred_check_branch
      %5160 = sbr.rel (0) target = $region137
    $region136: #{tpu_custom_call.1} parent=1 // pred_region
      %5161 = dma.done [#allocation4], 32
    $region137: #{tpu_custom_call.1} parent=1 // pred_fallthru
      _
    %5162 = vsyncpa [#allocation3], 1
    %5163 = vsyncpa [#allocation6], 1
    %5164 = vsyncpa [#allocation9], 1
    %5165 = vsyncpa [#allocation12], 1
    %5166 = vsyncpa [#allocation15], 1
    %5167 = vsyncpa [#allocation18], 1
    %5168 = vsyncpa [#allocation4], 1

</llo_original>
